<compile_context>
chip_gen: v7x
topology: tpu7x:2x2x1
jax: 0.10.0
libtpu: 0.0.40
codegen_flags: <defaults>
</compile_context>

<pallas_src>
import numpy as np
import jax
import jax.numpy as jnp
from jax.experimental import pallas as pl
from jax.experimental.pallas import tpu as pltpu

EPS = 1e-07


# ----------------------- numpy parameter setup (glue, mirrors __init__) ----------------
def F_np(x):
    return np.fft.fftshift(np.fft.fft2(np.fft.ifftshift(x)))


def iF_np(x):
    return np.fft.fftshift(np.fft.ifft2(np.fft.ifftshift(x)))


def setup_fpm_params(Np, na, na_illum, na_list, wl):
    """Mirrors fpm.setup_sampling / genPupil / setup_illumination."""
    na_recon = na + na_illum
    ps_recon = wl / (2.0 * na_recon)
    ux = np.linspace(-1.0 / (2 * ps_recon), 1.0 / (2 * ps_recon), Np[0])
    uy = np.linspace(-1.0 / (2 * ps_recon), 1.0 / (2 * ps_recon), Np[1])
    uxx, uyy = np.meshgrid(ux, uy)

    def genPupil(wl_, na_):
        urr2 = uxx ** 2 + uyy ** 2
        return (1.0 * (urr2 < (na_ / wl_) ** 2)).astype(np.float32)

    # self.P  (real pupil; the module's stored imag part is identically zero)
    P = np.fft.ifftshift(genPupil(wl, na)).astype(np.float32)

    Nleds = na_list.shape[0]
    planewaves = np.zeros((Nleds, Np[0], Np[1]), dtype=np.complex128)
    illum = np.zeros((Nleds, Np[0], Np[1]))
    for ii in range(Nleds):
        kspx = int(np.argmin(np.abs(uxx[0, :] - na_list[ii, 0] / wl)))
        kspy = int(np.argmin(np.abs(uyy[:, 0] - na_list[ii, 1] / wl)))
        illum[ii, kspx, kspy] = 1.0
        planewaves[ii] = F_np(illum[ii])

    pupils = np.zeros((Nleds, Np[0], Np[1]), dtype=np.float32)
    Pmeas = genPupil(wl, na).astype(np.float32)
    for ii in range(Nleds):
        pupils[ii] = np.fft.ifftshift(np.abs(F_np(np.conj(planewaves[ii]) * iF_np(Pmeas))))

    return P, planewaves, pupils


# --------------------------------- Pallas kernel ---------------------------------------
def make_fpm_kernel(alpha):

    def kernel(fre_ref, fim_ref, pwr_ref, pwi_ref, Ppk_ref, pup_ref, tile_ref,
               S_ref, sqrtmm_ref, Tr_ref, Ti_ref,
               W0fr_ref, W0fi_ref, W0br_ref, W0bi_ref,
               W1fr_ref, W1fi_ref, W1br_ref, W1bi_ref,
               out_re_ref, out_im_ref,
               inten_ref, qr_ref, qi_ref, acc_re_ref, acc_im_ref):
        m = pl.program_id(0)

        tile_m = tile_ref[...]
        W0fr = W0fr_ref[...]
        W0fi = W0fi_ref[...]
        W0br = W0br_ref[...]
        W0bi = W0bi_ref[...]
        W1fr = W1fr_ref[...]
        W1fi = W1fi_ref[...]

        def rdot(a, b):
            return jnp.dot(a, b, preferred_element_type=jnp.float32)

        def cmm(ar, ai, br, bi):
            # Karatsuba 3-mult complex matmul on the MXU, f32 accumulation.
            k1 = rdot(ar, br)
            k2 = rdot(ai, bi)
            k3 = rdot(ar + ai, br + bi)
            return k1 - k2, k3 - k1 - k2

        def fft2_pk(xr, xi):               # X -> W0 @ X @ blockdiag(W1,...,W1)
            tr, ti = cmm(W0fr, W0fi, xr, xi)
            return cmm(tr, ti, W1fr, W1fi)

        # ---- LED-packed forward fields, computed once (m == 0), cached in VMEM scratch ----
        @pl.when(m == 0)
        def _precompute():
            acc_re_ref[...] = jnp.zeros_like(acc_re_ref)
            acc_im_ref[...] = jnp.zeros_like(acc_im_ref)
            # lane-pack the field across LED blocks: x_pk[r, l*N1 + c] = x[r, c]
            xr = rdot(fre_ref[...], tile_m)
            xi = rdot(fim_ref[...], tile_m)
            pwr = pwr_ref[...]
            pwi = pwi_ref[...]
            ar = pwr * xr - pwi * xi                      # planewave * field
            ai = pwr * xi + pwi * xr
            sr, si = fft2_pk(ar, ai)
            P = Ppk_ref[...]                              # imag(P) == 0 -> dropped
            W1br = W1br_ref[...]                          # inverse-DFT mats only needed here
            W1bi = W1bi_ref[...]
            tr, ti = cmm(W0br, W0bi, P * sr, P * si)
            o_r, o_i = cmm(tr, ti, W1br, W1bi)            # out0 (LED-packed)
            inten_ref[...] = o_r * o_r + o_i * o_i        # |out0|^2 cached
            qr_ref[...] = pwr * o_r + pwi * o_i           # conj(planewave) * out0 cached
            qi_ref[...] = pwr * o_i - pwi * o_r

        # ---- Ajx for this measurement (per-LED FMA loop folded into one MXU matmul) ----
        S_m = S_ref[0]                                    # (L, N1) C-weighted LED reducer
        y_m = rdot(inten_ref[...], S_m)
        sqrty = jnp.sqrt(y_m + EPS)
        ajx = (sqrty - sqrtmm_ref[0]) / (sqrty + 1e-10)   # sqrt(|C@meas|+EPS) precomputed
        ajx_pk = rdot(ajx, tile_m)                        # tile over LED lanes via MXU

        # ---- backprojection for this measurement, accumulate into resident scratch ----
        cr = ajx_pk * qr_ref[...]                         # conj(planewave)*(Ajx*out0)
        ci = ajx_pk * qi_ref[...]
        sr, si = fft2_pk(cr, ci)
        pup = pup_ref[...]                                # pupils (real) * (.)
        ur, ui = cmm(W0br, W0bi, pup * sr, pup * si)      # inverse-FFT left multiply
        gr, gi = cmm(ur, ui, Tr_ref[0], Ti_ref[0])        # fused (W1b_bd @ S_m) reducer
        acc_re_ref[...] = acc_re_ref[...] + gr
        acc_im_ref[...] = acc_im_ref[...] + gi

        # forward(x) = x - alpha * grad(x); only the final step's write matters
        @pl.when(m == pl.num_programs(0) - 1)
        def _finalize():
            out_re_ref[...] = fre_ref[...] - alpha * acc_re_ref[...]
            out_im_ref[...] = fim_ref[...] - alpha * acc_im_ref[...]

    return kernel


def fpm_forward(x_pair, planewaves_c, P_real, pupils, measurements, C, alpha):
    x_pair = jnp.asarray(x_pair, jnp.float32)
    N0, N1 = int(x_pair.shape[0]), int(x_pair.shape[1])
    Nmeas, Nleds = int(np.shape(C)[0]), int(np.shape(C)[1])
    L = Nleds * N1                        # lane-packed width (128 for the demo sizes)

    # ---- host-side constants (x-independent) ----
    def dft_mat(n):
        k = np.arange(n)
        return np.exp(-2j * np.pi * np.outer(k, k) / n)

    W0 = dft_mat(N0)
    W1 = dft_mat(N1)
    W0b = np.conj(W0) / N0                               # inverse DFT, 1/N0 folded in
    W1b = np.conj(W1) / N1
    W1f_bd = np.kron(np.eye(Nleds), W1)                  # block-diag right-multiply DFT
    W1b_bd = np.kron(np.eye(Nleds), W1b)                 # inverse, 1/N1 folded in

    pw = np.asarray(planewaves_c)
    pwr_pk = pw.real.transpose(1, 0, 2).reshape(N0, L).astype(np.float32)
    pwi_pk = pw.imag.transpose(1, 0, 2).reshape(N0, L).astype(np.float32)
    pup_pk = np.asarray(pupils, np.float32).transpose(1, 0, 2).reshape(N0, L)
    P_pk = np.tile(np.asarray(P_real, np.float32), (1, Nleds))        # imag(P) == 0 dropped
    tileM = np.tile(np.eye(N1, dtype=np.float32), (1, Nleds))         # (N1, L) lane tiler

    # x-independent measurement terms hoisted out of the kernel
    C_j = jnp.asarray(C, jnp.float32)
    meas_j = jnp.asarray(measurements, jnp.float32)
    sqrtmm = jnp.sqrt(jnp.abs(jnp.einsum('ml,lxy->mxy', C_j, meas_j)) + EPS)
    S = (C_j[:, :, None, None] * jnp.eye(N1, dtype=jnp.float32)[None, None, :, :]
         ).reshape(Nmeas, L, N1)                                      # C-weighted LED reducer
    # fused inverse-FFT + LED reducer:  T_m = blockdiag(W1b) @ S_m  (block l = C[m,l] * W1b)
    Tr = (C_j[:, :, None, None] * jnp.asarray(W1b.real.astype(np.float32))[None, None]
          ).reshape(Nmeas, L, N1)
    Ti = (C_j[:, :, None, None] * jnp.asarray(W1b.imag.astype(np.float32))[None, None]
          ).reshape(Nmeas, L, N1)

    fre = x_pair[..., 0]
    fim = x_pair[..., 1]

    spec_xy = pl.BlockSpec((N0, N1), lambda m: (0, 0))
    spec_pk = pl.BlockSpec((N0, L), lambda m: (0, 0))
    spec_tl = pl.BlockSpec((N1, L), lambda m: (0, 0))
    spec_S = pl.BlockSpec((1, L, N1), lambda m: (m, 0, 0))
    spec_mm = pl.BlockSpec((1, N0, N1), lambda m: (m, 0, 0))
    spec_w0 = pl.BlockSpec((N0, N0), lambda m: (0, 0))
    spec_w1 = pl.BlockSpec((L, L), lambda m: (0, 0))

    kernel = make_fpm_kernel(float(alpha))

    out_re, out_im = pl.pallas_call(
        kernel,
        out_shape=(jax.ShapeDtypeStruct((N0, N1), jnp.float32),
                   jax.ShapeDtypeStruct((N0, N1), jnp.float32)),
        grid=(Nmeas,),
        in_specs=[spec_xy, spec_xy,                     # field re/im
                  spec_pk, spec_pk,                     # planewaves re/im (LED-packed)
                  spec_pk, spec_pk,                     # P (packed), pupils (packed)
                  spec_tl,                              # lane-tiling matrix
                  spec_S, spec_mm,                      # per-measurement reducer / sqrt(mm)
                  spec_S, spec_S,                       # fused W1b@S reducer re/im
                  spec_w0, spec_w0, spec_w0, spec_w0,   # W0 fwd/inv re/im
                  spec_w1, spec_w1, spec_w1, spec_w1],  # blockdiag W1 fwd/inv re/im
        out_specs=(spec_xy, spec_xy),
        scratch_shapes=[
            pltpu.VMEM((N0, L), jnp.float32),   # |out0|^2 (LED-packed)
            pltpu.VMEM((N0, L), jnp.float32),   # conj(planewave)*out0 real (LED-packed)
            pltpu.VMEM((N0, L), jnp.float32),   # conj(planewave)*out0 imag (LED-packed)
            pltpu.VMEM((N0, N1), jnp.float32),  # grad accumulator (real)
            pltpu.VMEM((N0, N1), jnp.float32),  # grad accumulator (imag)
        ],
        compiler_params=pltpu.CompilerParams(
            dimension_semantics=("arbitrary",),         # resident accumulator across meas
            vmem_limit_bytes=32 * 1024 * 1024,          # explicit limit, ample headroom
        ),
    )(fre, fim,
      jnp.asarray(pwr_pk), jnp.asarray(pwi_pk),
      jnp.asarray(P_pk), jnp.asarray(pup_pk),
      jnp.asarray(tileM),
      S, sqrtmm, Tr, Ti,
      jnp.asarray(W0.real.astype(np.float32)), jnp.asarray(W0.imag.astype(np.float32)),
      jnp.asarray(W0b.real.astype(np.float32)), jnp.asarray(W0b.imag.astype(np.float32)),
      jnp.asarray(W1f_bd.real.astype(np.float32)), jnp.asarray(W1f_bd.imag.astype(np.float32)),
      jnp.asarray(W1b_bd.real.astype(np.float32)), jnp.asarray(W1b_bd.imag.astype(np.float32)))

    return jnp.stack([out_re, out_im], axis=-1)


# ------------------------------ pure-numpy reference ------------------------------------
def reference_forward(x_pair, planewaves, P, pupils, meas, C, alpha):
    field = x_pair[..., 0] + 1j * x_pair[..., 1]
    out0 = np.fft.ifft2(P[None] * np.fft.fft2(planewaves * field[None], axes=(1, 2)),
                        axes=(1, 2))
    inten = np.abs(out0) ** 2
    y = np.einsum('ml,lxy->mxy', C, inten)
    mm = np.abs(np.einsum('ml,lxy->mxy', C, meas))
    sqrty = np.sqrt(y + EPS)
    ajx = (sqrty - np.sqrt(mm + EPS)) / (sqrty + 1e-10)
    g = np.zeros_like(field)
    for m in range(C.shape[0]):
        t = np.conj(planewaves) * (ajx[m][None] * out0)
        t = np.fft.ifft2(pupils * np.fft.fft2(t, axes=(1, 2)), axes=(1, 2))
        g = g + np.einsum('l,lxy->xy', C[m], t)
    out = field - alpha * g
    return np.stack([out.real, out.imag], axis=-1)


# --------------------------------------- main -------------------------------------------
if __name__ == "__main__":
    Np = [16, 16]
    Nleds = 8
    Nmeas = Nleds // 4                       # module default: Nleds // 4 = 2
    wl, na, na_illum = 0.5, 0.25, 0.4
    alpha = 0.1

    ang = 2.0 * np.pi * np.arange(Nleds) / Nleds
    na_list = np.stack([0.3 * np.cos(ang), 0.3 * np.sin(ang)], axis=1).astype(np.float32)

    P_np, planewaves_np, pupils_np = setup_fpm_params(Np, na, na_illum, na_list, wl)

    key = jax.random.PRNGKey(0)
    k1, k2, k3 = jax.random.split(key, 3)
    measurements = jax.random.uniform(k1, (Nleds, Np[0], Np[1]), jnp.float32)
    C = jax.random.uniform(k2, (Nmeas, Nleds), jnp.float32)   # deterministic C init
    x = jax.random.normal(k3, (Np[0], Np[1], 2), jnp.float32)

    out = fpm_forward(x, planewaves_np, P_np, pupils_np, measurements, C, alpha)
    out = jax.block_until_ready(out)

    ref = reference_forward(np.asarray(x, np.float64),
                            planewaves_np.astype(np.complex128),
                            P_np.astype(np.float64),
                            pupils_np.astype(np.float64),
                            np.asarray(measurements, np.float64),
                            np.asarray(C, np.float64),
                            alpha)

    assert out.shape == (Np[0], Np[1], 2) and out.dtype == jnp.float32
    assert np.allclose(np.asarray(out), ref, rtol=5e-3, atol=5e-3), \
        f"max abs diff {np.max(np.abs(np.asarray(out) - ref))}"
    print("KERNEL_OK")
</pallas_src>

<mosaic_0001>
module attributes {stable_mosaic.version = 11 : i64} {
  func.func @kernel(%arg0: i32, %arg1: memref<16x16xf32, #tpu.memory_space<vmem>>, %arg2: memref<16x16xf32, #tpu.memory_space<vmem>>, %arg3: memref<16x128xf32, #tpu.memory_space<vmem>>, %arg4: memref<16x128xf32, #tpu.memory_space<vmem>>, %arg5: memref<16x128xf32, #tpu.memory_space<vmem>>, %arg6: memref<16x128xf32, #tpu.memory_space<vmem>>, %arg7: memref<16x128xf32, #tpu.memory_space<vmem>>, %arg8: memref<1x128x16xf32, #tpu.memory_space<vmem>>, %arg9: memref<1x16x16xf32, #tpu.memory_space<vmem>>, %arg10: memref<1x128x16xf32, #tpu.memory_space<vmem>>, %arg11: memref<1x128x16xf32, #tpu.memory_space<vmem>>, %arg12: memref<16x16xf32, #tpu.memory_space<vmem>>, %arg13: memref<16x16xf32, #tpu.memory_space<vmem>>, %arg14: memref<16x16xf32, #tpu.memory_space<vmem>>, %arg15: memref<16x16xf32, #tpu.memory_space<vmem>>, %arg16: memref<128x128xf32, #tpu.memory_space<vmem>>, %arg17: memref<128x128xf32, #tpu.memory_space<vmem>>, %arg18: memref<128x128xf32, #tpu.memory_space<vmem>>, %arg19: memref<128x128xf32, #tpu.memory_space<vmem>>, %arg20: memref<16x16xf32, #tpu.memory_space<vmem>>, %arg21: memref<16x16xf32, #tpu.memory_space<vmem>>, %arg22: memref<16x128xf32, #tpu.memory_space<vmem>>, %arg23: memref<16x128xf32, #tpu.memory_space<vmem>>, %arg24: memref<16x128xf32, #tpu.memory_space<vmem>>, %arg25: memref<16x16xf32, #tpu.memory_space<vmem>>, %arg26: memref<16x16xf32, #tpu.memory_space<vmem>>) attributes {dimension_semantics = [#tpu.dimension_semantics<arbitrary>], iteration_bounds = array<i64: 2>, scalar_prefetch = 0 : i64, scratch_operands = 5 : i64, tpu.core_type = #tpu.core_type<tc>, window_params = [{pipeline_mode = #tpu.pipeline_mode<synchronous>, transform_indices = @transform_0, window_bounds = array<i64: 16, 16>}, {pipeline_mode = #tpu.pipeline_mode<synchronous>, transform_indices = @transform_1, window_bounds = array<i64: 16, 16>}, {pipeline_mode = #tpu.pipeline_mode<synchronous>, transform_indices = @transform_2, window_bounds = array<i64: 16, 128>}, {pipeline_mode = #tpu.pipeline_mode<synchronous>, transform_indices = @transform_3, window_bounds = array<i64: 16, 128>}, {pipeline_mode = #tpu.pipeline_mode<synchronous>, transform_indices = @transform_4, window_bounds = array<i64: 16, 128>}, {pipeline_mode = #tpu.pipeline_mode<synchronous>, transform_indices = @transform_5, window_bounds = array<i64: 16, 128>}, {pipeline_mode = #tpu.pipeline_mode<synchronous>, transform_indices = @transform_6, window_bounds = array<i64: 16, 128>}, {transform_indices = @transform_7, window_bounds = array<i64: 1, 128, 16>}, {transform_indices = @transform_8, window_bounds = array<i64: 1, 16, 16>}, {transform_indices = @transform_9, window_bounds = array<i64: 1, 128, 16>}, {transform_indices = @transform_10, window_bounds = array<i64: 1, 128, 16>}, {pipeline_mode = #tpu.pipeline_mode<synchronous>, transform_indices = @transform_11, window_bounds = array<i64: 16, 16>}, {pipeline_mode = #tpu.pipeline_mode<synchronous>, transform_indices = @transform_12, window_bounds = array<i64: 16, 16>}, {pipeline_mode = #tpu.pipeline_mode<synchronous>, transform_indices = @transform_13, window_bounds = array<i64: 16, 16>}, {pipeline_mode = #tpu.pipeline_mode<synchronous>, transform_indices = @transform_14, window_bounds = array<i64: 16, 16>}, {pipeline_mode = #tpu.pipeline_mode<synchronous>, transform_indices = @transform_15, window_bounds = array<i64: 128, 128>}, {pipeline_mode = #tpu.pipeline_mode<synchronous>, transform_indices = @transform_16, window_bounds = array<i64: 128, 128>}, {pipeline_mode = #tpu.pipeline_mode<synchronous>, transform_indices = @transform_17, window_bounds = array<i64: 128, 128>}, {pipeline_mode = #tpu.pipeline_mode<synchronous>, transform_indices = @transform_18, window_bounds = array<i64: 128, 128>}, {pipeline_mode = #tpu.pipeline_mode<synchronous>, transform_indices = @transform_19, window_bounds = array<i64: 16, 16>}, {pipeline_mode = #tpu.pipeline_mode<synchronous>, transform_indices = @transform_20, window_bounds = array<i64: 16, 16>}]} {
    %c0 = arith.constant 0 : index
    %c0_0 = arith.constant 0 : index
    %0 = vector.load %arg7[%c0, %c0_0] : memref<16x128xf32, #tpu.memory_space<vmem>>, vector<16x128xf32>
    %c0_1 = arith.constant 0 : index
    %c0_2 = arith.constant 0 : index
    %1 = vector.load %arg12[%c0_1, %c0_2] : memref<16x16xf32, #tpu.memory_space<vmem>>, vector<16x16xf32>
    %c0_3 = arith.constant 0 : index
    %c0_4 = arith.constant 0 : index
    %2 = vector.load %arg13[%c0_3, %c0_4] : memref<16x16xf32, #tpu.memory_space<vmem>>, vector<16x16xf32>
    %c0_5 = arith.constant 0 : index
    %c0_6 = arith.constant 0 : index
    %3 = vector.load %arg14[%c0_5, %c0_6] : memref<16x16xf32, #tpu.memory_space<vmem>>, vector<16x16xf32>
    %c0_7 = arith.constant 0 : index
    %c0_8 = arith.constant 0 : index
    %4 = vector.load %arg15[%c0_7, %c0_8] : memref<16x16xf32, #tpu.memory_space<vmem>>, vector<16x16xf32>
    %c0_9 = arith.constant 0 : index
    %c0_10 = arith.constant 0 : index
    %5 = vector.load %arg16[%c0_9, %c0_10] : memref<128x128xf32, #tpu.memory_space<vmem>>, vector<128x128xf32>
    %c0_11 = arith.constant 0 : index
    %c0_12 = arith.constant 0 : index
    %6 = vector.load %arg17[%c0_11, %c0_12] : memref<128x128xf32, #tpu.memory_space<vmem>>, vector<128x128xf32>
    %c0_i32 = arith.constant 0 : i32
    %7 = arith.cmpi eq, %arg0, %c0_i32 : i32
    %8 = arith.extui %7 : i1 to i32
    %c0_i32_13 = arith.constant 0 : i32
    %9 = arith.cmpi ne, %8, %c0_i32_13 : i32
    scf.if %9 {
      %cst_58 = arith.constant 0.000000e+00 : f32
      %76 = vector.broadcast %cst_58 : f32 to vector<16x16xf32>
      %c0_59 = arith.constant 0 : index
      %c0_60 = arith.constant 0 : index
      %77 = vector.load %arg25[%c0_59, %c0_60] : memref<16x16xf32, #tpu.memory_space<vmem>>, vector<16x16xf32>
      tpu.vector_store %arg25[%c0_59, %c0_60], %76 {strides = array<i32>} : memref<16x16xf32, #tpu.memory_space<vmem>>, vector<16x16xf32>,
      %cst_61 = arith.constant 0.000000e+00 : f32
      %78 = vector.broadcast %cst_61 : f32 to vector<16x16xf32>
      %c0_62 = arith.constant 0 : index
      %c0_63 = arith.constant 0 : index
      %79 = vector.load %arg26[%c0_62, %c0_63] : memref<16x16xf32, #tpu.memory_space<vmem>>, vector<16x16xf32>
      tpu.vector_store %arg26[%c0_62, %c0_63], %78 {strides = array<i32>} : memref<16x16xf32, #tpu.memory_space<vmem>>, vector<16x16xf32>,
      %c0_64 = arith.constant 0 : index
      %c0_65 = arith.constant 0 : index
      %80 = vector.load %arg1[%c0_64, %c0_65] : memref<16x16xf32, #tpu.memory_space<vmem>>, vector<16x16xf32>
      %cst_66 = arith.constant dense<0.000000e+00> : vector<16x128xf32>
      %81 = tpu.matmul %80, %0, %cst_66 {dimension_numbers = #tpu.dot_dimension_numbers<[1], [0], [0], [1], [0, 0, 1, 1], [], []>} : vector<16x16xf32>, vector<16x128xf32>, vector<16x128xf32> -> vector<16x128xf32>
      %c0_67 = arith.constant 0 : index
      %c0_68 = arith.constant 0 : index
      %82 = vector.load %arg2[%c0_67, %c0_68] : memref<16x16xf32, #tpu.memory_space<vmem>>, vector<16x16xf32>
      %cst_69 = arith.constant dense<0.000000e+00> : vector<16x128xf32>
      %83 = tpu.matmul %82, %0, %cst_69 {dimension_numbers = #tpu.dot_dimension_numbers<[1], [0], [0], [1], [0, 0, 1, 1], [], []>} : vector<16x16xf32>, vector<16x128xf32>, vector<16x128xf32> -> vector<16x128xf32>
      %c0_70 = arith.constant 0 : index
      %c0_71 = arith.constant 0 : index
      %84 = vector.load %arg3[%c0_70, %c0_71] : memref<16x128xf32, #tpu.memory_space<vmem>>, vector<16x128xf32>
      %c0_72 = arith.constant 0 : index
      %c0_73 = arith.constant 0 : index
      %85 = vector.load %arg4[%c0_72, %c0_73] : memref<16x128xf32, #tpu.memory_space<vmem>>, vector<16x128xf32>
      %86 = arith.mulf %84, %81 : vector<16x128xf32>
      %87 = arith.mulf %85, %83 : vector<16x128xf32>
      %88 = arith.subf %86, %87 : vector<16x128xf32>
      %89 = arith.mulf %84, %83 : vector<16x128xf32>
      %90 = arith.mulf %85, %81 : vector<16x128xf32>
      %91 = arith.addf %89, %90 : vector<16x128xf32>
      %cst_74 = arith.constant dense<0.000000e+00> : vector<16x128xf32>
      %92 = tpu.matmul %1, %88, %cst_74 {dimension_numbers = #tpu.dot_dimension_numbers<[1], [0], [0], [1], [0, 0, 1, 1], [], []>} : vector<16x16xf32>, vector<16x128xf32>, vector<16x128xf32> -> vector<16x128xf32>
      %cst_75 = arith.constant dense<0.000000e+00> : vector<16x128xf32>
      %93 = tpu.matmul %2, %91, %cst_75 {dimension_numbers = #tpu.dot_dimension_numbers<[1], [0], [0], [1], [0, 0, 1, 1], [], []>} : vector<16x16xf32>, vector<16x128xf32>, vector<16x128xf32> -> vector<16x128xf32>
      %94 = arith.addf %1, %2 : vector<16x16xf32>
      %95 = arith.addf %88, %91 : vector<16x128xf32>
      %cst_76 = arith.constant dense<0.000000e+00> : vector<16x128xf32>
      %96 = tpu.matmul %94, %95, %cst_76 {dimension_numbers = #tpu.dot_dimension_numbers<[1], [0], [0], [1], [0, 0, 1, 1], [], []>} : vector<16x16xf32>, vector<16x128xf32>, vector<16x128xf32> -> vector<16x128xf32>
      %97 = arith.subf %92, %93 : vector<16x128xf32>
      %98 = arith.subf %96, %92 : vector<16x128xf32>
      %99 = arith.subf %98, %93 : vector<16x128xf32>
      %cst_77 = arith.constant dense<0.000000e+00> : vector<16x128xf32>
      %100 = tpu.matmul %97, %5, %cst_77 {dimension_numbers = #tpu.dot_dimension_numbers<[1], [0], [0], [1], [0, 0, 1, 1], [], []>} : vector<16x128xf32>, vector<128x128xf32>, vector<16x128xf32> -> vector<16x128xf32>
      %cst_78 = arith.constant dense<0.000000e+00> : vector<16x128xf32>
      %101 = tpu.matmul %99, %6, %cst_78 {dimension_numbers = #tpu.dot_dimension_numbers<[1], [0], [0], [1], [0, 0, 1, 1], [], []>} : vector<16x128xf32>, vector<128x128xf32>, vector<16x128xf32> -> vector<16x128xf32>
      %102 = arith.addf %97, %99 : vector<16x128xf32>
      %103 = arith.addf %5, %6 : vector<128x128xf32>
      %cst_79 = arith.constant dense<0.000000e+00> : vector<16x128xf32>
      %104 = tpu.matmul %102, %103, %cst_79 {dimension_numbers = #tpu.dot_dimension_numbers<[1], [0], [0], [1], [0, 0, 1, 1], [], []>} : vector<16x128xf32>, vector<128x128xf32>, vector<16x128xf32> -> vector<16x128xf32>
      %105 = arith.subf %100, %101 : vector<16x128xf32>
      %106 = arith.subf %104, %100 : vector<16x128xf32>
      %107 = arith.subf %106, %101 : vector<16x128xf32>
      %c0_80 = arith.constant 0 : index
      %c0_81 = arith.constant 0 : index
      %108 = vector.load %arg5[%c0_80, %c0_81] : memref<16x128xf32, #tpu.memory_space<vmem>>, vector<16x128xf32>
      %c0_82 = arith.constant 0 : index
      %c0_83 = arith.constant 0 : index
      %109 = vector.load %arg18[%c0_82, %c0_83] : memref<128x128xf32, #tpu.memory_space<vmem>>, vector<128x128xf32>
      %c0_84 = arith.constant 0 : index
      %c0_85 = arith.constant 0 : index
      %110 = vector.load %arg19[%c0_84, %c0_85] : memref<128x128xf32, #tpu.memory_space<vmem>>, vector<128x128xf32>
      %111 = arith.mulf %108, %105 : vector<16x128xf32>
      %112 = arith.mulf %108, %107 : vector<16x128xf32>
      %cst_86 = arith.constant dense<0.000000e+00> : vector<16x128xf32>
      %113 = tpu.matmul %3, %111, %cst_86 {dimension_numbers = #tpu.dot_dimension_numbers<[1], [0], [0], [1], [0, 0, 1, 1], [], []>} : vector<16x16xf32>, vector<16x128xf32>, vector<16x128xf32> -> vector<16x128xf32>
      %cst_87 = arith.constant dense<0.000000e+00> : vector<16x128xf32>
      %114 = tpu.matmul %4, %112, %cst_87 {dimension_numbers = #tpu.dot_dimension_numbers<[1], [0], [0], [1], [0, 0, 1, 1], [], []>} : vector<16x16xf32>, vector<16x128xf32>, vector<16x128xf32> -> vector<16x128xf32>
      %115 = arith.addf %3, %4 : vector<16x16xf32>
      %116 = arith.addf %111, %112 : vector<16x128xf32>
      %cst_88 = arith.constant dense<0.000000e+00> : vector<16x128xf32>
      %117 = tpu.matmul %115, %116, %cst_88 {dimension_numbers = #tpu.dot_dimension_numbers<[1], [0], [0], [1], [0, 0, 1, 1], [], []>} : vector<16x16xf32>, vector<16x128xf32>, vector<16x128xf32> -> vector<16x128xf32>
      %118 = arith.subf %113, %114 : vector<16x128xf32>
      %119 = arith.subf %117, %113 : vector<16x128xf32>
      %120 = arith.subf %119, %114 : vector<16x128xf32>
      %cst_89 = arith.constant dense<0.000000e+00> : vector<16x128xf32>
      %121 = tpu.matmul %118, %109, %cst_89 {dimension_numbers = #tpu.dot_dimension_numbers<[1], [0], [0], [1], [0, 0, 1, 1], [], []>} : vector<16x128xf32>, vector<128x128xf32>, vector<16x128xf32> -> vector<16x128xf32>
      %cst_90 = arith.constant dense<0.000000e+00> : vector<16x128xf32>
      %122 = tpu.matmul %120, %110, %cst_90 {dimension_numbers = #tpu.dot_dimension_numbers<[1], [0], [0], [1], [0, 0, 1, 1], [], []>} : vector<16x128xf32>, vector<128x128xf32>, vector<16x128xf32> -> vector<16x128xf32>
      %123 = arith.addf %118, %120 : vector<16x128xf32>
      %124 = arith.addf %109, %110 : vector<128x128xf32>
      %cst_91 = arith.constant dense<0.000000e+00> : vector<16x128xf32>
      %125 = tpu.matmul %123, %124, %cst_91 {dimension_numbers = #tpu.dot_dimension_numbers<[1], [0], [0], [1], [0, 0, 1, 1], [], []>} : vector<16x128xf32>, vector<128x128xf32>, vector<16x128xf32> -> vector<16x128xf32>
      %126 = arith.subf %121, %122 : vector<16x128xf32>
      %127 = arith.subf %125, %121 : vector<16x128xf32>
      %128 = arith.subf %127, %122 : vector<16x128xf32>
      %129 = arith.mulf %126, %126 : vector<16x128xf32>
      %130 = arith.mulf %128, %128 : vector<16x128xf32>
      %131 = arith.addf %129, %130 : vector<16x128xf32>
      %c0_92 = arith.constant 0 : index
      %c0_93 = arith.constant 0 : index
      %132 = vector.load %arg22[%c0_92, %c0_93] : memref<16x128xf32, #tpu.memory_space<vmem>>, vector<16x128xf32>
      tpu.vector_store %arg22[%c0_92, %c0_93], %131 {strides = array<i32>} : memref<16x128xf32, #tpu.memory_space<vmem>>, vector<16x128xf32>,
      %133 = arith.mulf %84, %126 : vector<16x128xf32>
      %134 = arith.mulf %85, %128 : vector<16x128xf32>
      %135 = arith.addf %133, %134 : vector<16x128xf32>
      %c0_94 = arith.constant 0 : index
      %c0_95 = arith.constant 0 : index
      %136 = vector.load %arg23[%c0_94, %c0_95] : memref<16x128xf32, #tpu.memory_space<vmem>>, vector<16x128xf32>
      tpu.vector_store %arg23[%c0_94, %c0_95], %135 {strides = array<i32>} : memref<16x128xf32, #tpu.memory_space<vmem>>, vector<16x128xf32>,
      %137 = arith.mulf %84, %128 : vector<16x128xf32>
      %138 = arith.mulf %85, %126 : vector<16x128xf32>
      %139 = arith.subf %137, %138 : vector<16x128xf32>
      %c0_96 = arith.constant 0 : index
      %c0_97 = arith.constant 0 : index
      %140 = vector.load %arg24[%c0_96, %c0_97] : memref<16x128xf32, #tpu.memory_space<vmem>>, vector<16x128xf32>
      tpu.vector_store %arg24[%c0_96, %c0_97], %139 {strides = array<i32>} : memref<16x128xf32, #tpu.memory_space<vmem>>, vector<16x128xf32>,
    } else {
    }
    %c0_14 = arith.constant 0 : index
    %c0_15 = arith.constant 0 : index
    %c0_16 = arith.constant 0 : index
    %10 = vector.load %arg8[%c0_14, %c0_15, %c0_16] : memref<1x128x16xf32, #tpu.memory_space<vmem>>, vector<1x128x16xf32>
    %11 = vector.shape_cast %10 : vector<1x128x16xf32> to vector<128x16xf32>
    %c0_17 = arith.constant 0 : index
    %c0_18 = arith.constant 0 : index
    %12 = vector.load %arg22[%c0_17, %c0_18] : memref<16x128xf32, #tpu.memory_space<vmem>>, vector<16x128xf32>
    %cst = arith.constant dense<0.000000e+00> : vector<16x16xf32>
    %13 = tpu.matmul %12, %11, %cst {dimension_numbers = #tpu.dot_dimension_numbers<[1], [0], [0], [1], [0, 0, 1, 1], [], []>} : vector<16x128xf32>, vector<128x16xf32>, vector<16x16xf32> -> vector<16x16xf32>
    %cst_19 = arith.constant 1.000000e-07 : f32
    %14 = vector.broadcast %cst_19 : f32 to vector<16x16xf32>
    %15 = arith.addf %13, %14 : vector<16x16xf32>
    %16 = math.sqrt %15 : vector<16x16xf32>
    %c0_20 = arith.constant 0 : index
    %c0_21 = arith.constant 0 : index
    %c0_22 = arith.constant 0 : index
    %17 = vector.load %arg9[%c0_20, %c0_21, %c0_22] : memref<1x16x16xf32, #tpu.memory_space<vmem>>, vector<1x16x16xf32>
    %18 = vector.shape_cast %17 : vector<1x16x16xf32> to vector<16x16xf32>
    %19 = arith.subf %16, %18 : vector<16x16xf32>
    %cst_23 = arith.constant 1.000000e-10 : f32
    %20 = vector.broadcast %cst_23 : f32 to vector<16x16xf32>
    %21 = arith.addf %16, %20 : vector<16x16xf32>
    %22 = arith.divf %19, %21 : vector<16x16xf32>
    %cst_24 = arith.constant dense<0.000000e+00> : vector<16x128xf32>
    %23 = tpu.matmul %22, %0, %cst_24 {dimension_numbers = #tpu.dot_dimension_numbers<[1], [0], [0], [1], [0, 0, 1, 1], [], []>} : vector<16x16xf32>, vector<16x128xf32>, vector<16x128xf32> -> vector<16x128xf32>
    %c0_25 = arith.constant 0 : index
    %c0_26 = arith.constant 0 : index
    %24 = vector.load %arg23[%c0_25, %c0_26] : memref<16x128xf32, #tpu.memory_space<vmem>>, vector<16x128xf32>
    %25 = arith.mulf %23, %24 : vector<16x128xf32>
    %c0_27 = arith.constant 0 : index
    %c0_28 = arith.constant 0 : index
    %26 = vector.load %arg24[%c0_27, %c0_28] : memref<16x128xf32, #tpu.memory_space<vmem>>, vector<16x128xf32>
    %27 = arith.mulf %23, %26 : vector<16x128xf32>
    %cst_29 = arith.constant dense<0.000000e+00> : vector<16x128xf32>
    %28 = tpu.matmul %1, %25, %cst_29 {dimension_numbers = #tpu.dot_dimension_numbers<[1], [0], [0], [1], [0, 0, 1, 1], [], []>} : vector<16x16xf32>, vector<16x128xf32>, vector<16x128xf32> -> vector<16x128xf32>
    %cst_30 = arith.constant dense<0.000000e+00> : vector<16x128xf32>
    %29 = tpu.matmul %2, %27, %cst_30 {dimension_numbers = #tpu.dot_dimension_numbers<[1], [0], [0], [1], [0, 0, 1, 1], [], []>} : vector<16x16xf32>, vector<16x128xf32>, vector<16x128xf32> -> vector<16x128xf32>
    %30 = arith.addf %1, %2 : vector<16x16xf32>
    %31 = arith.addf %25, %27 : vector<16x128xf32>
    %cst_31 = arith.constant dense<0.000000e+00> : vector<16x128xf32>
    %32 = tpu.matmul %30, %31, %cst_31 {dimension_numbers = #tpu.dot_dimension_numbers<[1], [0], [0], [1], [0, 0, 1, 1], [], []>} : vector<16x16xf32>, vector<16x128xf32>, vector<16x128xf32> -> vector<16x128xf32>
    %33 = arith.subf %28, %29 : vector<16x128xf32>
    %34 = arith.subf %32, %28 : vector<16x128xf32>
    %35 = arith.subf %34, %29 : vector<16x128xf32>
    %cst_32 = arith.constant dense<0.000000e+00> : vector<16x128xf32>
    %36 = tpu.matmul %33, %5, %cst_32 {dimension_numbers = #tpu.dot_dimension_numbers<[1], [0], [0], [1], [0, 0, 1, 1], [], []>} : vector<16x128xf32>, vector<128x128xf32>, vector<16x128xf32> -> vector<16x128xf32>
    %cst_33 = arith.constant dense<0.000000e+00> : vector<16x128xf32>
    %37 = tpu.matmul %35, %6, %cst_33 {dimension_numbers = #tpu.dot_dimension_numbers<[1], [0], [0], [1], [0, 0, 1, 1], [], []>} : vector<16x128xf32>, vector<128x128xf32>, vector<16x128xf32> -> vector<16x128xf32>
    %38 = arith.addf %33, %35 : vector<16x128xf32>
    %39 = arith.addf %5, %6 : vector<128x128xf32>
    %cst_34 = arith.constant dense<0.000000e+00> : vector<16x128xf32>
    %40 = tpu.matmul %38, %39, %cst_34 {dimension_numbers = #tpu.dot_dimension_numbers<[1], [0], [0], [1], [0, 0, 1, 1], [], []>} : vector<16x128xf32>, vector<128x128xf32>, vector<16x128xf32> -> vector<16x128xf32>
    %41 = arith.subf %36, %37 : vector<16x128xf32>
    %42 = arith.subf %40, %36 : vector<16x128xf32>
    %43 = arith.subf %42, %37 : vector<16x128xf32>
    %c0_35 = arith.constant 0 : index
    %c0_36 = arith.constant 0 : index
    %44 = vector.load %arg6[%c0_35, %c0_36] : memref<16x128xf32, #tpu.memory_space<vmem>>, vector<16x128xf32>
    %45 = arith.mulf %44, %41 : vector<16x128xf32>
    %46 = arith.mulf %44, %43 : vector<16x128xf32>
    %cst_37 = arith.constant dense<0.000000e+00> : vector<16x128xf32>
    %47 = tpu.matmul %3, %45, %cst_37 {dimension_numbers = #tpu.dot_dimension_numbers<[1], [0], [0], [1], [0, 0, 1, 1], [], []>} : vector<16x16xf32>, vector<16x128xf32>, vector<16x128xf32> -> vector<16x128xf32>
    %cst_38 = arith.constant dense<0.000000e+00> : vector<16x128xf32>
    %48 = tpu.matmul %4, %46, %cst_38 {dimension_numbers = #tpu.dot_dimension_numbers<[1], [0], [0], [1], [0, 0, 1, 1], [], []>} : vector<16x16xf32>, vector<16x128xf32>, vector<16x128xf32> -> vector<16x128xf32>
    %49 = arith.addf %3, %4 : vector<16x16xf32>
    %50 = arith.addf %45, %46 : vector<16x128xf32>
    %cst_39 = arith.constant dense<0.000000e+00> : vector<16x128xf32>
    %51 = tpu.matmul %49, %50, %cst_39 {dimension_numbers = #tpu.dot_dimension_numbers<[1], [0], [0], [1], [0, 0, 1, 1], [], []>} : vector<16x16xf32>, vector<16x128xf32>, vector<16x128xf32> -> vector<16x128xf32>
    %52 = arith.subf %47, %48 : vector<16x128xf32>
    %53 = arith.subf %51, %47 : vector<16x128xf32>
    %54 = arith.subf %53, %48 : vector<16x128xf32>
    %c0_40 = arith.constant 0 : index
    %c0_41 = arith.constant 0 : index
    %c0_42 = arith.constant 0 : index
    %55 = vector.load %arg10[%c0_40, %c0_41, %c0_42] : memref<1x128x16xf32, #tpu.memory_space<vmem>>, vector<1x128x16xf32>
    %56 = vector.shape_cast %55 : vector<1x128x16xf32> to vector<128x16xf32>
    %c0_43 = arith.constant 0 : index
    %c0_44 = arith.constant 0 : index
    %c0_45 = arith.constant 0 : index
    %57 = vector.load %arg11[%c0_43, %c0_44, %c0_45] : memref<1x128x16xf32, #tpu.memory_space<vmem>>, vector<1x128x16xf32>
    %58 = vector.shape_cast %57 : vector<1x128x16xf32> to vector<128x16xf32>
    %cst_46 = arith.constant dense<0.000000e+00> : vector<16x16xf32>
    %59 = tpu.matmul %52, %56, %cst_46 {dimension_numbers = #tpu.dot_dimension_numbers<[1], [0], [0], [1], [0, 0, 1, 1], [], []>} : vector<16x128xf32>, vector<128x16xf32>, vector<16x16xf32> -> vector<16x16xf32>
    %cst_47 = arith.constant dense<0.000000e+00> : vector<16x16xf32>
    %60 = tpu.matmul %54, %58, %cst_47 {dimension_numbers = #tpu.dot_dimension_numbers<[1], [0], [0], [1], [0, 0, 1, 1], [], []>} : vector<16x128xf32>, vector<128x16xf32>, vector<16x16xf32> -> vector<16x16xf32>
    %61 = arith.addf %52, %54 : vector<16x128xf32>
    %62 = arith.addf %56, %58 : vector<128x16xf32>
    %cst_48 = arith.constant dense<0.000000e+00> : vector<16x16xf32>
    %63 = tpu.matmul %61, %62, %cst_48 {dimension_numbers = #tpu.dot_dimension_numbers<[1], [0], [0], [1], [0, 0, 1, 1], [], []>} : vector<16x128xf32>, vector<128x16xf32>, vector<16x16xf32> -> vector<16x16xf32>
    %64 = arith.subf %59, %60 : vector<16x16xf32>
    %65 = arith.subf %63, %59 : vector<16x16xf32>
    %66 = arith.subf %65, %60 : vector<16x16xf32>
    %c0_49 = arith.constant 0 : index
    %c0_50 = arith.constant 0 : index
    %67 = vector.load %arg25[%c0_49, %c0_50] : memref<16x16xf32, #tpu.memory_space<vmem>>, vector<16x16xf32>
    %68 = arith.addf %67, %64 : vector<16x16xf32>
    %c0_51 = arith.constant 0 : index
    %c0_52 = arith.constant 0 : index
    %69 = vector.load %arg25[%c0_51, %c0_52] : memref<16x16xf32, #tpu.memory_space<vmem>>, vector<16x16xf32>
    tpu.vector_store %arg25[%c0_51, %c0_52], %68 {strides = array<i32>} : memref<16x16xf32, #tpu.memory_space<vmem>>, vector<16x16xf32>,
    %c0_53 = arith.constant 0 : index
    %c0_54 = arith.constant 0 : index
    %70 = vector.load %arg26[%c0_53, %c0_54] : memref<16x16xf32, #tpu.memory_space<vmem>>, vector<16x16xf32>
    %71 = arith.addf %70, %66 : vector<16x16xf32>
    %c0_55 = arith.constant 0 : index
    %c0_56 = arith.constant 0 : index
    %72 = vector.load %arg26[%c0_55, %c0_56] : memref<16x16xf32, #tpu.memory_space<vmem>>, vector<16x16xf32>
    tpu.vector_store %arg26[%c0_55, %c0_56], %71 {strides = array<i32>} : memref<16x16xf32, #tpu.memory_space<vmem>>, vector<16x16xf32>,
    %c1_i32 = arith.constant 1 : i32
    %73 = arith.cmpi eq, %arg0, %c1_i32 : i32
    %74 = arith.extui %73 : i1 to i32
    %c0_i32_57 = arith.constant 0 : i32
    %75 = arith.cmpi ne, %74, %c0_i32_57 : i32
    scf.if %75 {
      %c0_58 = arith.constant 0 : index
      %c0_59 = arith.constant 0 : index
      %76 = vector.load %arg1[%c0_58, %c0_59] : memref<16x16xf32, #tpu.memory_space<vmem>>, vector<16x16xf32>
      %c0_60 = arith.constant 0 : index
      %c0_61 = arith.constant 0 : index
      %77 = vector.load %arg25[%c0_60, %c0_61] : memref<16x16xf32, #tpu.memory_space<vmem>>, vector<16x16xf32>
      %cst_62 = arith.constant 1.000000e-01 : f32
      %78 = vector.broadcast %cst_62 : f32 to vector<16x16xf32>
      %79 = arith.mulf %78, %77 : vector<16x16xf32>
      %80 = arith.subf %76, %79 : vector<16x16xf32>
      %c0_63 = arith.constant 0 : index
      %c0_64 = arith.constant 0 : index
      %81 = vector.load %arg20[%c0_63, %c0_64] : memref<16x16xf32, #tpu.memory_space<vmem>>, vector<16x16xf32>
      tpu.vector_store %arg20[%c0_63, %c0_64], %80 {strides = array<i32>} : memref<16x16xf32, #tpu.memory_space<vmem>>, vector<16x16xf32>,
      %c0_65 = arith.constant 0 : index
      %c0_66 = arith.constant 0 : index
      %82 = vector.load %arg2[%c0_65, %c0_66] : memref<16x16xf32, #tpu.memory_space<vmem>>, vector<16x16xf32>
      %c0_67 = arith.constant 0 : index
      %c0_68 = arith.constant 0 : index
      %83 = vector.load %arg26[%c0_67, %c0_68] : memref<16x16xf32, #tpu.memory_space<vmem>>, vector<16x16xf32>
      %cst_69 = arith.constant 1.000000e-01 : f32
      %84 = vector.broadcast %cst_69 : f32 to vector<16x16xf32>
      %85 = arith.mulf %84, %83 : vector<16x16xf32>
      %86 = arith.subf %82, %85 : vector<16x16xf32>
      %c0_70 = arith.constant 0 : index
      %c0_71 = arith.constant 0 : index
      %87 = vector.load %arg21[%c0_70, %c0_71] : memref<16x16xf32, #tpu.memory_space<vmem>>, vector<16x16xf32>
      tpu.vector_store %arg21[%c0_70, %c0_71], %86 {strides = array<i32>} : memref<16x16xf32, #tpu.memory_space<vmem>>, vector<16x16xf32>,
    } else {
    }
    return
  }
  func.func @transform_0(%arg0: i32) -> (i32, i32) {
    %c0_i32 = arith.constant 0 : i32
    %c0_i32_0 = arith.constant 0 : i32
    %c0_i32_1 = arith.constant 0 : i32
    return %c0_i32, %c0_i32_0 : i32, i32
  }
  func.func @transform_1(%arg0: i32) -> (i32, i32) {
    %c0_i32 = arith.constant 0 : i32
    %c0_i32_0 = arith.constant 0 : i32
    %c0_i32_1 = arith.constant 0 : i32
    return %c0_i32, %c0_i32_0 : i32, i32
  }
  func.func @transform_2(%arg0: i32) -> (i32, i32) {
    %c0_i32 = arith.constant 0 : i32
    %c0_i32_0 = arith.constant 0 : i32
    %c0_i32_1 = arith.constant 0 : i32
    return %c0_i32, %c0_i32_0 : i32, i32
  }
  func.func @transform_3(%arg0: i32) -> (i32, i32) {
    %c0_i32 = arith.constant 0 : i32
    %c0_i32_0 = arith.constant 0 : i32
    %c0_i32_1 = arith.constant 0 : i32
    return %c0_i32, %c0_i32_0 : i32, i32
  }
  func.func @transform_4(%arg0: i32) -> (i32, i32) {
    %c0_i32 = arith.constant 0 : i32
    %c0_i32_0 = arith.constant 0 : i32
    %c0_i32_1 = arith.constant 0 : i32
    return %c0_i32, %c0_i32_0 : i32, i32
  }
  func.func @transform_5(%arg0: i32) -> (i32, i32) {
    %c0_i32 = arith.constant 0 : i32
    %c0_i32_0 = arith.constant 0 : i32
    %c0_i32_1 = arith.constant 0 : i32
    return %c0_i32, %c0_i32_0 : i32, i32
  }
  func.func @transform_6(%arg0: i32) -> (i32, i32) {
    %c0_i32 = arith.constant 0 : i32
    %c0_i32_0 = arith.constant 0 : i32
    %c0_i32_1 = arith.constant 0 : i32
    return %c0_i32, %c0_i32_0 : i32, i32
  }
  func.func @transform_7(%arg0: i32) -> (i32, i32, i32) {
    %c0_i32 = arith.constant 0 : i32
    %c0_i32_0 = arith.constant 0 : i32
    %c0_i32_1 = arith.constant 0 : i32
    return %arg0, %c0_i32, %c0_i32_0 : i32, i32, i32
  }
  func.func @transform_8(%arg0: i32) -> (i32, i32, i32) {
    %c0_i32 = arith.constant 0 : i32
    %c0_i32_0 = arith.constant 0 : i32
    %c0_i32_1 = arith.constant 0 : i32
    return %arg0, %c0_i32, %c0_i32_0 : i32, i32, i32
  }
  func.func @transform_9(%arg0: i32) -> (i32, i32, i32) {
    %c0_i32 = arith.constant 0 : i32
    %c0_i32_0 = arith.constant 0 : i32
    %c0_i32_1 = arith.constant 0 : i32
    return %arg0, %c0_i32, %c0_i32_0 : i32, i32, i32
  }
  func.func @transform_10(%arg0: i32) -> (i32, i32, i32) {
    %c0_i32 = arith.constant 0 : i32
    %c0_i32_0 = arith.constant 0 : i32
    %c0_i32_1 = arith.constant 0 : i32
    return %arg0, %c0_i32, %c0_i32_0 : i32, i32, i32
  }
  func.func @transform_11(%arg0: i32) -> (i32, i32) {
    %c0_i32 = arith.constant 0 : i32
    %c0_i32_0 = arith.constant 0 : i32
    %c0_i32_1 = arith.constant 0 : i32
    return %c0_i32, %c0_i32_0 : i32, i32
  }
  func.func @transform_12(%arg0: i32) -> (i32, i32) {
    %c0_i32 = arith.constant 0 : i32
    %c0_i32_0 = arith.constant 0 : i32
    %c0_i32_1 = arith.constant 0 : i32
    return %c0_i32, %c0_i32_0 : i32, i32
  }
  func.func @transform_13(%arg0: i32) -> (i32, i32) {
    %c0_i32 = arith.constant 0 : i32
    %c0_i32_0 = arith.constant 0 : i32
    %c0_i32_1 = arith.constant 0 : i32
    return %c0_i32, %c0_i32_0 : i32, i32
  }
  func.func @transform_14(%arg0: i32) -> (i32, i32) {
    %c0_i32 = arith.constant 0 : i32
    %c0_i32_0 = arith.constant 0 : i32
    %c0_i32_1 = arith.constant 0 : i32
    return %c0_i32, %c0_i32_0 : i32, i32
  }
  func.func @transform_15(%arg0: i32) -> (i32, i32) {
    %c0_i32 = arith.constant 0 : i32
    %c0_i32_0 = arith.constant 0 : i32
    %c0_i32_1 = arith.constant 0 : i32
    return %c0_i32, %c0_i32_0 : i32, i32
  }
  func.func @transform_16(%arg0: i32) -> (i32, i32) {
    %c0_i32 = arith.constant 0 : i32
    %c0_i32_0 = arith.constant 0 : i32
    %c0_i32_1 = arith.constant 0 : i32
    return %c0_i32, %c0_i32_0 : i32, i32
  }
  func.func @transform_17(%arg0: i32) -> (i32, i32) {
    %c0_i32 = arith.constant 0 : i32
    %c0_i32_0 = arith.constant 0 : i32
    %c0_i32_1 = arith.constant 0 : i32
    return %c0_i32, %c0_i32_0 : i32, i32
  }
  func.func @transform_18(%arg0: i32) -> (i32, i32) {
    %c0_i32 = arith.constant 0 : i32
    %c0_i32_0 = arith.constant 0 : i32
    %c0_i32_1 = arith.constant 0 : i32
    return %c0_i32, %c0_i32_0 : i32, i32
  }
  func.func @transform_19(%arg0: i32) -> (i32, i32) {
    %c0_i32 = arith.constant 0 : i32
    %c0_i32_0 = arith.constant 0 : i32
    %c0_i32_1 = arith.constant 0 : i32
    return %c0_i32, %c0_i32_0 : i32, i32
  }
  func.func @transform_20(%arg0: i32) -> (i32, i32) {
    %c0_i32 = arith.constant 0 : i32
    %c0_i32_0 = arith.constant 0 : i32
    %c0_i32_1 = arith.constant 0 : i32
    return %c0_i32, %c0_i32_0 : i32, i32
  }
}

</mosaic_0001>

<llo_original>
// kernel: tpu_custom_call.1
$region0: #{tpu_custom_call.1}
  #allocation0 [shape = 'u32[]', space=smem, size = 0x4, offset = 0x4, fixed_abs, tag = 'smem constant byte address 0x4 - core index']
  #allocation1 [shape = 'u32[144,128]{1,0:T(1,128)}', space=vmem, size = 0x12000, scoped, tag = 'internal scratch']
  #allocation2 [shape = 'f32[16,128]{1,0:T(8,128)}', space=vmem, size = 0x2000, scoped, tag = 'scratch operand']
  #allocation3 [shape = 'f32[16,128]{1,0:T(8,128)}', space=vmem, size = 0x2000, scoped, tag = 'scratch operand']
  #allocation4 [shape = 'f32[16,128]{1,0:T(8,128)}', space=vmem, size = 0x2000, scoped, tag = 'scratch operand']
  #allocation5 [shape = 'f32[16,16]{1,0:T(8,128)}', space=vmem, size = 0x2000, scoped, tag = 'scratch operand']
  #allocation6 [shape = 'f32[16,16]{1,0:T(8,128)}', space=vmem, size = 0x2000, scoped, tag = 'scratch operand']
  %s0 = inlined_call_operand.vmem [shape: f32[16,16], index: 0, kind: input, shape index: {}]
  %s1 = inlined_call_operand.vmem [shape: f32[16,16], index: 1, kind: input, shape index: {}]
  %s2 = inlined_call_operand.vmem [shape: f32[16,128], index: 2, kind: input, shape index: {}]
  %s3 = inlined_call_operand.vmem [shape: f32[16,128], index: 3, kind: input, shape index: {}]
  %s4 = inlined_call_operand.vmem [shape: f32[16,128], index: 4, kind: input, shape index: {}]
  %s5 = inlined_call_operand.vmem [shape: f32[16,128], index: 5, kind: input, shape index: {}]
  %s6 = inlined_call_operand.vmem [shape: f32[16,128], index: 6, kind: input, shape index: {}]
  %s7 = inlined_call_operand.vmem [shape: f32[2,128,16], index: 7, kind: input, shape index: {}]
  %s8 = inlined_call_operand.vmem [shape: f32[2,16,16], index: 8, kind: input, shape index: {}]
  %s9 = inlined_call_operand.vmem [shape: f32[2,128,16], index: 9, kind: input, shape index: {}]
  %s10 = inlined_call_operand.vmem [shape: f32[2,128,16], index: 10, kind: input, shape index: {}]
  %s11 = inlined_call_operand.vmem [shape: f32[16,16], index: 11, kind: input, shape index: {}]
  %s12 = inlined_call_operand.vmem [shape: f32[16,16], index: 12, kind: input, shape index: {}]
  %s13 = inlined_call_operand.vmem [shape: f32[16,16], index: 13, kind: input, shape index: {}]
  %s14 = inlined_call_operand.vmem [shape: f32[16,16], index: 14, kind: input, shape index: {}]
  %s15 = inlined_call_operand.vmem [shape: f32[128,128], index: 15, kind: input, shape index: {}]
  %s16 = inlined_call_operand.vmem [shape: f32[128,128], index: 16, kind: input, shape index: {}]
  %s17 = inlined_call_operand.vmem [shape: f32[128,128], index: 17, kind: input, shape index: {}]
  %s18 = inlined_call_operand.vmem [shape: f32[128,128], index: 18, kind: input, shape index: {}]
  %s19 = inlined_call_operand.hbm [shape: f32[16,16], index: 19, kind: output, shape index: {0}]
  %s20 = inlined_call_operand.hbm [shape: f32[16,16], index: 20, kind: output, shape index: {1}]
  %21 = xla_tuple %s19, %s20
  %s22 = sld [smem:[#allocation0]]
  $region125: #{tpu_custom_call.1} parent=0
    _
  %s24 = ssub.s32 1, %s22
  %s25 = scalar_select 0, %s24, %s22
  $region1: #{tpu_custom_call.1} parent=0
    #allocation7 [shape = 'u8[8192]{0}', space=vmem, size = 0x2000, scoped, tag = 'output window, operand 0, single buffered']
    #allocation8 [shape = 's32[2]{0}', space=sflag, size = 0x8, scoped, tag = 'scoped memory for tpu_custom_call.1']
    #allocation9 [shape = 'u8[8192]{0}', space=vmem, size = 0x2000, scoped, tag = 'output window, operand 1, single buffered']
    #allocation10 [shape = 's32[1]{0}', space=sflag, size = 0x4, scoped, tag = 'scoped memory for tpu_custom_call.1']
    %26 = vsyncpa [#allocation8], 0
    %27 = vsyncpa [#allocation10], 0
    loop: start=0, step=1, limit=4
    $region2: #{tpu_custom_call.1} parent=1 // loop_pre_header
      _
    $region3: #{tpu_custom_call.1} parent=1 // loop_header
      %s29 = sphi 0, %s33
      %p30 = scmp.ge.s32.totalorder %s29, 4
      %s37 = sphi 0, %s37
      %s39 = sphi 0, %s37
      %s40 = sphi 0, %s39
      %s54 = sphi 0, %s40
      %s58 = sphi 0, %s58
      %s60 = sphi 0, %s58
      %s61 = sphi 0, %s60
      %s75 = sphi 0, %s61
      %s79 = sphi 0, %s79
      %s81 = sphi 0, %s79
      %s82 = sphi 0, %s81
      %s96 = sphi 0, %s82
      %s100 = sphi 0, %s100
      %s102 = sphi 0, %s100
      %s103 = sphi 0, %s102
      %s117 = sphi 0, %s103
      %s121 = sphi 0, %s121
      %s123 = sphi 0, %s121
      %s124 = sphi 0, %s123
      %s138 = sphi 0, %s124
      %s142 = sphi 0, %s142
      %s144 = sphi 0, %s142
      %s145 = sphi 0, %s144
      %s159 = sphi 0, %s145
      %s163 = sphi 0, %s163
      %s165 = sphi 0, %s163
      %s166 = sphi 0, %s165
      %s180 = sphi 0, %s166
      %s186 = sphi 0, %s188
      %s189 = sphi 0, %s186
      %s190 = sphi 0, %s189
      %s206 = sphi 0, %s190
      %s212 = sphi 0, %s214
      %s215 = sphi 0, %s212
      %s216 = sphi 0, %s215
      %s232 = sphi 0, %s216
      %s238 = sphi 0, %s240
      %s241 = sphi 0, %s238
      %s242 = sphi 0, %s241
      %s258 = sphi 0, %s242
      %s264 = sphi 0, %s266
      %s267 = sphi 0, %s264
      %s268 = sphi 0, %s267
      %s284 = sphi 0, %s268
      %s288 = sphi 0, %s288
      %s290 = sphi 0, %s288
      %s291 = sphi 0, %s290
      %s305 = sphi 0, %s291
      %s309 = sphi 0, %s309
      %s311 = sphi 0, %s309
      %s312 = sphi 0, %s311
      %s326 = sphi 0, %s312
      %s330 = sphi 0, %s330
      %s332 = sphi 0, %s330
      %s333 = sphi 0, %s332
      %s347 = sphi 0, %s333
      %s351 = sphi 0, %s351
      %s353 = sphi 0, %s351
      %s354 = sphi 0, %s353
      %s368 = sphi 0, %s354
      %s372 = sphi 0, %s372
      %s374 = sphi 0, %s372
      %s375 = sphi 0, %s374
      %s389 = sphi 0, %s375
      %s393 = sphi 0, %s393
      %s395 = sphi 0, %s393
      %s396 = sphi 0, %s395
      %s410 = sphi 0, %s396
      %s414 = sphi 0, %s414
      %s416 = sphi 0, %s414
      %s417 = sphi 0, %s416
      %s431 = sphi 0, %s417
      %s435 = sphi 0, %s435
      %s437 = sphi 0, %s435
      %s438 = sphi 0, %s437
      %s452 = sphi 0, %s438
      %s456 = sphi 0, %s456
      %s458 = sphi 0, %s456
      %s459 = sphi 0, %s458
      %s473 = sphi 0, %s459
      %s477 = sphi 0, %s477
      %s479 = sphi 0, %s477
      %s480 = sphi 0, %s479
      %s494 = sphi 0, %s480
    $region4: #{tpu_custom_call.1} parent=1 // loop_header_branch
      %32 = sbr.rel (%p30) target = $region8
    $region5: #{tpu_custom_call.1} parent=1 // loop_body
      %s34 = ssub.s32 %s29, 1
      %s35 = ssub.s32 %s29, 2
      %s36 = sadd.s32 %s29, 1
      %s38 = sadd.s32 %s37, 1
      %p41 = scmp.eq.s32.totalorder %s29, 1
      %p42 = scmp.ne.s32.totalorder %s37, %s39
      %p43 = scmp.eq.s32.totalorder %s29, 0
      %p44 = por %p42, %p43
      %p45 = scmp.ne.s32.totalorder %s37, %s39
      %p46 = scmp.eq.s32.totalorder %s34, 1
      %p47 = por %p45, %p46
      %p48 = scmp.ne.s32.totalorder %s39, %s40
      %p49 = scmp.eq.s32.totalorder %s34, 0
      %p50 = por %p48, %p49
      %p51 = scmp.ne.s32.totalorder %s39, %s40
      %p52 = scmp.eq.s32.totalorder %s35, 1
      %p53 = por %p51, %p52
      %p55 = scmp.ne.s32.totalorder %s40, %s54
      %p56 = scmp.eq.s32.totalorder %s35, 0
      %p57 = por %p55, %p56
      %s59 = sadd.s32 %s58, 1
      %p62 = scmp.eq.s32.totalorder %s29, 1
      %p63 = scmp.ne.s32.totalorder %s58, %s60
      %p64 = scmp.eq.s32.totalorder %s29, 0
      %p65 = por %p63, %p64
      %p66 = scmp.ne.s32.totalorder %s58, %s60
      %p67 = scmp.eq.s32.totalorder %s34, 1
      %p68 = por %p66, %p67
      %p69 = scmp.ne.s32.totalorder %s60, %s61
      %p70 = scmp.eq.s32.totalorder %s34, 0
      %p71 = por %p69, %p70
      %p72 = scmp.ne.s32.totalorder %s60, %s61
      %p73 = scmp.eq.s32.totalorder %s35, 1
      %p74 = por %p72, %p73
      %p76 = scmp.ne.s32.totalorder %s61, %s75
      %p77 = scmp.eq.s32.totalorder %s35, 0
      %p78 = por %p76, %p77
      %s80 = sadd.s32 %s79, 1
      %p83 = scmp.eq.s32.totalorder %s29, 1
      %p84 = scmp.ne.s32.totalorder %s79, %s81
      %p85 = scmp.eq.s32.totalorder %s29, 0
      %p86 = por %p84, %p85
      %p87 = scmp.ne.s32.totalorder %s79, %s81
      %p88 = scmp.eq.s32.totalorder %s34, 1
      %p89 = por %p87, %p88
      %p90 = scmp.ne.s32.totalorder %s81, %s82
      %p91 = scmp.eq.s32.totalorder %s34, 0
      %p92 = por %p90, %p91
      %p93 = scmp.ne.s32.totalorder %s81, %s82
      %p94 = scmp.eq.s32.totalorder %s35, 1
      %p95 = por %p93, %p94
      %p97 = scmp.ne.s32.totalorder %s82, %s96
      %p98 = scmp.eq.s32.totalorder %s35, 0
      %p99 = por %p97, %p98
      %s101 = sadd.s32 %s100, 1
      %p104 = scmp.eq.s32.totalorder %s29, 1
      %p105 = scmp.ne.s32.totalorder %s100, %s102
      %p106 = scmp.eq.s32.totalorder %s29, 0
      %p107 = por %p105, %p106
      %p108 = scmp.ne.s32.totalorder %s100, %s102
      %p109 = scmp.eq.s32.totalorder %s34, 1
      %p110 = por %p108, %p109
      %p111 = scmp.ne.s32.totalorder %s102, %s103
      %p112 = scmp.eq.s32.totalorder %s34, 0
      %p113 = por %p111, %p112
      %p114 = scmp.ne.s32.totalorder %s102, %s103
      %p115 = scmp.eq.s32.totalorder %s35, 1
      %p116 = por %p114, %p115
      %p118 = scmp.ne.s32.totalorder %s103, %s117
      %p119 = scmp.eq.s32.totalorder %s35, 0
      %p120 = por %p118, %p119
      %s122 = sadd.s32 %s121, 1
      %p125 = scmp.eq.s32.totalorder %s29, 1
      %p126 = scmp.ne.s32.totalorder %s121, %s123
      %p127 = scmp.eq.s32.totalorder %s29, 0
      %p128 = por %p126, %p127
      %p129 = scmp.ne.s32.totalorder %s121, %s123
      %p130 = scmp.eq.s32.totalorder %s34, 1
      %p131 = por %p129, %p130
      %p132 = scmp.ne.s32.totalorder %s123, %s124
      %p133 = scmp.eq.s32.totalorder %s34, 0
      %p134 = por %p132, %p133
      %p135 = scmp.ne.s32.totalorder %s123, %s124
      %p136 = scmp.eq.s32.totalorder %s35, 1
      %p137 = por %p135, %p136
      %p139 = scmp.ne.s32.totalorder %s124, %s138
      %p140 = scmp.eq.s32.totalorder %s35, 0
      %p141 = por %p139, %p140
      %s143 = sadd.s32 %s142, 1
      %p146 = scmp.eq.s32.totalorder %s29, 1
      %p147 = scmp.ne.s32.totalorder %s142, %s144
      %p148 = scmp.eq.s32.totalorder %s29, 0
      %p149 = por %p147, %p148
      %p150 = scmp.ne.s32.totalorder %s142, %s144
      %p151 = scmp.eq.s32.totalorder %s34, 1
      %p152 = por %p150, %p151
      %p153 = scmp.ne.s32.totalorder %s144, %s145
      %p154 = scmp.eq.s32.totalorder %s34, 0
      %p155 = por %p153, %p154
      %p156 = scmp.ne.s32.totalorder %s144, %s145
      %p157 = scmp.eq.s32.totalorder %s35, 1
      %p158 = por %p156, %p157
      %p160 = scmp.ne.s32.totalorder %s145, %s159
      %p161 = scmp.eq.s32.totalorder %s35, 0
      %p162 = por %p160, %p161
      %s164 = sadd.s32 %s163, 1
      %p167 = scmp.eq.s32.totalorder %s29, 1
      %p168 = scmp.ne.s32.totalorder %s163, %s165
      %p169 = scmp.eq.s32.totalorder %s29, 0
      %p170 = por %p168, %p169
      %p171 = scmp.ne.s32.totalorder %s163, %s165
      %p172 = scmp.eq.s32.totalorder %s34, 1
      %p173 = por %p171, %p172
      %p174 = scmp.ne.s32.totalorder %s165, %s166
      %p175 = scmp.eq.s32.totalorder %s34, 0
      %p176 = por %p174, %p175
      %p177 = scmp.ne.s32.totalorder %s165, %s166
      %p178 = scmp.eq.s32.totalorder %s35, 1
      %p179 = por %p177, %p178
      %p181 = scmp.ne.s32.totalorder %s166, %s180
      %p182 = scmp.eq.s32.totalorder %s35, 0
      %p183 = por %p181, %p182
      %s184 = ssub.s32 %s29, %s36
      %p185 = scmp.eq.s32.totalorder %s184, 0
      %s187 = sadd.s32 %s186, 1
      %s188 = scalar_select %p185, %s186, %s187
      %p191 = pneg %p185
      %p192 = scmp.eq.s32.totalorder %s29, 1
      %p193 = por %p191, %p192
      %p194 = scmp.ne.s32.totalorder %s186, %s189
      %p195 = scmp.eq.s32.totalorder %s29, 0
      %p196 = por %p194, %p195
      %p197 = scmp.ne.s32.totalorder %s186, %s189
      %p198 = scmp.eq.s32.totalorder %s34, 1
      %p199 = por %p197, %p198
      %p200 = scmp.ne.s32.totalorder %s189, %s190
      %p201 = scmp.eq.s32.totalorder %s34, 0
      %p202 = por %p200, %p201
      %p203 = scmp.ne.s32.totalorder %s189, %s190
      %p204 = scmp.eq.s32.totalorder %s35, 1
      %p205 = por %p203, %p204
      %p207 = scmp.ne.s32.totalorder %s190, %s206
      %p208 = scmp.eq.s32.totalorder %s35, 0
      %p209 = por %p207, %p208
      %s210 = ssub.s32 %s29, %s36
      %p211 = scmp.eq.s32.totalorder %s210, 0
      %s213 = sadd.s32 %s212, 1
      %s214 = scalar_select %p211, %s212, %s213
      %p217 = pneg %p211
      %p218 = scmp.eq.s32.totalorder %s29, 1
      %p219 = por %p217, %p218
      %p220 = scmp.ne.s32.totalorder %s212, %s215
      %p221 = scmp.eq.s32.totalorder %s29, 0
      %p222 = por %p220, %p221
      %p223 = scmp.ne.s32.totalorder %s212, %s215
      %p224 = scmp.eq.s32.totalorder %s34, 1
      %p225 = por %p223, %p224
      %p226 = scmp.ne.s32.totalorder %s215, %s216
      %p227 = scmp.eq.s32.totalorder %s34, 0
      %p228 = por %p226, %p227
      %p229 = scmp.ne.s32.totalorder %s215, %s216
      %p230 = scmp.eq.s32.totalorder %s35, 1
      %p231 = por %p229, %p230
      %p233 = scmp.ne.s32.totalorder %s216, %s232
      %p234 = scmp.eq.s32.totalorder %s35, 0
      %p235 = por %p233, %p234
      %s236 = ssub.s32 %s29, %s36
      %p237 = scmp.eq.s32.totalorder %s236, 0
      %s239 = sadd.s32 %s238, 1
      %s240 = scalar_select %p237, %s238, %s239
      %p243 = pneg %p237
      %p244 = scmp.eq.s32.totalorder %s29, 1
      %p245 = por %p243, %p244
      %p246 = scmp.ne.s32.totalorder %s238, %s241
      %p247 = scmp.eq.s32.totalorder %s29, 0
      %p248 = por %p246, %p247
      %p249 = scmp.ne.s32.totalorder %s238, %s241
      %p250 = scmp.eq.s32.totalorder %s34, 1
      %p251 = por %p249, %p250
      %p252 = scmp.ne.s32.totalorder %s241, %s242
      %p253 = scmp.eq.s32.totalorder %s34, 0
      %p254 = por %p252, %p253
      %p255 = scmp.ne.s32.totalorder %s241, %s242
      %p256 = scmp.eq.s32.totalorder %s35, 1
      %p257 = por %p255, %p256
      %p259 = scmp.ne.s32.totalorder %s242, %s258
      %p260 = scmp.eq.s32.totalorder %s35, 0
      %p261 = por %p259, %p260
      %s262 = ssub.s32 %s29, %s36
      %p263 = scmp.eq.s32.totalorder %s262, 0
      %s265 = sadd.s32 %s264, 1
      %s266 = scalar_select %p263, %s264, %s265
      %p269 = pneg %p263
      %p270 = scmp.eq.s32.totalorder %s29, 1
      %p271 = por %p269, %p270
      %p272 = scmp.ne.s32.totalorder %s264, %s267
      %p273 = scmp.eq.s32.totalorder %s29, 0
      %p274 = por %p272, %p273
      %p275 = scmp.ne.s32.totalorder %s264, %s267
      %p276 = scmp.eq.s32.totalorder %s34, 1
      %p277 = por %p275, %p276
      %p278 = scmp.ne.s32.totalorder %s267, %s268
      %p279 = scmp.eq.s32.totalorder %s34, 0
      %p280 = por %p278, %p279
      %p281 = scmp.ne.s32.totalorder %s267, %s268
      %p282 = scmp.eq.s32.totalorder %s35, 1
      %p283 = por %p281, %p282
      %p285 = scmp.ne.s32.totalorder %s268, %s284
      %p286 = scmp.eq.s32.totalorder %s35, 0
      %p287 = por %p285, %p286
      %s289 = sadd.s32 %s288, 1
      %p292 = scmp.eq.s32.totalorder %s29, 1
      %p293 = scmp.ne.s32.totalorder %s288, %s290
      %p294 = scmp.eq.s32.totalorder %s29, 0
      %p295 = por %p293, %p294
      %p296 = scmp.ne.s32.totalorder %s288, %s290
      %p297 = scmp.eq.s32.totalorder %s34, 1
      %p298 = por %p296, %p297
      %p299 = scmp.ne.s32.totalorder %s290, %s291
      %p300 = scmp.eq.s32.totalorder %s34, 0
      %p301 = por %p299, %p300
      %p302 = scmp.ne.s32.totalorder %s290, %s291
      %p303 = scmp.eq.s32.totalorder %s35, 1
      %p304 = por %p302, %p303
      %p306 = scmp.ne.s32.totalorder %s291, %s305
      %p307 = scmp.eq.s32.totalorder %s35, 0
      %p308 = por %p306, %p307
      %s310 = sadd.s32 %s309, 1
      %p313 = scmp.eq.s32.totalorder %s29, 1
      %p314 = scmp.ne.s32.totalorder %s309, %s311
      %p315 = scmp.eq.s32.totalorder %s29, 0
      %p316 = por %p314, %p315
      %p317 = scmp.ne.s32.totalorder %s309, %s311
      %p318 = scmp.eq.s32.totalorder %s34, 1
      %p319 = por %p317, %p318
      %p320 = scmp.ne.s32.totalorder %s311, %s312
      %p321 = scmp.eq.s32.totalorder %s34, 0
      %p322 = por %p320, %p321
      %p323 = scmp.ne.s32.totalorder %s311, %s312
      %p324 = scmp.eq.s32.totalorder %s35, 1
      %p325 = por %p323, %p324
      %p327 = scmp.ne.s32.totalorder %s312, %s326
      %p328 = scmp.eq.s32.totalorder %s35, 0
      %p329 = por %p327, %p328
      %s331 = sadd.s32 %s330, 1
      %p334 = scmp.eq.s32.totalorder %s29, 1
      %p335 = scmp.ne.s32.totalorder %s330, %s332
      %p336 = scmp.eq.s32.totalorder %s29, 0
      %p337 = por %p335, %p336
      %p338 = scmp.ne.s32.totalorder %s330, %s332
      %p339 = scmp.eq.s32.totalorder %s34, 1
      %p340 = por %p338, %p339
      %p341 = scmp.ne.s32.totalorder %s332, %s333
      %p342 = scmp.eq.s32.totalorder %s34, 0
      %p343 = por %p341, %p342
      %p344 = scmp.ne.s32.totalorder %s332, %s333
      %p345 = scmp.eq.s32.totalorder %s35, 1
      %p346 = por %p344, %p345
      %p348 = scmp.ne.s32.totalorder %s333, %s347
      %p349 = scmp.eq.s32.totalorder %s35, 0
      %p350 = por %p348, %p349
      %s352 = sadd.s32 %s351, 1
      %p355 = scmp.eq.s32.totalorder %s29, 1
      %p356 = scmp.ne.s32.totalorder %s351, %s353
      %p357 = scmp.eq.s32.totalorder %s29, 0
      %p358 = por %p356, %p357
      %p359 = scmp.ne.s32.totalorder %s351, %s353
      %p360 = scmp.eq.s32.totalorder %s34, 1
      %p361 = por %p359, %p360
      %p362 = scmp.ne.s32.totalorder %s353, %s354
      %p363 = scmp.eq.s32.totalorder %s34, 0
      %p364 = por %p362, %p363
      %p365 = scmp.ne.s32.totalorder %s353, %s354
      %p366 = scmp.eq.s32.totalorder %s35, 1
      %p367 = por %p365, %p366
      %p369 = scmp.ne.s32.totalorder %s354, %s368
      %p370 = scmp.eq.s32.totalorder %s35, 0
      %p371 = por %p369, %p370
      %s373 = sadd.s32 %s372, 1
      %p376 = scmp.eq.s32.totalorder %s29, 1
      %p377 = scmp.ne.s32.totalorder %s372, %s374
      %p378 = scmp.eq.s32.totalorder %s29, 0
      %p379 = por %p377, %p378
      %p380 = scmp.ne.s32.totalorder %s372, %s374
      %p381 = scmp.eq.s32.totalorder %s34, 1
      %p382 = por %p380, %p381
      %p383 = scmp.ne.s32.totalorder %s374, %s375
      %p384 = scmp.eq.s32.totalorder %s34, 0
      %p385 = por %p383, %p384
      %p386 = scmp.ne.s32.totalorder %s374, %s375
      %p387 = scmp.eq.s32.totalorder %s35, 1
      %p388 = por %p386, %p387
      %p390 = scmp.ne.s32.totalorder %s375, %s389
      %p391 = scmp.eq.s32.totalorder %s35, 0
      %p392 = por %p390, %p391
      %s394 = sadd.s32 %s393, 1
      %p397 = scmp.eq.s32.totalorder %s29, 1
      %p398 = scmp.ne.s32.totalorder %s393, %s395
      %p399 = scmp.eq.s32.totalorder %s29, 0
      %p400 = por %p398, %p399
      %p401 = scmp.ne.s32.totalorder %s393, %s395
      %p402 = scmp.eq.s32.totalorder %s34, 1
      %p403 = por %p401, %p402
      %p404 = scmp.ne.s32.totalorder %s395, %s396
      %p405 = scmp.eq.s32.totalorder %s34, 0
      %p406 = por %p404, %p405
      %p407 = scmp.ne.s32.totalorder %s395, %s396
      %p408 = scmp.eq.s32.totalorder %s35, 1
      %p409 = por %p407, %p408
      %p411 = scmp.ne.s32.totalorder %s396, %s410
      %p412 = scmp.eq.s32.totalorder %s35, 0
      %p413 = por %p411, %p412
      %s415 = sadd.s32 %s414, 1
      %p418 = scmp.eq.s32.totalorder %s29, 1
      %p419 = scmp.ne.s32.totalorder %s414, %s416
      %p420 = scmp.eq.s32.totalorder %s29, 0
      %p421 = por %p419, %p420
      %p422 = scmp.ne.s32.totalorder %s414, %s416
      %p423 = scmp.eq.s32.totalorder %s34, 1
      %p424 = por %p422, %p423
      %p425 = scmp.ne.s32.totalorder %s416, %s417
      %p426 = scmp.eq.s32.totalorder %s34, 0
      %p427 = por %p425, %p426
      %p428 = scmp.ne.s32.totalorder %s416, %s417
      %p429 = scmp.eq.s32.totalorder %s35, 1
      %p430 = por %p428, %p429
      %p432 = scmp.ne.s32.totalorder %s417, %s431
      %p433 = scmp.eq.s32.totalorder %s35, 0
      %p434 = por %p432, %p433
      %s436 = sadd.s32 %s435, 1
      %p439 = scmp.eq.s32.totalorder %s29, 1
      %p440 = scmp.ne.s32.totalorder %s435, %s437
      %p441 = scmp.eq.s32.totalorder %s29, 0
      %p442 = por %p440, %p441
      %p443 = scmp.ne.s32.totalorder %s435, %s437
      %p444 = scmp.eq.s32.totalorder %s34, 1
      %p445 = por %p443, %p444
      %p446 = scmp.ne.s32.totalorder %s437, %s438
      %p447 = scmp.eq.s32.totalorder %s34, 0
      %p448 = por %p446, %p447
      %p449 = scmp.ne.s32.totalorder %s437, %s438
      %p450 = scmp.eq.s32.totalorder %s35, 1
      %p451 = por %p449, %p450
      %p453 = scmp.ne.s32.totalorder %s438, %s452
      %p454 = scmp.eq.s32.totalorder %s35, 0
      %p455 = por %p453, %p454
      %s457 = sadd.s32 %s456, 1
      %p460 = scmp.eq.s32.totalorder %s29, 1
      %p461 = scmp.ne.s32.totalorder %s456, %s458
      %p462 = scmp.eq.s32.totalorder %s29, 0
      %p463 = por %p461, %p462
      %p464 = scmp.ne.s32.totalorder %s456, %s458
      %p465 = scmp.eq.s32.totalorder %s34, 1
      %p466 = por %p464, %p465
      %p467 = scmp.ne.s32.totalorder %s458, %s459
      %p468 = scmp.eq.s32.totalorder %s34, 0
      %p469 = por %p467, %p468
      %p470 = scmp.ne.s32.totalorder %s458, %s459
      %p471 = scmp.eq.s32.totalorder %s35, 1
      %p472 = por %p470, %p471
      %p474 = scmp.ne.s32.totalorder %s459, %s473
      %p475 = scmp.eq.s32.totalorder %s35, 0
      %p476 = por %p474, %p475
      %s478 = sadd.s32 %s477, 1
      %p481 = scmp.eq.s32.totalorder %s29, 1
      %p482 = scmp.ne.s32.totalorder %s477, %s479
      %p483 = scmp.eq.s32.totalorder %s29, 0
      %p484 = por %p482, %p483
      %p485 = scmp.ne.s32.totalorder %s477, %s479
      %p486 = scmp.eq.s32.totalorder %s34, 1
      %p487 = por %p485, %p486
      %p488 = scmp.ne.s32.totalorder %s479, %s480
      %p489 = scmp.eq.s32.totalorder %s34, 0
      %p490 = por %p488, %p489
      %p491 = scmp.ne.s32.totalorder %s479, %s480
      %p492 = scmp.eq.s32.totalorder %s35, 1
      %p493 = por %p491, %p492
      %p495 = scmp.ne.s32.totalorder %s480, %s494
      %p496 = scmp.eq.s32.totalorder %s35, 0
      %p497 = por %p495, %p496
      %p498 = scmp.le.s32.totalorder 1, %s29
      %p499 = scmp.lt.s32.totalorder %s29, 3
      %p500 = pnand %p498, %p499
      %p501 = pneg %p500
      // Predicated region
      $region9: #{tpu_custom_call.1} parent=5 // pred_check
        _
      $region10: #{tpu_custom_call.1} parent=5 // pred_check_branch
        %503 = sbr.rel (%p500) target = $region12
      $region11: #{tpu_custom_call.1} parent=5 // pred_region
        %s504 = ssub.s32 %s29, 1
        // Predicated region
        $region13: #{tpu_custom_call.1} parent=11 // pred_check
          %p505 = pneg %p50
        $region14: #{tpu_custom_call.1} parent=11 // pred_check_branch
          %507 = sbr.rel (%p505) target = $region16
        $region15: #{tpu_custom_call.1} parent=11 // pred_region
          _
        $region16: #{tpu_custom_call.1} parent=11 // pred_fallthru
          _
        // Predicated region
        $region17: #{tpu_custom_call.1} parent=11 // pred_check
          %p508 = pneg %p71
        $region18: #{tpu_custom_call.1} parent=11 // pred_check_branch
          %510 = sbr.rel (%p508) target = $region20
        $region19: #{tpu_custom_call.1} parent=11 // pred_region
          _
        $region20: #{tpu_custom_call.1} parent=11 // pred_fallthru
          _
        // Predicated region
        $region21: #{tpu_custom_call.1} parent=11 // pred_check
          %p511 = pneg %p92
        $region22: #{tpu_custom_call.1} parent=11 // pred_check_branch
          %513 = sbr.rel (%p511) target = $region24
        $region23: #{tpu_custom_call.1} parent=11 // pred_region
          _
        $region24: #{tpu_custom_call.1} parent=11 // pred_fallthru
          _
        // Predicated region
        $region25: #{tpu_custom_call.1} parent=11 // pred_check
          %p514 = pneg %p113
        $region26: #{tpu_custom_call.1} parent=11 // pred_check_branch
          %516 = sbr.rel (%p514) target = $region28
        $region27: #{tpu_custom_call.1} parent=11 // pred_region
          _
        $region28: #{tpu_custom_call.1} parent=11 // pred_fallthru
          _
        // Predicated region
        $region29: #{tpu_custom_call.1} parent=11 // pred_check
          %p517 = pneg %p134
        $region30: #{tpu_custom_call.1} parent=11 // pred_check_branch
          %519 = sbr.rel (%p517) target = $region32
        $region31: #{tpu_custom_call.1} parent=11 // pred_region
          _
        $region32: #{tpu_custom_call.1} parent=11 // pred_fallthru
          _
        // Predicated region
        $region33: #{tpu_custom_call.1} parent=11 // pred_check
          %p520 = pneg %p155
        $region34: #{tpu_custom_call.1} parent=11 // pred_check_branch
          %522 = sbr.rel (%p520) target = $region36
        $region35: #{tpu_custom_call.1} parent=11 // pred_region
          _
        $region36: #{tpu_custom_call.1} parent=11 // pred_fallthru
          _
        // Predicated region
        $region37: #{tpu_custom_call.1} parent=11 // pred_check
          %p523 = pneg %p176
        $region38: #{tpu_custom_call.1} parent=11 // pred_check_branch
          %525 = sbr.rel (%p523) target = $region40
        $region39: #{tpu_custom_call.1} parent=11 // pred_region
          _
        $region40: #{tpu_custom_call.1} parent=11 // pred_fallthru
          _
        // Predicated region
        $region41: #{tpu_custom_call.1} parent=11 // pred_check
          %p526 = pneg %p301
        $region42: #{tpu_custom_call.1} parent=11 // pred_check_branch
          %528 = sbr.rel (%p526) target = $region44
        $region43: #{tpu_custom_call.1} parent=11 // pred_region
          _
        $region44: #{tpu_custom_call.1} parent=11 // pred_fallthru
          _
        // Predicated region
        $region45: #{tpu_custom_call.1} parent=11 // pred_check
          %p529 = pneg %p322
        $region46: #{tpu_custom_call.1} parent=11 // pred_check_branch
          %531 = sbr.rel (%p529) target = $region48
        $region47: #{tpu_custom_call.1} parent=11 // pred_region
          _
        $region48: #{tpu_custom_call.1} parent=11 // pred_fallthru
          _
        // Predicated region
        $region49: #{tpu_custom_call.1} parent=11 // pred_check
          %p532 = pneg %p343
        $region50: #{tpu_custom_call.1} parent=11 // pred_check_branch
          %534 = sbr.rel (%p532) target = $region52
        $region51: #{tpu_custom_call.1} parent=11 // pred_region
          _
        $region52: #{tpu_custom_call.1} parent=11 // pred_fallthru
          _
        // Predicated region
        $region53: #{tpu_custom_call.1} parent=11 // pred_check
          %p535 = pneg %p364
        $region54: #{tpu_custom_call.1} parent=11 // pred_check_branch
          %537 = sbr.rel (%p535) target = $region56
        $region55: #{tpu_custom_call.1} parent=11 // pred_region
          _
        $region56: #{tpu_custom_call.1} parent=11 // pred_fallthru
          _
        // Predicated region
        $region57: #{tpu_custom_call.1} parent=11 // pred_check
          %p538 = pneg %p385
        $region58: #{tpu_custom_call.1} parent=11 // pred_check_branch
          %540 = sbr.rel (%p538) target = $region60
        $region59: #{tpu_custom_call.1} parent=11 // pred_region
          _
        $region60: #{tpu_custom_call.1} parent=11 // pred_fallthru
          _
        // Predicated region
        $region61: #{tpu_custom_call.1} parent=11 // pred_check
          %p541 = pneg %p406
        $region62: #{tpu_custom_call.1} parent=11 // pred_check_branch
          %543 = sbr.rel (%p541) target = $region64
        $region63: #{tpu_custom_call.1} parent=11 // pred_region
          _
        $region64: #{tpu_custom_call.1} parent=11 // pred_fallthru
          _
        // Predicated region
        $region65: #{tpu_custom_call.1} parent=11 // pred_check
          %p544 = pneg %p427
        $region66: #{tpu_custom_call.1} parent=11 // pred_check_branch
          %546 = sbr.rel (%p544) target = $region68
        $region67: #{tpu_custom_call.1} parent=11 // pred_region
          _
        $region68: #{tpu_custom_call.1} parent=11 // pred_fallthru
          _
        // Predicated region
        $region69: #{tpu_custom_call.1} parent=11 // pred_check
          %p547 = pneg %p448
        $region70: #{tpu_custom_call.1} parent=11 // pred_check_branch
          %549 = sbr.rel (%p547) target = $region72
        $region71: #{tpu_custom_call.1} parent=11 // pred_region
          _
        $region72: #{tpu_custom_call.1} parent=11 // pred_fallthru
          _
      $region12: #{tpu_custom_call.1} parent=5 // pred_fallthru
        _
      %p550 = scmp.lt.s32.totalorder %s29, 2
      // Predicated region
      $region73: #{tpu_custom_call.1} parent=5 // pred_check
        %p551 = pneg %p550
      $region74: #{tpu_custom_call.1} parent=5 // pred_check_branch
        %553 = sbr.rel (%p551) target = $region76
      $region75: #{tpu_custom_call.1} parent=5 // pred_region
        // Predicated region
        $region77: #{tpu_custom_call.1} parent=75 // pred_check
          %p554 = pneg %p196
        $region78: #{tpu_custom_call.1} parent=75 // pred_check_branch
          %556 = sbr.rel (%p554) target = $region80
        $region79: #{tpu_custom_call.1} parent=75 // pred_region
          %p557 = scmp.lt.s32.totalorder %s29, 1
          %s558 = scalar_select %p557, %s29, 1
          %s559 = smul.addr %s558, 16
          %s560 = smul.addr %s559, 8
          %s561 = scalar_lea.vmem %s7, %s560
        $region80: #{tpu_custom_call.1} parent=75 // pred_fallthru
          _
        // Predicated region
        $region81: #{tpu_custom_call.1} parent=75 // pred_check
          %p562 = pneg %p222
        $region82: #{tpu_custom_call.1} parent=75 // pred_check_branch
          %564 = sbr.rel (%p562) target = $region84
        $region83: #{tpu_custom_call.1} parent=75 // pred_region
          %p565 = scmp.lt.s32.totalorder %s29, 1
          %s566 = scalar_select %p565, %s29, 1
          %s567 = smul.addr %s566, 2
          %s568 = smul.addr %s567, 8
          %s569 = scalar_lea.vmem %s8, %s568
        $region84: #{tpu_custom_call.1} parent=75 // pred_fallthru
          _
        // Predicated region
        $region85: #{tpu_custom_call.1} parent=75 // pred_check
          %p570 = pneg %p248
        $region86: #{tpu_custom_call.1} parent=75 // pred_check_branch
          %572 = sbr.rel (%p570) target = $region88
        $region87: #{tpu_custom_call.1} parent=75 // pred_region
          %p573 = scmp.lt.s32.totalorder %s29, 1
          %s574 = scalar_select %p573, %s29, 1
          %s575 = smul.addr %s574, 16
          %s576 = smul.addr %s575, 8
          %s577 = scalar_lea.vmem %s9, %s576
        $region88: #{tpu_custom_call.1} parent=75 // pred_fallthru
          _
        // Predicated region
        $region89: #{tpu_custom_call.1} parent=75 // pred_check
          %p578 = pneg %p274
        $region90: #{tpu_custom_call.1} parent=75 // pred_check_branch
          %580 = sbr.rel (%p578) target = $region92
        $region91: #{tpu_custom_call.1} parent=75 // pred_region
          %p581 = scmp.lt.s32.totalorder %s29, 1
          %s582 = scalar_select %p581, %s29, 1
          %s583 = smul.addr %s582, 16
          %s584 = smul.addr %s583, 8
          %s585 = scalar_lea.vmem %s10, %s584
        $region92: #{tpu_custom_call.1} parent=75 // pred_fallthru
          _
      $region76: #{tpu_custom_call.1} parent=5 // pred_fallthru
        _
      %p586 = scmp.le.s32.totalorder 1, %s29
      %p587 = scmp.lt.s32.totalorder %s29, 3
      %p588 = pnand %p586, %p587
      %p589 = pneg %p588
      // Predicated region
      $region93: #{tpu_custom_call.1} parent=5 // pred_check
        _
      $region94: #{tpu_custom_call.1} parent=5 // pred_check_branch
        %591 = sbr.rel (%p588) target = $region96
      $region95: #{tpu_custom_call.1} parent=5 // pred_region
        %s592 = ssub.s32 %s29, 1
        %p593 = pneg %p50
        %p594 = pneg %p47
        %p595 = pneg %p71
        %p596 = pneg %p68
        %p597 = pneg %p92
        %p598 = pneg %p89
        %p599 = pneg %p113
        %p600 = pneg %p110
        %p601 = pneg %p134
        %p602 = pneg %p131
        %p603 = pneg %p155
        %p604 = pneg %p152
        %p605 = pneg %p176
        %p606 = pneg %p173
        %p607 = scmp.lt.s32.totalorder %s34, 1
        %s608 = scalar_select %p607, %s34, 1
        %s609 = smul.addr %s608, 16
        %s610 = smul.addr %s609, 8
        %s611 = scalar_lea.vmem %s7, %s610
        %p612 = pneg %p202
        %p613 = pneg %p199
        %p614 = scmp.lt.s32.totalorder %s34, 1
        %s615 = scalar_select %p614, %s34, 1
        %s616 = smul.addr %s615, 2
        %s617 = smul.addr %s616, 8
        %s618 = scalar_lea.vmem %s8, %s617
        %p619 = pneg %p228
        %p620 = pneg %p225
        %p621 = scmp.lt.s32.totalorder %s34, 1
        %s622 = scalar_select %p621, %s34, 1
        %s623 = smul.addr %s622, 16
        %s624 = smul.addr %s623, 8
        %s625 = scalar_lea.vmem %s9, %s624
        %p626 = pneg %p254
        %p627 = pneg %p251
        %p628 = scmp.lt.s32.totalorder %s34, 1
        %s629 = scalar_select %p628, %s34, 1
        %s630 = smul.addr %s629, 16
        %s631 = smul.addr %s630, 8
        %s632 = scalar_lea.vmem %s10, %s631
        %p633 = pneg %p280
        %p634 = pneg %p277
        %p635 = pneg %p301
        %p636 = pneg %p298
        %p637 = pneg %p322
        %p638 = pneg %p319
        %p639 = pneg %p343
        %p640 = pneg %p340
        %p641 = pneg %p364
        %p642 = pneg %p361
        %p643 = pneg %p385
        %p644 = pneg %p382
        %p645 = pneg %p406
        %p646 = pneg %p403
        %p647 = pneg %p427
        %p648 = pneg %p424
        %p649 = pneg %p448
        %p650 = pneg %p445
        %p651 = pneg %p469
        %p652 = pneg %p466
        %p653 = pneg %p490
        %p654 = pneg %p487
        %p655 = scmp.lt.s32.totalorder %s34, 1
        %s656 = scalar_select %p655, %s34, 1
        %s657 = smul.addr %s656, 16
        %s658 = smul.addr %s657, 8
        %s659 = scalar_lea.vmem %s7, %s658
        %p660 = scmp.lt.s32.totalorder %s34, 1
        %s661 = scalar_select %p660, %s34, 1
        %s662 = smul.addr %s661, 2
        %s663 = smul.addr %s662, 8
        %s664 = scalar_lea.vmem %s8, %s663
        %p665 = scmp.lt.s32.totalorder %s34, 1
        %s666 = scalar_select %p665, %s34, 1
        %s667 = smul.addr %s666, 16
        %s668 = smul.addr %s667, 8
        %s669 = scalar_lea.vmem %s9, %s668
        %p670 = scmp.lt.s32.totalorder %s34, 1
        %s671 = scalar_select %p670, %s34, 1
        %s672 = smul.addr %s671, 16
        %s673 = smul.addr %s672, 8
        %s674 = scalar_lea.vmem %s10, %s673
        %v675 = vld [vmem:[%s6] sm:$0xff]
        %v676 = vld [vmem:[%s6 + $0x8] sm:$0xff]
        %v677 = vld [vmem:[%s11] sm:$0xff]
        %v678 = vld [vmem:[%s11 + $0x8] sm:$0xff]
        %v679 = vld [vmem:[%s12] sm:$0xff]
        %v680 = vld [vmem:[%s12 + $0x8] sm:$0xff]
        %v681 = vld [vmem:[%s13] sm:$0xff]
        %v682 = vld [vmem:[%s13 + $0x8] sm:$0xff]
        %v683 = vld [vmem:[%s14] sm:$0xff]
        %v684 = vld [vmem:[%s14 + $0x8] sm:$0xff]
        %v685 = vld [vmem:[%s15] sm:$0xff]
        %v686 = vld [vmem:[%s15 + $0x8] sm:$0xff]
        %v687 = vld [vmem:[%s15 + $0x10] sm:$0xff]
        %v688 = vld [vmem:[%s15 + $0x18] sm:$0xff]
        %v689 = vld [vmem:[%s15 + $0x20] sm:$0xff]
        %v690 = vld [vmem:[%s15 + $0x28] sm:$0xff]
        %v691 = vld [vmem:[%s15 + $0x30] sm:$0xff]
        %v692 = vld [vmem:[%s15 + $0x38] sm:$0xff]
        %v693 = vld [vmem:[%s15 + $0x40] sm:$0xff]
        %v694 = vld [vmem:[%s15 + $0x48] sm:$0xff]
        %v695 = vld [vmem:[%s15 + $0x50] sm:$0xff]
        %v696 = vld [vmem:[%s15 + $0x58] sm:$0xff]
        %v697 = vld [vmem:[%s15 + $0x60] sm:$0xff]
        %v698 = vld [vmem:[%s15 + $0x68] sm:$0xff]
        %v699 = vld [vmem:[%s15 + $0x70] sm:$0xff]
        %v700 = vld [vmem:[%s15 + $0x78] sm:$0xff]
        %v701 = vld [vmem:[%s16] sm:$0xff]
        %v702 = vld [vmem:[%s16 + $0x8] sm:$0xff]
        %v703 = vld [vmem:[%s16 + $0x10] sm:$0xff]
        %v704 = vld [vmem:[%s16 + $0x18] sm:$0xff]
        %v705 = vld [vmem:[%s16 + $0x20] sm:$0xff]
        %v706 = vld [vmem:[%s16 + $0x28] sm:$0xff]
        %v707 = vld [vmem:[%s16 + $0x30] sm:$0xff]
        %v708 = vld [vmem:[%s16 + $0x38] sm:$0xff]
        %v709 = vld [vmem:[%s16 + $0x40] sm:$0xff]
        %v710 = vld [vmem:[%s16 + $0x48] sm:$0xff]
        %v711 = vld [vmem:[%s16 + $0x50] sm:$0xff]
        %v712 = vld [vmem:[%s16 + $0x58] sm:$0xff]
        %v713 = vld [vmem:[%s16 + $0x60] sm:$0xff]
        %v714 = vld [vmem:[%s16 + $0x68] sm:$0xff]
        %v715 = vld [vmem:[%s16 + $0x70] sm:$0xff]
        %v716 = vld [vmem:[%s16 + $0x78] sm:$0xff]
        %p717 = scmp.eq.s32.totalorder %s34, 0
        // Predicated region
        $region97: #{tpu_custom_call.1} parent=95 // pred_check
          %p718 = pneg %p717
        $region98: #{tpu_custom_call.1} parent=95 // pred_check_branch
          %720 = sbr.rel (%p718) target = $region100
        $region99: #{tpu_custom_call.1} parent=95 // pred_region
          %vm721 = vcmask 130048
          %722 = vst.msk [vmem:[#allocation5] sm:$0xff] %vm721, 0.0
          %723 = vst.msk [vmem:[#allocation5 + $0x8] sm:$0xff] %vm721, 0.0
          %724 = vst.msk [vmem:[#allocation6] sm:$0xff] %vm721, 0.0
          %725 = vst.msk [vmem:[#allocation6 + $0x8] sm:$0xff] %vm721, 0.0
          %v726 = vld [vmem:[%s0] sm:$0xff]
          %v727 = vld [vmem:[%s0 + $0x8] sm:$0xff]
          %v729 = vsel %vm721, %v726, 0
          %v732 = vsel %vm721, %v727, 0
          %734 = vmatprep.subr.mxu0 0.0
          %735 = vmatpush1.msra.mxu0 %v675
          %736 = vmatprep.subr.mxu0 0.0
          %737 = vmatpush1.msra.mxu0 %v676
          %738 = vmatprep.subr.mxu0 0.0
          %739 = vmatpush1.msra.mxu0 0.0
          %740 = vmatprep.subr.mxu0 0.0
          %741 = vmatpush1.msra.mxu0 0.0
          %742 = vmatprep.subr.mxu0 0.0
          %743 = vmatpush1.msra.mxu0 0.0
          %744 = vmatprep.subr.mxu0 0.0
          %745 = vmatpush1.msra.mxu0 0.0
          %746 = vmatprep.subr.mxu0 0.0
          %747 = vmatpush1.msra.mxu0 0.0
          %748 = vmatprep.subr.mxu0 0.0
          %749 = vmatpush1.msra.mxu0 0.0
          %750 = vmatprep.subr.mxu0 0.0
          %751 = vmatpush1.msra.mxu0 0.0
          %752 = vmatprep.subr.mxu0 0.0
          %753 = vmatpush1.msra.mxu0 0.0
          %754 = vmatprep.subr.mxu0 0.0
          %755 = vmatpush1.msra.mxu0 0.0
          %756 = vmatprep.subr.mxu0 0.0
          %757 = vmatpush1.msra.mxu0 0.0
          %758 = vmatprep.subr.mxu0 0.0
          %759 = vmatpush1.msra.mxu0 0.0
          %760 = vmatprep.subr.mxu0 0.0
          %761 = vmatpush1.msra.mxu0 0.0
          %762 = vmatprep.subr.mxu0 0.0
          %763 = vmatpush1.msra.mxu0 0.0
          %764 = vmatprep.subr.mxu0 0.0
          %765 = vmatpush1.msra.mxu0 0.0
          %766 = vmatprep.subr.mxu0 0.0
          %767 = vmatpush1.msra.mxu0 0.0
          %768 = vmatprep.subr.mxu0 0.0
          %769 = vmatpush1.msra.mxu0 0.0
          %770 = vmatprep.subr.mxu0 0.0
          %771 = vmatpush1.msra.mxu0 0.0
          %772 = vmatprep.subr.mxu0 0.0
          %773 = vmatpush1.msra.mxu0 0.0
          %774 = vmatprep.subr.mxu0 0.0
          %775 = vmatpush1.msra.mxu0 0.0
          %776 = vmatprep.subr.mxu0 0.0
          %777 = vmatpush1.msra.mxu0 0.0
          %778 = vmatprep.subr.mxu0 0.0
          %779 = vmatpush1.msra.mxu0 0.0
          %780 = vmatprep.subr.mxu0 0.0
          %781 = vmatpush1.msra.mxu0 0.0
          %782 = vmatprep.subr.mxu0 0.0
          %783 = vmatpush1.msra.mxu0 0.0
          %784 = vmatprep.subr.mxu0 0.0
          %785 = vmatpush1.msra.mxu0 0.0
          %786 = vmatprep.subr.mxu0 0.0
          %787 = vmatpush1.msra.mxu0 0.0
          %788 = vmatprep.subr.mxu0 0.0
          %789 = vmatpush1.msra.mxu0 0.0
          %790 = vmatprep.subr.mxu0 0.0
          %791 = vmatpush1.msra.mxu0 0.0
          %792 = vmatprep.subr.mxu0 0.0
          %793 = vmatpush1.msra.mxu0 0.0
          %794 = vmatprep.subr.mxu0 0.0
          %795 = vmatpush1.msra.mxu0 0.0
          %796 = vmatprep.subr.mxu0 0.0
          %797 = vmatpush1.msra.mxu0 0.0
          %798 = vmatprep.mubr.f32.mxu0 0.0
          %799 = vmatmul.mubr.f32.gmra.mrb[0].mxu0 %v729
          %v800 = vpop.f32.mrb[0].mxu0
          %v801 = vadd.f32 0.0, %v800
          %v802 = vpop.f32.mrb[0].mxu0
          %803 = vmatprep.mubr.f32.mxu0 0.0
          %804 = vmatmul.mubr.f32.gmra.mrb[0].mxu0 %v732
          %v805 = vpop.f32.mrb[0].mxu0
          %v806 = vadd.f32 0.0, %v805
          %v807 = vpop.f32.mrb[0].mxu0
          %808 = vdwg.mxu0
          %v809 = vld [vmem:[%s1] sm:$0xff]
          %v810 = vld [vmem:[%s1 + $0x8] sm:$0xff]
          %v812 = vsel %vm721, %v809, 0
          %v815 = vsel %vm721, %v810, 0
          %817 = vmatprep.subr.mxu0 0.0
          %818 = vmatpush1.msra.mxu0 %v675
          %819 = vmatprep.subr.mxu0 0.0
          %820 = vmatpush1.msra.mxu0 %v676
          %821 = vmatprep.subr.mxu0 0.0
          %822 = vmatpush1.msra.mxu0 0.0
          %823 = vmatprep.subr.mxu0 0.0
          %824 = vmatpush1.msra.mxu0 0.0
          %825 = vmatprep.subr.mxu0 0.0
          %826 = vmatpush1.msra.mxu0 0.0
          %827 = vmatprep.subr.mxu0 0.0
          %828 = vmatpush1.msra.mxu0 0.0
          %829 = vmatprep.subr.mxu0 0.0
          %830 = vmatpush1.msra.mxu0 0.0
          %831 = vmatprep.subr.mxu0 0.0
          %832 = vmatpush1.msra.mxu0 0.0
          %833 = vmatprep.subr.mxu0 0.0
          %834 = vmatpush1.msra.mxu0 0.0
          %835 = vmatprep.subr.mxu0 0.0
          %836 = vmatpush1.msra.mxu0 0.0
          %837 = vmatprep.subr.mxu0 0.0
          %838 = vmatpush1.msra.mxu0 0.0
          %839 = vmatprep.subr.mxu0 0.0
          %840 = vmatpush1.msra.mxu0 0.0
          %841 = vmatprep.subr.mxu0 0.0
          %842 = vmatpush1.msra.mxu0 0.0
          %843 = vmatprep.subr.mxu0 0.0
          %844 = vmatpush1.msra.mxu0 0.0
          %845 = vmatprep.subr.mxu0 0.0
          %846 = vmatpush1.msra.mxu0 0.0
          %847 = vmatprep.subr.mxu0 0.0
          %848 = vmatpush1.msra.mxu0 0.0
          %849 = vmatprep.subr.mxu0 0.0
          %850 = vmatpush1.msra.mxu0 0.0
          %851 = vmatprep.subr.mxu0 0.0
          %852 = vmatpush1.msra.mxu0 0.0
          %853 = vmatprep.subr.mxu0 0.0
          %854 = vmatpush1.msra.mxu0 0.0
          %855 = vmatprep.subr.mxu0 0.0
          %856 = vmatpush1.msra.mxu0 0.0
          %857 = vmatprep.subr.mxu0 0.0
          %858 = vmatpush1.msra.mxu0 0.0
          %859 = vmatprep.subr.mxu0 0.0
          %860 = vmatpush1.msra.mxu0 0.0
          %861 = vmatprep.subr.mxu0 0.0
          %862 = vmatpush1.msra.mxu0 0.0
          %863 = vmatprep.subr.mxu0 0.0
          %864 = vmatpush1.msra.mxu0 0.0
          %865 = vmatprep.subr.mxu0 0.0
          %866 = vmatpush1.msra.mxu0 0.0
          %867 = vmatprep.subr.mxu0 0.0
          %868 = vmatpush1.msra.mxu0 0.0
          %869 = vmatprep.subr.mxu0 0.0
          %870 = vmatpush1.msra.mxu0 0.0
          %871 = vmatprep.subr.mxu0 0.0
          %872 = vmatpush1.msra.mxu0 0.0
          %873 = vmatprep.subr.mxu0 0.0
          %874 = vmatpush1.msra.mxu0 0.0
          %875 = vmatprep.subr.mxu0 0.0
          %876 = vmatpush1.msra.mxu0 0.0
          %877 = vmatprep.subr.mxu0 0.0
          %878 = vmatpush1.msra.mxu0 0.0
          %879 = vmatprep.subr.mxu0 0.0
          %880 = vmatpush1.msra.mxu0 0.0
          %881 = vmatprep.mubr.f32.mxu0 0.0
          %882 = vmatmul.mubr.f32.gmra.mrb[0].mxu0 %v812
          %v883 = vpop.f32.mrb[0].mxu0
          %v884 = vadd.f32 0.0, %v883
          %v885 = vpop.f32.mrb[0].mxu0
          %886 = vmatprep.mubr.f32.mxu0 0.0
          %887 = vmatmul.mubr.f32.gmra.mrb[0].mxu0 %v815
          %v888 = vpop.f32.mrb[0].mxu0
          %v889 = vadd.f32 0.0, %v888
          %v890 = vpop.f32.mrb[0].mxu0
          %891 = vdwg.mxu0
          %v892 = vld [vmem:[%s2] sm:$0xff]
          %v893 = vld [vmem:[%s2 + $0x8] sm:$0xff]
          %v894 = vld [vmem:[%s3] sm:$0xff]
          %v895 = vld [vmem:[%s3 + $0x8] sm:$0xff]
          %v896 = vmul.f32 %v892, %v801
          %v897 = vmul.f32 %v893, %v806
          %v898 = vmul.f32 %v894, %v884
          %v899 = vmul.f32 %v895, %v889
          %v900 = vsub.f32 %v896, %v898
          %v901 = vsub.f32 %v897, %v899
          %v902 = vmul.f32 %v892, %v884
          %v903 = vmul.f32 %v893, %v889
          %v904 = vmul.f32 %v894, %v801
          %v905 = vmul.f32 %v895, %v806
          %v906 = vadd.f32 %v902, %v904
          %v907 = vadd.f32 %v903, %v905
          %v909 = vsel %vm721, %v677, 0
          %v912 = vsel %vm721, %v678, 0
          %914 = vmatprep.subr.mxu0 0.0
          %915 = vmatpush1.msra.mxu0 %v900
          %916 = vmatprep.subr.mxu0 0.0
          %917 = vmatpush1.msra.mxu0 %v901
          %918 = vmatprep.subr.mxu0 0.0
          %919 = vmatpush1.msra.mxu0 0.0
          %920 = vmatprep.subr.mxu0 0.0
          %921 = vmatpush1.msra.mxu0 0.0
          %922 = vmatprep.subr.mxu0 0.0
          %923 = vmatpush1.msra.mxu0 0.0
          %924 = vmatprep.subr.mxu0 0.0
          %925 = vmatpush1.msra.mxu0 0.0
          %926 = vmatprep.subr.mxu0 0.0
          %927 = vmatpush1.msra.mxu0 0.0
          %928 = vmatprep.subr.mxu0 0.0
          %929 = vmatpush1.msra.mxu0 0.0
          %930 = vmatprep.subr.mxu0 0.0
          %931 = vmatpush1.msra.mxu0 0.0
          %932 = vmatprep.subr.mxu0 0.0
          %933 = vmatpush1.msra.mxu0 0.0
          %934 = vmatprep.subr.mxu0 0.0
          %935 = vmatpush1.msra.mxu0 0.0
          %936 = vmatprep.subr.mxu0 0.0
          %937 = vmatpush1.msra.mxu0 0.0
          %938 = vmatprep.subr.mxu0 0.0
          %939 = vmatpush1.msra.mxu0 0.0
          %940 = vmatprep.subr.mxu0 0.0
          %941 = vmatpush1.msra.mxu0 0.0
          %942 = vmatprep.subr.mxu0 0.0
          %943 = vmatpush1.msra.mxu0 0.0
          %944 = vmatprep.subr.mxu0 0.0
          %945 = vmatpush1.msra.mxu0 0.0
          %946 = vmatprep.subr.mxu0 0.0
          %947 = vmatpush1.msra.mxu0 0.0
          %948 = vmatprep.subr.mxu0 0.0
          %949 = vmatpush1.msra.mxu0 0.0
          %950 = vmatprep.subr.mxu0 0.0
          %951 = vmatpush1.msra.mxu0 0.0
          %952 = vmatprep.subr.mxu0 0.0
          %953 = vmatpush1.msra.mxu0 0.0
          %954 = vmatprep.subr.mxu0 0.0
          %955 = vmatpush1.msra.mxu0 0.0
          %956 = vmatprep.subr.mxu0 0.0
          %957 = vmatpush1.msra.mxu0 0.0
          %958 = vmatprep.subr.mxu0 0.0
          %959 = vmatpush1.msra.mxu0 0.0
          %960 = vmatprep.subr.mxu0 0.0
          %961 = vmatpush1.msra.mxu0 0.0
          %962 = vmatprep.subr.mxu0 0.0
          %963 = vmatpush1.msra.mxu0 0.0
          %964 = vmatprep.subr.mxu0 0.0
          %965 = vmatpush1.msra.mxu0 0.0
          %966 = vmatprep.subr.mxu0 0.0
          %967 = vmatpush1.msra.mxu0 0.0
          %968 = vmatprep.subr.mxu0 0.0
          %969 = vmatpush1.msra.mxu0 0.0
          %970 = vmatprep.subr.mxu0 0.0
          %971 = vmatpush1.msra.mxu0 0.0
          %972 = vmatprep.subr.mxu0 0.0
          %973 = vmatpush1.msra.mxu0 0.0
          %974 = vmatprep.subr.mxu0 0.0
          %975 = vmatpush1.msra.mxu0 0.0
          %976 = vmatprep.subr.mxu0 0.0
          %977 = vmatpush1.msra.mxu0 0.0
          %978 = vmatprep.mubr.f32.mxu0 0.0
          %979 = vmatmul.mubr.f32.gmra.mrb[0].mxu0 %v909
          %v980 = vpop.f32.mrb[0].mxu0
          %v981 = vadd.f32 0.0, %v980
          %v982 = vpop.f32.mrb[0].mxu0
          %983 = vmatprep.mubr.f32.mxu0 0.0
          %984 = vmatmul.mubr.f32.gmra.mrb[0].mxu0 %v912
          %v985 = vpop.f32.mrb[0].mxu0
          %v986 = vadd.f32 0.0, %v985
          %v987 = vpop.f32.mrb[0].mxu0
          %988 = vdwg.mxu0
          %v990 = vsel %vm721, %v679, 0
          %v993 = vsel %vm721, %v680, 0
          %995 = vmatprep.subr.mxu0 0.0
          %996 = vmatpush1.msra.mxu0 %v906
          %997 = vmatprep.subr.mxu0 0.0
          %998 = vmatpush1.msra.mxu0 %v907
          %999 = vmatprep.subr.mxu0 0.0
          %1000 = vmatpush1.msra.mxu0 0.0
          %1001 = vmatprep.subr.mxu0 0.0
          %1002 = vmatpush1.msra.mxu0 0.0
          %1003 = vmatprep.subr.mxu0 0.0
          %1004 = vmatpush1.msra.mxu0 0.0
          %1005 = vmatprep.subr.mxu0 0.0
          %1006 = vmatpush1.msra.mxu0 0.0
          %1007 = vmatprep.subr.mxu0 0.0
          %1008 = vmatpush1.msra.mxu0 0.0
          %1009 = vmatprep.subr.mxu0 0.0
          %1010 = vmatpush1.msra.mxu0 0.0
          %1011 = vmatprep.subr.mxu0 0.0
          %1012 = vmatpush1.msra.mxu0 0.0
          %1013 = vmatprep.subr.mxu0 0.0
          %1014 = vmatpush1.msra.mxu0 0.0
          %1015 = vmatprep.subr.mxu0 0.0
          %1016 = vmatpush1.msra.mxu0 0.0
          %1017 = vmatprep.subr.mxu0 0.0
          %1018 = vmatpush1.msra.mxu0 0.0
          %1019 = vmatprep.subr.mxu0 0.0
          %1020 = vmatpush1.msra.mxu0 0.0
          %1021 = vmatprep.subr.mxu0 0.0
          %1022 = vmatpush1.msra.mxu0 0.0
          %1023 = vmatprep.subr.mxu0 0.0
          %1024 = vmatpush1.msra.mxu0 0.0
          %1025 = vmatprep.subr.mxu0 0.0
          %1026 = vmatpush1.msra.mxu0 0.0
          %1027 = vmatprep.subr.mxu0 0.0
          %1028 = vmatpush1.msra.mxu0 0.0
          %1029 = vmatprep.subr.mxu0 0.0
          %1030 = vmatpush1.msra.mxu0 0.0
          %1031 = vmatprep.subr.mxu0 0.0
          %1032 = vmatpush1.msra.mxu0 0.0
          %1033 = vmatprep.subr.mxu0 0.0
          %1034 = vmatpush1.msra.mxu0 0.0
          %1035 = vmatprep.subr.mxu0 0.0
          %1036 = vmatpush1.msra.mxu0 0.0
          %1037 = vmatprep.subr.mxu0 0.0
          %1038 = vmatpush1.msra.mxu0 0.0
          %1039 = vmatprep.subr.mxu0 0.0
          %1040 = vmatpush1.msra.mxu0 0.0
          %1041 = vmatprep.subr.mxu0 0.0
          %1042 = vmatpush1.msra.mxu0 0.0
          %1043 = vmatprep.subr.mxu0 0.0
          %1044 = vmatpush1.msra.mxu0 0.0
          %1045 = vmatprep.subr.mxu0 0.0
          %1046 = vmatpush1.msra.mxu0 0.0
          %1047 = vmatprep.subr.mxu0 0.0
          %1048 = vmatpush1.msra.mxu0 0.0
          %1049 = vmatprep.subr.mxu0 0.0
          %1050 = vmatpush1.msra.mxu0 0.0
          %1051 = vmatprep.subr.mxu0 0.0
          %1052 = vmatpush1.msra.mxu0 0.0
          %1053 = vmatprep.subr.mxu0 0.0
          %1054 = vmatpush1.msra.mxu0 0.0
          %1055 = vmatprep.subr.mxu0 0.0
          %1056 = vmatpush1.msra.mxu0 0.0
          %1057 = vmatprep.subr.mxu0 0.0
          %1058 = vmatpush1.msra.mxu0 0.0
          %1059 = vmatprep.mubr.f32.mxu0 0.0
          %1060 = vmatmul.mubr.f32.gmra.mrb[0].mxu0 %v990
          %v1061 = vpop.f32.mrb[0].mxu0
          %v1062 = vadd.f32 0.0, %v1061
          %v1063 = vpop.f32.mrb[0].mxu0
          %1064 = vmatprep.mubr.f32.mxu0 0.0
          %1065 = vmatmul.mubr.f32.gmra.mrb[0].mxu0 %v993
          %v1066 = vpop.f32.mrb[0].mxu0
          %v1067 = vadd.f32 0.0, %v1066
          %v1068 = vpop.f32.mrb[0].mxu0
          %1069 = vdwg.mxu0
          %v1070 = vadd.f32 %v677, %v679
          %v1071 = vadd.f32 %v678, %v680
          %v1072 = vadd.f32 %v900, %v906
          %v1073 = vadd.f32 %v901, %v907
          %v1075 = vsel %vm721, %v1070, 0
          %v1078 = vsel %vm721, %v1071, 0
          %1080 = vmatprep.subr.mxu0 0.0
          %1081 = vmatpush1.msra.mxu0 %v1072
          %1082 = vmatprep.subr.mxu0 0.0
          %1083 = vmatpush1.msra.mxu0 %v1073
          %1084 = vmatprep.subr.mxu0 0.0
          %1085 = vmatpush1.msra.mxu0 0.0
          %1086 = vmatprep.subr.mxu0 0.0
          %1087 = vmatpush1.msra.mxu0 0.0
          %1088 = vmatprep.subr.mxu0 0.0
          %1089 = vmatpush1.msra.mxu0 0.0
          %1090 = vmatprep.subr.mxu0 0.0
          %1091 = vmatpush1.msra.mxu0 0.0
          %1092 = vmatprep.subr.mxu0 0.0
          %1093 = vmatpush1.msra.mxu0 0.0
          %1094 = vmatprep.subr.mxu0 0.0
          %1095 = vmatpush1.msra.mxu0 0.0
          %1096 = vmatprep.subr.mxu0 0.0
          %1097 = vmatpush1.msra.mxu0 0.0
          %1098 = vmatprep.subr.mxu0 0.0
          %1099 = vmatpush1.msra.mxu0 0.0
          %1100 = vmatprep.subr.mxu0 0.0
          %1101 = vmatpush1.msra.mxu0 0.0
          %1102 = vmatprep.subr.mxu0 0.0
          %1103 = vmatpush1.msra.mxu0 0.0
          %1104 = vmatprep.subr.mxu0 0.0
          %1105 = vmatpush1.msra.mxu0 0.0
          %1106 = vmatprep.subr.mxu0 0.0
          %1107 = vmatpush1.msra.mxu0 0.0
          %1108 = vmatprep.subr.mxu0 0.0
          %1109 = vmatpush1.msra.mxu0 0.0
          %1110 = vmatprep.subr.mxu0 0.0
          %1111 = vmatpush1.msra.mxu0 0.0
          %1112 = vmatprep.subr.mxu0 0.0
          %1113 = vmatpush1.msra.mxu0 0.0
          %1114 = vmatprep.subr.mxu0 0.0
          %1115 = vmatpush1.msra.mxu0 0.0
          %1116 = vmatprep.subr.mxu0 0.0
          %1117 = vmatpush1.msra.mxu0 0.0
          %1118 = vmatprep.subr.mxu0 0.0
          %1119 = vmatpush1.msra.mxu0 0.0
          %1120 = vmatprep.subr.mxu0 0.0
          %1121 = vmatpush1.msra.mxu0 0.0
          %1122 = vmatprep.subr.mxu0 0.0
          %1123 = vmatpush1.msra.mxu0 0.0
          %1124 = vmatprep.subr.mxu0 0.0
          %1125 = vmatpush1.msra.mxu0 0.0
          %1126 = vmatprep.subr.mxu0 0.0
          %1127 = vmatpush1.msra.mxu0 0.0
          %1128 = vmatprep.subr.mxu0 0.0
          %1129 = vmatpush1.msra.mxu0 0.0
          %1130 = vmatprep.subr.mxu0 0.0
          %1131 = vmatpush1.msra.mxu0 0.0
          %1132 = vmatprep.subr.mxu0 0.0
          %1133 = vmatpush1.msra.mxu0 0.0
          %1134 = vmatprep.subr.mxu0 0.0
          %1135 = vmatpush1.msra.mxu0 0.0
          %1136 = vmatprep.subr.mxu0 0.0
          %1137 = vmatpush1.msra.mxu0 0.0
          %1138 = vmatprep.subr.mxu0 0.0
          %1139 = vmatpush1.msra.mxu0 0.0
          %1140 = vmatprep.subr.mxu0 0.0
          %1141 = vmatpush1.msra.mxu0 0.0
          %1142 = vmatprep.subr.mxu0 0.0
          %1143 = vmatpush1.msra.mxu0 0.0
          %1144 = vmatprep.mubr.f32.mxu0 0.0
          %1145 = vmatmul.mubr.f32.gmra.mrb[0].mxu0 %v1075
          %v1146 = vpop.f32.mrb[0].mxu0
          %v1147 = vadd.f32 0.0, %v1146
          %v1148 = vpop.f32.mrb[0].mxu0
          %1149 = vmatprep.mubr.f32.mxu0 0.0
          %1150 = vmatmul.mubr.f32.gmra.mrb[0].mxu0 %v1078
          %v1151 = vpop.f32.mrb[0].mxu0
          %v1152 = vadd.f32 0.0, %v1151
          %v1153 = vpop.f32.mrb[0].mxu0
          %1154 = vdwg.mxu0
          %v1155 = vsub.f32 %v981, %v1062
          %v1156 = vsub.f32 %v986, %v1067
          %v1157 = vsub.f32 %v1147, %v981
          %v1158 = vsub.f32 %v1152, %v986
          %v1159 = vsub.f32 %v1157, %v1062
          %v1160 = vsub.f32 %v1158, %v1067
          %1161 = vmatprep.subr.mxu0 0.0
          %1162 = vmatpush1.msra.mxu0 %v685
          %1163 = vmatprep.subr.mxu0 0.0
          %1164 = vmatpush1.msra.mxu0 %v686
          %1165 = vmatprep.subr.mxu0 0.0
          %1166 = vmatpush1.msra.mxu0 %v687
          %1167 = vmatprep.subr.mxu0 0.0
          %1168 = vmatpush1.msra.mxu0 %v688
          %1169 = vmatprep.subr.mxu0 0.0
          %1170 = vmatpush1.msra.mxu0 %v689
          %1171 = vmatprep.subr.mxu0 0.0
          %1172 = vmatpush1.msra.mxu0 %v690
          %1173 = vmatprep.subr.mxu0 0.0
          %1174 = vmatpush1.msra.mxu0 %v691
          %1175 = vmatprep.subr.mxu0 0.0
          %1176 = vmatpush1.msra.mxu0 %v692
          %1177 = vmatprep.subr.mxu0 0.0
          %1178 = vmatpush1.msra.mxu0 %v693
          %1179 = vmatprep.subr.mxu0 0.0
          %1180 = vmatpush1.msra.mxu0 %v694
          %1181 = vmatprep.subr.mxu0 0.0
          %1182 = vmatpush1.msra.mxu0 %v695
          %1183 = vmatprep.subr.mxu0 0.0
          %1184 = vmatpush1.msra.mxu0 %v696
          %1185 = vmatprep.subr.mxu0 0.0
          %1186 = vmatpush1.msra.mxu0 %v697
          %1187 = vmatprep.subr.mxu0 0.0
          %1188 = vmatpush1.msra.mxu0 %v698
          %1189 = vmatprep.subr.mxu0 0.0
          %1190 = vmatpush1.msra.mxu0 %v699
          %1191 = vmatprep.subr.mxu0 0.0
          %1192 = vmatpush1.msra.mxu0 %v700
          %1193 = vmatprep.subr.mxu0 0.0
          %1194 = vmatpush1.msra.mxu0 0.0
          %1195 = vmatprep.subr.mxu0 0.0
          %1196 = vmatpush1.msra.mxu0 0.0
          %1197 = vmatprep.subr.mxu0 0.0
          %1198 = vmatpush1.msra.mxu0 0.0
          %1199 = vmatprep.subr.mxu0 0.0
          %1200 = vmatpush1.msra.mxu0 0.0
          %1201 = vmatprep.subr.mxu0 0.0
          %1202 = vmatpush1.msra.mxu0 0.0
          %1203 = vmatprep.subr.mxu0 0.0
          %1204 = vmatpush1.msra.mxu0 0.0
          %1205 = vmatprep.subr.mxu0 0.0
          %1206 = vmatpush1.msra.mxu0 0.0
          %1207 = vmatprep.subr.mxu0 0.0
          %1208 = vmatpush1.msra.mxu0 0.0
          %1209 = vmatprep.subr.mxu0 0.0
          %1210 = vmatpush1.msra.mxu0 0.0
          %1211 = vmatprep.subr.mxu0 0.0
          %1212 = vmatpush1.msra.mxu0 0.0
          %1213 = vmatprep.subr.mxu0 0.0
          %1214 = vmatpush1.msra.mxu0 0.0
          %1215 = vmatprep.subr.mxu0 0.0
          %1216 = vmatpush1.msra.mxu0 0.0
          %1217 = vmatprep.subr.mxu0 0.0
          %1218 = vmatpush1.msra.mxu0 0.0
          %1219 = vmatprep.subr.mxu0 0.0
          %1220 = vmatpush1.msra.mxu0 0.0
          %1221 = vmatprep.subr.mxu0 0.0
          %1222 = vmatpush1.msra.mxu0 0.0
          %1223 = vmatprep.subr.mxu0 0.0
          %1224 = vmatpush1.msra.mxu0 0.0
          %1225 = vmatprep.mubr.f32.mxu0 0.0
          %1226 = vmatmul.mubr.f32.gmra.mrb[0].mxu0 %v1155
          %v1227 = vpop.f32.mrb[0].mxu0
          %v1228 = vadd.f32 0.0, %v1227
          %v1229 = vpop.f32.mrb[0].mxu0
          %1230 = vmatprep.mubr.f32.mxu0 0.0
          %1231 = vmatmul.mubr.f32.gmra.mrb[0].mxu0 %v1156
          %v1232 = vpop.f32.mrb[0].mxu0
          %v1233 = vadd.f32 0.0, %v1232
          %v1234 = vpop.f32.mrb[0].mxu0
          %1235 = vdwg.mxu0
          %1236 = vmatprep.subr.mxu0 0.0
          %1237 = vmatpush1.msra.mxu0 %v701
          %1238 = vmatprep.subr.mxu0 0.0
          %1239 = vmatpush1.msra.mxu0 %v702
          %1240 = vmatprep.subr.mxu0 0.0
          %1241 = vmatpush1.msra.mxu0 %v703
          %1242 = vmatprep.subr.mxu0 0.0
          %1243 = vmatpush1.msra.mxu0 %v704
          %1244 = vmatprep.subr.mxu0 0.0
          %1245 = vmatpush1.msra.mxu0 %v705
          %1246 = vmatprep.subr.mxu0 0.0
          %1247 = vmatpush1.msra.mxu0 %v706
          %1248 = vmatprep.subr.mxu0 0.0
          %1249 = vmatpush1.msra.mxu0 %v707
          %1250 = vmatprep.subr.mxu0 0.0
          %1251 = vmatpush1.msra.mxu0 %v708
          %1252 = vmatprep.subr.mxu0 0.0
          %1253 = vmatpush1.msra.mxu0 %v709
          %1254 = vmatprep.subr.mxu0 0.0
          %1255 = vmatpush1.msra.mxu0 %v710
          %1256 = vmatprep.subr.mxu0 0.0
          %1257 = vmatpush1.msra.mxu0 %v711
          %1258 = vmatprep.subr.mxu0 0.0
          %1259 = vmatpush1.msra.mxu0 %v712
          %1260 = vmatprep.subr.mxu0 0.0
          %1261 = vmatpush1.msra.mxu0 %v713
          %1262 = vmatprep.subr.mxu0 0.0
          %1263 = vmatpush1.msra.mxu0 %v714
          %1264 = vmatprep.subr.mxu0 0.0
          %1265 = vmatpush1.msra.mxu0 %v715
          %1266 = vmatprep.subr.mxu0 0.0
          %1267 = vmatpush1.msra.mxu0 %v716
          %1268 = vmatprep.subr.mxu0 0.0
          %1269 = vmatpush1.msra.mxu0 0.0
          %1270 = vmatprep.subr.mxu0 0.0
          %1271 = vmatpush1.msra.mxu0 0.0
          %1272 = vmatprep.subr.mxu0 0.0
          %1273 = vmatpush1.msra.mxu0 0.0
          %1274 = vmatprep.subr.mxu0 0.0
          %1275 = vmatpush1.msra.mxu0 0.0
          %1276 = vmatprep.subr.mxu0 0.0
          %1277 = vmatpush1.msra.mxu0 0.0
          %1278 = vmatprep.subr.mxu0 0.0
          %1279 = vmatpush1.msra.mxu0 0.0
          %1280 = vmatprep.subr.mxu0 0.0
          %1281 = vmatpush1.msra.mxu0 0.0
          %1282 = vmatprep.subr.mxu0 0.0
          %1283 = vmatpush1.msra.mxu0 0.0
          %1284 = vmatprep.subr.mxu0 0.0
          %1285 = vmatpush1.msra.mxu0 0.0
          %1286 = vmatprep.subr.mxu0 0.0
          %1287 = vmatpush1.msra.mxu0 0.0
          %1288 = vmatprep.subr.mxu0 0.0
          %1289 = vmatpush1.msra.mxu0 0.0
          %1290 = vmatprep.subr.mxu0 0.0
          %1291 = vmatpush1.msra.mxu0 0.0
          %1292 = vmatprep.subr.mxu0 0.0
          %1293 = vmatpush1.msra.mxu0 0.0
          %1294 = vmatprep.subr.mxu0 0.0
          %1295 = vmatpush1.msra.mxu0 0.0
          %1296 = vmatprep.subr.mxu0 0.0
          %1297 = vmatpush1.msra.mxu0 0.0
          %1298 = vmatprep.subr.mxu0 0.0
          %1299 = vmatpush1.msra.mxu0 0.0
          %1300 = vmatprep.mubr.f32.mxu0 0.0
          %1301 = vmatmul.mubr.f32.gmra.mrb[0].mxu0 %v1159
          %v1302 = vpop.f32.mrb[0].mxu0
          %v1303 = vadd.f32 0.0, %v1302
          %v1304 = vpop.f32.mrb[0].mxu0
          %1305 = vmatprep.mubr.f32.mxu0 0.0
          %1306 = vmatmul.mubr.f32.gmra.mrb[0].mxu0 %v1160
          %v1307 = vpop.f32.mrb[0].mxu0
          %v1308 = vadd.f32 0.0, %v1307
          %v1309 = vpop.f32.mrb[0].mxu0
          %1310 = vdwg.mxu0
          %v1311 = vadd.f32 %v1155, %v1159
          %v1312 = vadd.f32 %v1156, %v1160
          %v1313 = vadd.f32 %v685, %v701
          %v1314 = vadd.f32 %v686, %v702
          %v1315 = vadd.f32 %v687, %v703
          %v1316 = vadd.f32 %v688, %v704
          %v1317 = vadd.f32 %v689, %v705
          %v1318 = vadd.f32 %v690, %v706
          %v1319 = vadd.f32 %v691, %v707
          %v1320 = vadd.f32 %v692, %v708
          %v1321 = vadd.f32 %v693, %v709
          %v1322 = vadd.f32 %v694, %v710
          %v1323 = vadd.f32 %v695, %v711
          %v1324 = vadd.f32 %v696, %v712
          %v1325 = vadd.f32 %v697, %v713
          %v1326 = vadd.f32 %v698, %v714
          %v1327 = vadd.f32 %v699, %v715
          %v1328 = vadd.f32 %v700, %v716
          %1329 = vmatprep.subr.mxu0 0.0
          %1330 = vmatpush1.msra.mxu0 %v1313
          %1331 = vmatprep.subr.mxu0 0.0
          %1332 = vmatpush1.msra.mxu0 %v1314
          %1333 = vmatprep.subr.mxu0 0.0
          %1334 = vmatpush1.msra.mxu0 %v1315
          %1335 = vmatprep.subr.mxu0 0.0
          %1336 = vmatpush1.msra.mxu0 %v1316
          %1337 = vmatprep.subr.mxu0 0.0
          %1338 = vmatpush1.msra.mxu0 %v1317
          %1339 = vmatprep.subr.mxu0 0.0
          %1340 = vmatpush1.msra.mxu0 %v1318
          %1341 = vmatprep.subr.mxu0 0.0
          %1342 = vmatpush1.msra.mxu0 %v1319
          %1343 = vmatprep.subr.mxu0 0.0
          %1344 = vmatpush1.msra.mxu0 %v1320
          %1345 = vmatprep.subr.mxu0 0.0
          %1346 = vmatpush1.msra.mxu0 %v1321
          %1347 = vmatprep.subr.mxu0 0.0
          %1348 = vmatpush1.msra.mxu0 %v1322
          %1349 = vmatprep.subr.mxu0 0.0
          %1350 = vmatpush1.msra.mxu0 %v1323
          %1351 = vmatprep.subr.mxu0 0.0
          %1352 = vmatpush1.msra.mxu0 %v1324
          %1353 = vmatprep.subr.mxu0 0.0
          %1354 = vmatpush1.msra.mxu0 %v1325
          %1355 = vmatprep.subr.mxu0 0.0
          %1356 = vmatpush1.msra.mxu0 %v1326
          %1357 = vmatprep.subr.mxu0 0.0
          %1358 = vmatpush1.msra.mxu0 %v1327
          %1359 = vmatprep.subr.mxu0 0.0
          %1360 = vmatpush1.msra.mxu0 %v1328
          %1361 = vmatprep.subr.mxu0 0.0
          %1362 = vmatpush1.msra.mxu0 0.0
          %1363 = vmatprep.subr.mxu0 0.0
          %1364 = vmatpush1.msra.mxu0 0.0
          %1365 = vmatprep.subr.mxu0 0.0
          %1366 = vmatpush1.msra.mxu0 0.0
          %1367 = vmatprep.subr.mxu0 0.0
          %1368 = vmatpush1.msra.mxu0 0.0
          %1369 = vmatprep.subr.mxu0 0.0
          %1370 = vmatpush1.msra.mxu0 0.0
          %1371 = vmatprep.subr.mxu0 0.0
          %1372 = vmatpush1.msra.mxu0 0.0
          %1373 = vmatprep.subr.mxu0 0.0
          %1374 = vmatpush1.msra.mxu0 0.0
          %1375 = vmatprep.subr.mxu0 0.0
          %1376 = vmatpush1.msra.mxu0 0.0
          %1377 = vmatprep.subr.mxu0 0.0
          %1378 = vmatpush1.msra.mxu0 0.0
          %1379 = vmatprep.subr.mxu0 0.0
          %1380 = vmatpush1.msra.mxu0 0.0
          %1381 = vmatprep.subr.mxu0 0.0
          %1382 = vmatpush1.msra.mxu0 0.0
          %1383 = vmatprep.subr.mxu0 0.0
          %1384 = vmatpush1.msra.mxu0 0.0
          %1385 = vmatprep.subr.mxu0 0.0
          %1386 = vmatpush1.msra.mxu0 0.0
          %1387 = vmatprep.subr.mxu0 0.0
          %1388 = vmatpush1.msra.mxu0 0.0
          %1389 = vmatprep.subr.mxu0 0.0
          %1390 = vmatpush1.msra.mxu0 0.0
          %1391 = vmatprep.subr.mxu0 0.0
          %1392 = vmatpush1.msra.mxu0 0.0
          %1393 = vmatprep.mubr.f32.mxu0 0.0
          %1394 = vmatmul.mubr.f32.gmra.mrb[0].mxu0 %v1311
          %v1395 = vpop.f32.mrb[0].mxu0
          %v1396 = vadd.f32 0.0, %v1395
          %v1397 = vpop.f32.mrb[0].mxu0
          %1398 = vmatprep.mubr.f32.mxu0 0.0
          %1399 = vmatmul.mubr.f32.gmra.mrb[0].mxu0 %v1312
          %v1400 = vpop.f32.mrb[0].mxu0
          %v1401 = vadd.f32 0.0, %v1400
          %v1402 = vpop.f32.mrb[0].mxu0
          %1403 = vdwg.mxu0
          %v1404 = vsub.f32 %v1228, %v1303
          %v1405 = vsub.f32 %v1233, %v1308
          %v1406 = vsub.f32 %v1396, %v1228
          %v1407 = vsub.f32 %v1401, %v1233
          %v1408 = vsub.f32 %v1406, %v1303
          %v1409 = vsub.f32 %v1407, %v1308
          %v1410 = vld [vmem:[%s4] sm:$0xff]
          %v1411 = vld [vmem:[%s4 + $0x8] sm:$0xff]
          %v1412 = vld [vmem:[%s17] sm:$0xff]
          %v1413 = vld [vmem:[%s17 + $0x8] sm:$0xff]
          %v1414 = vld [vmem:[%s17 + $0x10] sm:$0xff]
          %v1415 = vld [vmem:[%s17 + $0x18] sm:$0xff]
          %v1416 = vld [vmem:[%s17 + $0x20] sm:$0xff]
          %v1417 = vld [vmem:[%s17 + $0x28] sm:$0xff]
          %v1418 = vld [vmem:[%s17 + $0x30] sm:$0xff]
          %v1419 = vld [vmem:[%s17 + $0x38] sm:$0xff]
          %v1420 = vld [vmem:[%s17 + $0x40] sm:$0xff]
          %v1421 = vld [vmem:[%s17 + $0x48] sm:$0xff]
          %v1422 = vld [vmem:[%s17 + $0x50] sm:$0xff]
          %v1423 = vld [vmem:[%s17 + $0x58] sm:$0xff]
          %v1424 = vld [vmem:[%s17 + $0x60] sm:$0xff]
          %v1425 = vld [vmem:[%s17 + $0x68] sm:$0xff]
          %v1426 = vld [vmem:[%s17 + $0x70] sm:$0xff]
          %v1427 = vld [vmem:[%s17 + $0x78] sm:$0xff]
          %v1428 = vld [vmem:[%s18] sm:$0xff]
          %v1429 = vld [vmem:[%s18 + $0x8] sm:$0xff]
          %v1430 = vld [vmem:[%s18 + $0x10] sm:$0xff]
          %v1431 = vld [vmem:[%s18 + $0x18] sm:$0xff]
          %v1432 = vld [vmem:[%s18 + $0x20] sm:$0xff]
          %v1433 = vld [vmem:[%s18 + $0x28] sm:$0xff]
          %v1434 = vld [vmem:[%s18 + $0x30] sm:$0xff]
          %v1435 = vld [vmem:[%s18 + $0x38] sm:$0xff]
          %v1436 = vld [vmem:[%s18 + $0x40] sm:$0xff]
          %v1437 = vld [vmem:[%s18 + $0x48] sm:$0xff]
          %v1438 = vld [vmem:[%s18 + $0x50] sm:$0xff]
          %v1439 = vld [vmem:[%s18 + $0x58] sm:$0xff]
          %v1440 = vld [vmem:[%s18 + $0x60] sm:$0xff]
          %v1441 = vld [vmem:[%s18 + $0x68] sm:$0xff]
          %v1442 = vld [vmem:[%s18 + $0x70] sm:$0xff]
          %v1443 = vld [vmem:[%s18 + $0x78] sm:$0xff]
          %v1444 = vmul.f32 %v1410, %v1404
          %v1445 = vmul.f32 %v1411, %v1405
          %v1446 = vmul.f32 %v1410, %v1408
          %v1447 = vmul.f32 %v1411, %v1409
          %v1449 = vsel %vm721, %v681, 0
          %v1452 = vsel %vm721, %v682, 0
          %1454 = vmatprep.subr.mxu0 0.0
          %1455 = vmatpush1.msra.mxu0 %v1444
          %1456 = vmatprep.subr.mxu0 0.0
          %1457 = vmatpush1.msra.mxu0 %v1445
          %1458 = vmatprep.subr.mxu0 0.0
          %1459 = vmatpush1.msra.mxu0 0.0
          %1460 = vmatprep.subr.mxu0 0.0
          %1461 = vmatpush1.msra.mxu0 0.0
          %1462 = vmatprep.subr.mxu0 0.0
          %1463 = vmatpush1.msra.mxu0 0.0
          %1464 = vmatprep.subr.mxu0 0.0
          %1465 = vmatpush1.msra.mxu0 0.0
          %1466 = vmatprep.subr.mxu0 0.0
          %1467 = vmatpush1.msra.mxu0 0.0
          %1468 = vmatprep.subr.mxu0 0.0
          %1469 = vmatpush1.msra.mxu0 0.0
          %1470 = vmatprep.subr.mxu0 0.0
          %1471 = vmatpush1.msra.mxu0 0.0
          %1472 = vmatprep.subr.mxu0 0.0
          %1473 = vmatpush1.msra.mxu0 0.0
          %1474 = vmatprep.subr.mxu0 0.0
          %1475 = vmatpush1.msra.mxu0 0.0
          %1476 = vmatprep.subr.mxu0 0.0
          %1477 = vmatpush1.msra.mxu0 0.0
          %1478 = vmatprep.subr.mxu0 0.0
          %1479 = vmatpush1.msra.mxu0 0.0
          %1480 = vmatprep.subr.mxu0 0.0
          %1481 = vmatpush1.msra.mxu0 0.0
          %1482 = vmatprep.subr.mxu0 0.0
          %1483 = vmatpush1.msra.mxu0 0.0
          %1484 = vmatprep.subr.mxu0 0.0
          %1485 = vmatpush1.msra.mxu0 0.0
          %1486 = vmatprep.subr.mxu0 0.0
          %1487 = vmatpush1.msra.mxu0 0.0
          %1488 = vmatprep.subr.mxu0 0.0
          %1489 = vmatpush1.msra.mxu0 0.0
          %1490 = vmatprep.subr.mxu0 0.0
          %1491 = vmatpush1.msra.mxu0 0.0
          %1492 = vmatprep.subr.mxu0 0.0
          %1493 = vmatpush1.msra.mxu0 0.0
          %1494 = vmatprep.subr.mxu0 0.0
          %1495 = vmatpush1.msra.mxu0 0.0
          %1496 = vmatprep.subr.mxu0 0.0
          %1497 = vmatpush1.msra.mxu0 0.0
          %1498 = vmatprep.subr.mxu0 0.0
          %1499 = vmatpush1.msra.mxu0 0.0
          %1500 = vmatprep.subr.mxu0 0.0
          %1501 = vmatpush1.msra.mxu0 0.0
          %1502 = vmatprep.subr.mxu0 0.0
          %1503 = vmatpush1.msra.mxu0 0.0
          %1504 = vmatprep.subr.mxu0 0.0
          %1505 = vmatpush1.msra.mxu0 0.0
          %1506 = vmatprep.subr.mxu0 0.0
          %1507 = vmatpush1.msra.mxu0 0.0
          %1508 = vmatprep.subr.mxu0 0.0
          %1509 = vmatpush1.msra.mxu0 0.0
          %1510 = vmatprep.subr.mxu0 0.0
          %1511 = vmatpush1.msra.mxu0 0.0
          %1512 = vmatprep.subr.mxu0 0.0
          %1513 = vmatpush1.msra.mxu0 0.0
          %1514 = vmatprep.subr.mxu0 0.0
          %1515 = vmatpush1.msra.mxu0 0.0
          %1516 = vmatprep.subr.mxu0 0.0
          %1517 = vmatpush1.msra.mxu0 0.0
          %1518 = vmatprep.mubr.f32.mxu0 0.0
          %1519 = vmatmul.mubr.f32.gmra.mrb[0].mxu0 %v1449
          %v1520 = vpop.f32.mrb[0].mxu0
          %v1521 = vadd.f32 0.0, %v1520
          %v1522 = vpop.f32.mrb[0].mxu0
          %1523 = vmatprep.mubr.f32.mxu0 0.0
          %1524 = vmatmul.mubr.f32.gmra.mrb[0].mxu0 %v1452
          %v1525 = vpop.f32.mrb[0].mxu0
          %v1526 = vadd.f32 0.0, %v1525
          %v1527 = vpop.f32.mrb[0].mxu0
          %1528 = vdwg.mxu0
          %v1530 = vsel %vm721, %v683, 0
          %v1533 = vsel %vm721, %v684, 0
          %1535 = vmatprep.subr.mxu0 0.0
          %1536 = vmatpush1.msra.mxu0 %v1446
          %1537 = vmatprep.subr.mxu0 0.0
          %1538 = vmatpush1.msra.mxu0 %v1447
          %1539 = vmatprep.subr.mxu0 0.0
          %1540 = vmatpush1.msra.mxu0 0.0
          %1541 = vmatprep.subr.mxu0 0.0
          %1542 = vmatpush1.msra.mxu0 0.0
          %1543 = vmatprep.subr.mxu0 0.0
          %1544 = vmatpush1.msra.mxu0 0.0
          %1545 = vmatprep.subr.mxu0 0.0
          %1546 = vmatpush1.msra.mxu0 0.0
          %1547 = vmatprep.subr.mxu0 0.0
          %1548 = vmatpush1.msra.mxu0 0.0
          %1549 = vmatprep.subr.mxu0 0.0
          %1550 = vmatpush1.msra.mxu0 0.0
          %1551 = vmatprep.subr.mxu0 0.0
          %1552 = vmatpush1.msra.mxu0 0.0
          %1553 = vmatprep.subr.mxu0 0.0
          %1554 = vmatpush1.msra.mxu0 0.0
          %1555 = vmatprep.subr.mxu0 0.0
          %1556 = vmatpush1.msra.mxu0 0.0
          %1557 = vmatprep.subr.mxu0 0.0
          %1558 = vmatpush1.msra.mxu0 0.0
          %1559 = vmatprep.subr.mxu0 0.0
          %1560 = vmatpush1.msra.mxu0 0.0
          %1561 = vmatprep.subr.mxu0 0.0
          %1562 = vmatpush1.msra.mxu0 0.0
          %1563 = vmatprep.subr.mxu0 0.0
          %1564 = vmatpush1.msra.mxu0 0.0
          %1565 = vmatprep.subr.mxu0 0.0
          %1566 = vmatpush1.msra.mxu0 0.0
          %1567 = vmatprep.subr.mxu0 0.0
          %1568 = vmatpush1.msra.mxu0 0.0
          %1569 = vmatprep.subr.mxu0 0.0
          %1570 = vmatpush1.msra.mxu0 0.0
          %1571 = vmatprep.subr.mxu0 0.0
          %1572 = vmatpush1.msra.mxu0 0.0
          %1573 = vmatprep.subr.mxu0 0.0
          %1574 = vmatpush1.msra.mxu0 0.0
          %1575 = vmatprep.subr.mxu0 0.0
          %1576 = vmatpush1.msra.mxu0 0.0
          %1577 = vmatprep.subr.mxu0 0.0
          %1578 = vmatpush1.msra.mxu0 0.0
          %1579 = vmatprep.subr.mxu0 0.0
          %1580 = vmatpush1.msra.mxu0 0.0
          %1581 = vmatprep.subr.mxu0 0.0
          %1582 = vmatpush1.msra.mxu0 0.0
          %1583 = vmatprep.subr.mxu0 0.0
          %1584 = vmatpush1.msra.mxu0 0.0
          %1585 = vmatprep.subr.mxu0 0.0
          %1586 = vmatpush1.msra.mxu0 0.0
          %1587 = vmatprep.subr.mxu0 0.0
          %1588 = vmatpush1.msra.mxu0 0.0
          %1589 = vmatprep.subr.mxu0 0.0
          %1590 = vmatpush1.msra.mxu0 0.0
          %1591 = vmatprep.subr.mxu0 0.0
          %1592 = vmatpush1.msra.mxu0 0.0
          %1593 = vmatprep.subr.mxu0 0.0
          %1594 = vmatpush1.msra.mxu0 0.0
          %1595 = vmatprep.subr.mxu0 0.0
          %1596 = vmatpush1.msra.mxu0 0.0
          %1597 = vmatprep.subr.mxu0 0.0
          %1598 = vmatpush1.msra.mxu0 0.0
          %1599 = vmatprep.mubr.f32.mxu0 0.0
          %1600 = vmatmul.mubr.f32.gmra.mrb[0].mxu0 %v1530
          %v1601 = vpop.f32.mrb[0].mxu0
          %v1602 = vadd.f32 0.0, %v1601
          %v1603 = vpop.f32.mrb[0].mxu0
          %1604 = vmatprep.mubr.f32.mxu0 0.0
          %1605 = vmatmul.mubr.f32.gmra.mrb[0].mxu0 %v1533
          %v1606 = vpop.f32.mrb[0].mxu0
          %v1607 = vadd.f32 0.0, %v1606
          %v1608 = vpop.f32.mrb[0].mxu0
          %1609 = vdwg.mxu0
          %v1610 = vadd.f32 %v681, %v683
          %v1611 = vadd.f32 %v682, %v684
          %v1612 = vadd.f32 %v1444, %v1446
          %v1613 = vadd.f32 %v1445, %v1447
          %v1615 = vsel %vm721, %v1610, 0
          %v1618 = vsel %vm721, %v1611, 0
          %1620 = vmatprep.subr.mxu0 0.0
          %1621 = vmatpush1.msra.mxu0 %v1612
          %1622 = vmatprep.subr.mxu0 0.0
          %1623 = vmatpush1.msra.mxu0 %v1613
          %1624 = vmatprep.subr.mxu0 0.0
          %1625 = vmatpush1.msra.mxu0 0.0
          %1626 = vmatprep.subr.mxu0 0.0
          %1627 = vmatpush1.msra.mxu0 0.0
          %1628 = vmatprep.subr.mxu0 0.0
          %1629 = vmatpush1.msra.mxu0 0.0
          %1630 = vmatprep.subr.mxu0 0.0
          %1631 = vmatpush1.msra.mxu0 0.0
          %1632 = vmatprep.subr.mxu0 0.0
          %1633 = vmatpush1.msra.mxu0 0.0
          %1634 = vmatprep.subr.mxu0 0.0
          %1635 = vmatpush1.msra.mxu0 0.0
          %1636 = vmatprep.subr.mxu0 0.0
          %1637 = vmatpush1.msra.mxu0 0.0
          %1638 = vmatprep.subr.mxu0 0.0
          %1639 = vmatpush1.msra.mxu0 0.0
          %1640 = vmatprep.subr.mxu0 0.0
          %1641 = vmatpush1.msra.mxu0 0.0
          %1642 = vmatprep.subr.mxu0 0.0
          %1643 = vmatpush1.msra.mxu0 0.0
          %1644 = vmatprep.subr.mxu0 0.0
          %1645 = vmatpush1.msra.mxu0 0.0
          %1646 = vmatprep.subr.mxu0 0.0
          %1647 = vmatpush1.msra.mxu0 0.0
          %1648 = vmatprep.subr.mxu0 0.0
          %1649 = vmatpush1.msra.mxu0 0.0
          %1650 = vmatprep.subr.mxu0 0.0
          %1651 = vmatpush1.msra.mxu0 0.0
          %1652 = vmatprep.subr.mxu0 0.0
          %1653 = vmatpush1.msra.mxu0 0.0
          %1654 = vmatprep.subr.mxu0 0.0
          %1655 = vmatpush1.msra.mxu0 0.0
          %1656 = vmatprep.subr.mxu0 0.0
          %1657 = vmatpush1.msra.mxu0 0.0
          %1658 = vmatprep.subr.mxu0 0.0
          %1659 = vmatpush1.msra.mxu0 0.0
          %1660 = vmatprep.subr.mxu0 0.0
          %1661 = vmatpush1.msra.mxu0 0.0
          %1662 = vmatprep.subr.mxu0 0.0
          %1663 = vmatpush1.msra.mxu0 0.0
          %1664 = vmatprep.subr.mxu0 0.0
          %1665 = vmatpush1.msra.mxu0 0.0
          %1666 = vmatprep.subr.mxu0 0.0
          %1667 = vmatpush1.msra.mxu0 0.0
          %1668 = vmatprep.subr.mxu0 0.0
          %1669 = vmatpush1.msra.mxu0 0.0
          %1670 = vmatprep.subr.mxu0 0.0
          %1671 = vmatpush1.msra.mxu0 0.0
          %1672 = vmatprep.subr.mxu0 0.0
          %1673 = vmatpush1.msra.mxu0 0.0
          %1674 = vmatprep.subr.mxu0 0.0
          %1675 = vmatpush1.msra.mxu0 0.0
          %1676 = vmatprep.subr.mxu0 0.0
          %1677 = vmatpush1.msra.mxu0 0.0
          %1678 = vmatprep.subr.mxu0 0.0
          %1679 = vmatpush1.msra.mxu0 0.0
          %1680 = vmatprep.subr.mxu0 0.0
          %1681 = vmatpush1.msra.mxu0 0.0
          %1682 = vmatprep.subr.mxu0 0.0
          %1683 = vmatpush1.msra.mxu0 0.0
          %1684 = vmatprep.mubr.f32.mxu0 0.0
          %1685 = vmatmul.mubr.f32.gmra.mrb[0].mxu0 %v1615
          %v1686 = vpop.f32.mrb[0].mxu0
          %v1687 = vadd.f32 0.0, %v1686
          %v1688 = vpop.f32.mrb[0].mxu0
          %1689 = vmatprep.mubr.f32.mxu0 0.0
          %1690 = vmatmul.mubr.f32.gmra.mrb[0].mxu0 %v1618
          %v1691 = vpop.f32.mrb[0].mxu0
          %v1692 = vadd.f32 0.0, %v1691
          %v1693 = vpop.f32.mrb[0].mxu0
          %1694 = vdwg.mxu0
          %v1695 = vsub.f32 %v1521, %v1602
          %v1696 = vsub.f32 %v1526, %v1607
          %v1697 = vsub.f32 %v1687, %v1521
          %v1698 = vsub.f32 %v1692, %v1526
          %v1699 = vsub.f32 %v1697, %v1602
          %v1700 = vsub.f32 %v1698, %v1607
          %1701 = vmatprep.subr.mxu0 0.0
          %1702 = vmatpush1.msra.mxu0 %v1412
          %1703 = vmatprep.subr.mxu0 0.0
          %1704 = vmatpush1.msra.mxu0 %v1413
          %1705 = vmatprep.subr.mxu0 0.0
          %1706 = vmatpush1.msra.mxu0 %v1414
          %1707 = vmatprep.subr.mxu0 0.0
          %1708 = vmatpush1.msra.mxu0 %v1415
          %1709 = vmatprep.subr.mxu0 0.0
          %1710 = vmatpush1.msra.mxu0 %v1416
          %1711 = vmatprep.subr.mxu0 0.0
          %1712 = vmatpush1.msra.mxu0 %v1417
          %1713 = vmatprep.subr.mxu0 0.0
          %1714 = vmatpush1.msra.mxu0 %v1418
          %1715 = vmatprep.subr.mxu0 0.0
          %1716 = vmatpush1.msra.mxu0 %v1419
          %1717 = vmatprep.subr.mxu0 0.0
          %1718 = vmatpush1.msra.mxu0 %v1420
          %1719 = vmatprep.subr.mxu0 0.0
          %1720 = vmatpush1.msra.mxu0 %v1421
          %1721 = vmatprep.subr.mxu0 0.0
          %1722 = vmatpush1.msra.mxu0 %v1422
          %1723 = vmatprep.subr.mxu0 0.0
          %1724 = vmatpush1.msra.mxu0 %v1423
          %1725 = vmatprep.subr.mxu0 0.0
          %1726 = vmatpush1.msra.mxu0 %v1424
          %1727 = vmatprep.subr.mxu0 0.0
          %1728 = vmatpush1.msra.mxu0 %v1425
          %1729 = vmatprep.subr.mxu0 0.0
          %1730 = vmatpush1.msra.mxu0 %v1426
          %1731 = vmatprep.subr.mxu0 0.0
          %1732 = vmatpush1.msra.mxu0 %v1427
          %1733 = vmatprep.subr.mxu0 0.0
          %1734 = vmatpush1.msra.mxu0 0.0
          %1735 = vmatprep.subr.mxu0 0.0
          %1736 = vmatpush1.msra.mxu0 0.0
          %1737 = vmatprep.subr.mxu0 0.0
          %1738 = vmatpush1.msra.mxu0 0.0
          %1739 = vmatprep.subr.mxu0 0.0
          %1740 = vmatpush1.msra.mxu0 0.0
          %1741 = vmatprep.subr.mxu0 0.0
          %1742 = vmatpush1.msra.mxu0 0.0
          %1743 = vmatprep.subr.mxu0 0.0
          %1744 = vmatpush1.msra.mxu0 0.0
          %1745 = vmatprep.subr.mxu0 0.0
          %1746 = vmatpush1.msra.mxu0 0.0
          %1747 = vmatprep.subr.mxu0 0.0
          %1748 = vmatpush1.msra.mxu0 0.0
          %1749 = vmatprep.subr.mxu0 0.0
          %1750 = vmatpush1.msra.mxu0 0.0
          %1751 = vmatprep.subr.mxu0 0.0
          %1752 = vmatpush1.msra.mxu0 0.0
          %1753 = vmatprep.subr.mxu0 0.0
          %1754 = vmatpush1.msra.mxu0 0.0
          %1755 = vmatprep.subr.mxu0 0.0
          %1756 = vmatpush1.msra.mxu0 0.0
          %1757 = vmatprep.subr.mxu0 0.0
          %1758 = vmatpush1.msra.mxu0 0.0
          %1759 = vmatprep.subr.mxu0 0.0
          %1760 = vmatpush1.msra.mxu0 0.0
          %1761 = vmatprep.subr.mxu0 0.0
          %1762 = vmatpush1.msra.mxu0 0.0
          %1763 = vmatprep.subr.mxu0 0.0
          %1764 = vmatpush1.msra.mxu0 0.0
          %1765 = vmatprep.mubr.f32.mxu0 0.0
          %1766 = vmatmul.mubr.f32.gmra.mrb[0].mxu0 %v1695
          %v1767 = vpop.f32.mrb[0].mxu0
          %v1768 = vadd.f32 0.0, %v1767
          %v1769 = vpop.f32.mrb[0].mxu0
          %1770 = vmatprep.mubr.f32.mxu0 0.0
          %1771 = vmatmul.mubr.f32.gmra.mrb[0].mxu0 %v1696
          %v1772 = vpop.f32.mrb[0].mxu0
          %v1773 = vadd.f32 0.0, %v1772
          %v1774 = vpop.f32.mrb[0].mxu0
          %1775 = vdwg.mxu0
          %1776 = vmatprep.subr.mxu0 0.0
          %1777 = vmatpush1.msra.mxu0 %v1428
          %1778 = vmatprep.subr.mxu0 0.0
          %1779 = vmatpush1.msra.mxu0 %v1429
          %1780 = vmatprep.subr.mxu0 0.0
          %1781 = vmatpush1.msra.mxu0 %v1430
          %1782 = vmatprep.subr.mxu0 0.0
          %1783 = vmatpush1.msra.mxu0 %v1431
          %1784 = vmatprep.subr.mxu0 0.0
          %1785 = vmatpush1.msra.mxu0 %v1432
          %1786 = vmatprep.subr.mxu0 0.0
          %1787 = vmatpush1.msra.mxu0 %v1433
          %1788 = vmatprep.subr.mxu0 0.0
          %1789 = vmatpush1.msra.mxu0 %v1434
          %1790 = vmatprep.subr.mxu0 0.0
          %1791 = vmatpush1.msra.mxu0 %v1435
          %1792 = vmatprep.subr.mxu0 0.0
          %1793 = vmatpush1.msra.mxu0 %v1436
          %1794 = vmatprep.subr.mxu0 0.0
          %1795 = vmatpush1.msra.mxu0 %v1437
          %1796 = vmatprep.subr.mxu0 0.0
          %1797 = vmatpush1.msra.mxu0 %v1438
          %1798 = vmatprep.subr.mxu0 0.0
          %1799 = vmatpush1.msra.mxu0 %v1439
          %1800 = vmatprep.subr.mxu0 0.0
          %1801 = vmatpush1.msra.mxu0 %v1440
          %1802 = vmatprep.subr.mxu0 0.0
          %1803 = vmatpush1.msra.mxu0 %v1441
          %1804 = vmatprep.subr.mxu0 0.0
          %1805 = vmatpush1.msra.mxu0 %v1442
          %1806 = vmatprep.subr.mxu0 0.0
          %1807 = vmatpush1.msra.mxu0 %v1443
          %1808 = vmatprep.subr.mxu0 0.0
          %1809 = vmatpush1.msra.mxu0 0.0
          %1810 = vmatprep.subr.mxu0 0.0
          %1811 = vmatpush1.msra.mxu0 0.0
          %1812 = vmatprep.subr.mxu0 0.0
          %1813 = vmatpush1.msra.mxu0 0.0
          %1814 = vmatprep.subr.mxu0 0.0
          %1815 = vmatpush1.msra.mxu0 0.0
          %1816 = vmatprep.subr.mxu0 0.0
          %1817 = vmatpush1.msra.mxu0 0.0
          %1818 = vmatprep.subr.mxu0 0.0
          %1819 = vmatpush1.msra.mxu0 0.0
          %1820 = vmatprep.subr.mxu0 0.0
          %1821 = vmatpush1.msra.mxu0 0.0
          %1822 = vmatprep.subr.mxu0 0.0
          %1823 = vmatpush1.msra.mxu0 0.0
          %1824 = vmatprep.subr.mxu0 0.0
          %1825 = vmatpush1.msra.mxu0 0.0
          %1826 = vmatprep.subr.mxu0 0.0
          %1827 = vmatpush1.msra.mxu0 0.0
          %1828 = vmatprep.subr.mxu0 0.0
          %1829 = vmatpush1.msra.mxu0 0.0
          %1830 = vmatprep.subr.mxu0 0.0
          %1831 = vmatpush1.msra.mxu0 0.0
          %1832 = vmatprep.subr.mxu0 0.0
          %1833 = vmatpush1.msra.mxu0 0.0
          %1834 = vmatprep.subr.mxu0 0.0
          %1835 = vmatpush1.msra.mxu0 0.0
          %1836 = vmatprep.subr.mxu0 0.0
          %1837 = vmatpush1.msra.mxu0 0.0
          %1838 = vmatprep.subr.mxu0 0.0
          %1839 = vmatpush1.msra.mxu0 0.0
          %1840 = vmatprep.mubr.f32.mxu0 0.0
          %1841 = vmatmul.mubr.f32.gmra.mrb[0].mxu0 %v1699
          %v1842 = vpop.f32.mrb[0].mxu0
          %v1843 = vadd.f32 0.0, %v1842
          %v1844 = vpop.f32.mrb[0].mxu0
          %1845 = vmatprep.mubr.f32.mxu0 0.0
          %1846 = vmatmul.mubr.f32.gmra.mrb[0].mxu0 %v1700
          %v1847 = vpop.f32.mrb[0].mxu0
          %v1848 = vadd.f32 0.0, %v1847
          %v1849 = vpop.f32.mrb[0].mxu0
          %1850 = vdwg.mxu0
          %v1851 = vadd.f32 %v1695, %v1699
          %v1852 = vadd.f32 %v1696, %v1700
          %v1853 = vadd.f32 %v1412, %v1428
          %v1854 = vadd.f32 %v1413, %v1429
          %v1855 = vadd.f32 %v1414, %v1430
          %v1856 = vadd.f32 %v1415, %v1431
          %v1857 = vadd.f32 %v1416, %v1432
          %v1858 = vadd.f32 %v1417, %v1433
          %v1859 = vadd.f32 %v1418, %v1434
          %v1860 = vadd.f32 %v1419, %v1435
          %v1861 = vadd.f32 %v1420, %v1436
          %v1862 = vadd.f32 %v1421, %v1437
          %v1863 = vadd.f32 %v1422, %v1438
          %v1864 = vadd.f32 %v1423, %v1439
          %v1865 = vadd.f32 %v1424, %v1440
          %v1866 = vadd.f32 %v1425, %v1441
          %v1867 = vadd.f32 %v1426, %v1442
          %v1868 = vadd.f32 %v1427, %v1443
          %1869 = vmatprep.subr.mxu0 0.0
          %1870 = vmatpush1.msra.mxu0 %v1853
          %1871 = vmatprep.subr.mxu0 0.0
          %1872 = vmatpush1.msra.mxu0 %v1854
          %1873 = vmatprep.subr.mxu0 0.0
          %1874 = vmatpush1.msra.mxu0 %v1855
          %1875 = vmatprep.subr.mxu0 0.0
          %1876 = vmatpush1.msra.mxu0 %v1856
          %1877 = vmatprep.subr.mxu0 0.0
          %1878 = vmatpush1.msra.mxu0 %v1857
          %1879 = vmatprep.subr.mxu0 0.0
          %1880 = vmatpush1.msra.mxu0 %v1858
          %1881 = vmatprep.subr.mxu0 0.0
          %1882 = vmatpush1.msra.mxu0 %v1859
          %1883 = vmatprep.subr.mxu0 0.0
          %1884 = vmatpush1.msra.mxu0 %v1860
          %1885 = vmatprep.subr.mxu0 0.0
          %1886 = vmatpush1.msra.mxu0 %v1861
          %1887 = vmatprep.subr.mxu0 0.0
          %1888 = vmatpush1.msra.mxu0 %v1862
          %1889 = vmatprep.subr.mxu0 0.0
          %1890 = vmatpush1.msra.mxu0 %v1863
          %1891 = vmatprep.subr.mxu0 0.0
          %1892 = vmatpush1.msra.mxu0 %v1864
          %1893 = vmatprep.subr.mxu0 0.0
          %1894 = vmatpush1.msra.mxu0 %v1865
          %1895 = vmatprep.subr.mxu0 0.0
          %1896 = vmatpush1.msra.mxu0 %v1866
          %1897 = vmatprep.subr.mxu0 0.0
          %1898 = vmatpush1.msra.mxu0 %v1867
          %1899 = vmatprep.subr.mxu0 0.0
          %1900 = vmatpush1.msra.mxu0 %v1868
          %1901 = vmatprep.subr.mxu0 0.0
          %1902 = vmatpush1.msra.mxu0 0.0
          %1903 = vmatprep.subr.mxu0 0.0
          %1904 = vmatpush1.msra.mxu0 0.0
          %1905 = vmatprep.subr.mxu0 0.0
          %1906 = vmatpush1.msra.mxu0 0.0
          %1907 = vmatprep.subr.mxu0 0.0
          %1908 = vmatpush1.msra.mxu0 0.0
          %1909 = vmatprep.subr.mxu0 0.0
          %1910 = vmatpush1.msra.mxu0 0.0
          %1911 = vmatprep.subr.mxu0 0.0
          %1912 = vmatpush1.msra.mxu0 0.0
          %1913 = vmatprep.subr.mxu0 0.0
          %1914 = vmatpush1.msra.mxu0 0.0
          %1915 = vmatprep.subr.mxu0 0.0
          %1916 = vmatpush1.msra.mxu0 0.0
          %1917 = vmatprep.subr.mxu0 0.0
          %1918 = vmatpush1.msra.mxu0 0.0
          %1919 = vmatprep.subr.mxu0 0.0
          %1920 = vmatpush1.msra.mxu0 0.0
          %1921 = vmatprep.subr.mxu0 0.0
          %1922 = vmatpush1.msra.mxu0 0.0
          %1923 = vmatprep.subr.mxu0 0.0
          %1924 = vmatpush1.msra.mxu0 0.0
          %1925 = vmatprep.subr.mxu0 0.0
          %1926 = vmatpush1.msra.mxu0 0.0
          %1927 = vmatprep.subr.mxu0 0.0
          %1928 = vmatpush1.msra.mxu0 0.0
          %1929 = vmatprep.subr.mxu0 0.0
          %1930 = vmatpush1.msra.mxu0 0.0
          %1931 = vmatprep.subr.mxu0 0.0
          %1932 = vmatpush1.msra.mxu0 0.0
          %1933 = vmatprep.mubr.f32.mxu0 0.0
          %1934 = vmatmul.mubr.f32.gmra.mrb[0].mxu0 %v1851
          %v1935 = vpop.f32.mrb[0].mxu0
          %v1936 = vadd.f32 0.0, %v1935
          %v1937 = vpop.f32.mrb[0].mxu0
          %1938 = vmatprep.mubr.f32.mxu0 0.0
          %1939 = vmatmul.mubr.f32.gmra.mrb[0].mxu0 %v1852
          %v1940 = vpop.f32.mrb[0].mxu0
          %v1941 = vadd.f32 0.0, %v1940
          %v1942 = vpop.f32.mrb[0].mxu0
          %1943 = vdwg.mxu0
          %v1944 = vsub.f32 %v1768, %v1843
          %v1945 = vsub.f32 %v1773, %v1848
          %v1946 = vsub.f32 %v1936, %v1768
          %v1947 = vsub.f32 %v1941, %v1773
          %v1948 = vsub.f32 %v1946, %v1843
          %v1949 = vsub.f32 %v1947, %v1848
          %v1950 = vmul.f32 %v1944, %v1944
          %v1951 = vmul.f32 %v1945, %v1945
          %v1952 = vmul.f32 %v1948, %v1948
          %v1953 = vmul.f32 %v1949, %v1949
          %v1954 = vadd.f32 %v1950, %v1952
          %v1955 = vadd.f32 %v1951, %v1953
          %1956 = vst [vmem:[#allocation2] sm:$0xff] %v1954
          %1957 = vst [vmem:[#allocation2 + $0x8] sm:$0xff] %v1955
          %v1958 = vmul.f32 %v892, %v1944
          %v1959 = vmul.f32 %v893, %v1945
          %v1960 = vmul.f32 %v894, %v1948
          %v1961 = vmul.f32 %v895, %v1949
          %v1962 = vadd.f32 %v1958, %v1960
          %v1963 = vadd.f32 %v1959, %v1961
          %1964 = vst [vmem:[#allocation3] sm:$0xff] %v1962
          %1965 = vst [vmem:[#allocation3 + $0x8] sm:$0xff] %v1963
          %v1966 = vmul.f32 %v892, %v1948
          %v1967 = vmul.f32 %v893, %v1949
          %v1968 = vmul.f32 %v894, %v1944
          %v1969 = vmul.f32 %v895, %v1945
          %v1970 = vsub.f32 %v1966, %v1968
          %v1971 = vsub.f32 %v1967, %v1969
          %1972 = vst [vmem:[#allocation4] sm:$0xff] %v1970
          %1973 = vst [vmem:[#allocation4 + $0x8] sm:$0xff] %v1971
        $region100: #{tpu_custom_call.1} parent=95 // pred_fallthru
          _
        %v1974 = vld [vmem:[%s659] sm:$0xff]
        %v1975 = vld [vmem:[%s659 + $0x8] sm:$0xff]
        %v1976 = vld [vmem:[%s659 + $0x10] sm:$0xff]
        %v1977 = vld [vmem:[%s659 + $0x18] sm:$0xff]
        %v1978 = vld [vmem:[%s659 + $0x20] sm:$0xff]
        %v1979 = vld [vmem:[%s659 + $0x28] sm:$0xff]
        %v1980 = vld [vmem:[%s659 + $0x30] sm:$0xff]
        %v1981 = vld [vmem:[%s659 + $0x38] sm:$0xff]
        %v1982 = vld [vmem:[%s659 + $0x40] sm:$0xff]
        %v1983 = vld [vmem:[%s659 + $0x48] sm:$0xff]
        %v1984 = vld [vmem:[%s659 + $0x50] sm:$0xff]
        %v1985 = vld [vmem:[%s659 + $0x58] sm:$0xff]
        %v1986 = vld [vmem:[%s659 + $0x60] sm:$0xff]
        %v1987 = vld [vmem:[%s659 + $0x68] sm:$0xff]
        %v1988 = vld [vmem:[%s659 + $0x70] sm:$0xff]
        %v1989 = vld [vmem:[%s659 + $0x78] sm:$0xff]
        %v1990 = vld [vmem:[#allocation2] sm:$0xff]
        %v1991 = vld [vmem:[#allocation2 + $0x8] sm:$0xff]
        %1992 = vmatprep.subr.mxu0 0.0
        %1993 = vmatpush1.msra.mxu0 %v1974
        %1994 = vmatprep.subr.mxu0 0.0
        %1995 = vmatpush1.msra.mxu0 %v1975
        %1996 = vmatprep.subr.mxu0 0.0
        %1997 = vmatpush1.msra.mxu0 %v1976
        %1998 = vmatprep.subr.mxu0 0.0
        %1999 = vmatpush1.msra.mxu0 %v1977
        %2000 = vmatprep.subr.mxu0 0.0
        %2001 = vmatpush1.msra.mxu0 %v1978
        %2002 = vmatprep.subr.mxu0 0.0
        %2003 = vmatpush1.msra.mxu0 %v1979
        %2004 = vmatprep.subr.mxu0 0.0
        %2005 = vmatpush1.msra.mxu0 %v1980
        %2006 = vmatprep.subr.mxu0 0.0
        %2007 = vmatpush1.msra.mxu0 %v1981
        %2008 = vmatprep.subr.mxu0 0.0
        %2009 = vmatpush1.msra.mxu0 %v1982
        %2010 = vmatprep.subr.mxu0 0.0
        %2011 = vmatpush1.msra.mxu0 %v1983
        %2012 = vmatprep.subr.mxu0 0.0
        %2013 = vmatpush1.msra.mxu0 %v1984
        %2014 = vmatprep.subr.mxu0 0.0
        %2015 = vmatpush1.msra.mxu0 %v1985
        %2016 = vmatprep.subr.mxu0 0.0
        %2017 = vmatpush1.msra.mxu0 %v1986
        %2018 = vmatprep.subr.mxu0 0.0
        %2019 = vmatpush1.msra.mxu0 %v1987
        %2020 = vmatprep.subr.mxu0 0.0
        %2021 = vmatpush1.msra.mxu0 %v1988
        %2022 = vmatprep.subr.mxu0 0.0
        %2023 = vmatpush1.msra.mxu0 %v1989
        %2024 = vmatprep.subr.mxu0 0.0
        %2025 = vmatpush1.msra.mxu0 0.0
        %2026 = vmatprep.subr.mxu0 0.0
        %2027 = vmatpush1.msra.mxu0 0.0
        %2028 = vmatprep.subr.mxu0 0.0
        %2029 = vmatpush1.msra.mxu0 0.0
        %2030 = vmatprep.subr.mxu0 0.0
        %2031 = vmatpush1.msra.mxu0 0.0
        %2032 = vmatprep.subr.mxu0 0.0
        %2033 = vmatpush1.msra.mxu0 0.0
        %2034 = vmatprep.subr.mxu0 0.0
        %2035 = vmatpush1.msra.mxu0 0.0
        %2036 = vmatprep.subr.mxu0 0.0
        %2037 = vmatpush1.msra.mxu0 0.0
        %2038 = vmatprep.subr.mxu0 0.0
        %2039 = vmatpush1.msra.mxu0 0.0
        %2040 = vmatprep.subr.mxu0 0.0
        %2041 = vmatpush1.msra.mxu0 0.0
        %2042 = vmatprep.subr.mxu0 0.0
        %2043 = vmatpush1.msra.mxu0 0.0
        %2044 = vmatprep.subr.mxu0 0.0
        %2045 = vmatpush1.msra.mxu0 0.0
        %2046 = vmatprep.subr.mxu0 0.0
        %2047 = vmatpush1.msra.mxu0 0.0
        %2048 = vmatprep.subr.mxu0 0.0
        %2049 = vmatpush1.msra.mxu0 0.0
        %2050 = vmatprep.subr.mxu0 0.0
        %2051 = vmatpush1.msra.mxu0 0.0
        %2052 = vmatprep.subr.mxu0 0.0
        %2053 = vmatpush1.msra.mxu0 0.0
        %2054 = vmatprep.subr.mxu0 0.0
        %2055 = vmatpush1.msra.mxu0 0.0
        %2056 = vmatprep.mubr.f32.mxu0 0.0
        %2057 = vmatmul.mubr.f32.gmra.mrb[0].mxu0 %v1990
        %v2058 = vpop.f32.mrb[0].mxu0
        %v2059 = vadd.f32 1e-07, %v2058
        %v2060 = vpop.f32.mrb[0].mxu0
        %2061 = vmatprep.mubr.f32.mxu0 0.0
        %2062 = vmatmul.mubr.f32.gmra.mrb[0].mxu0 %v1991
        %v2063 = vpop.f32.mrb[0].mxu0
        %v2064 = vadd.f32 1e-07, %v2063
        %v2065 = vpop.f32.mrb[0].mxu0
        %2066 = vdwg.mxu0
        %v2067 = vrsqrt.pop %v2059
        %v2068 = vmul.f32 %v2059, %v2067
        %vm2069 = vcmp.eq.f32.partialorder %v2059, inf
        %v2070 = vsel %vm2069, %v2059, %v2068
        %vm2071 = vcmp.eq.f32.partialorder %v2059, 0.0
        %v2072 = vand.u32 %v2059, 2147483648
        %v2073 = vsel %vm2071, %v2072, %v2070
        %v2074 = vrsqrt.pop %v2064
        %v2075 = vmul.f32 %v2064, %v2074
        %vm2076 = vcmp.eq.f32.partialorder %v2064, inf
        %v2077 = vsel %vm2076, %v2064, %v2075
        %vm2078 = vcmp.eq.f32.partialorder %v2064, 0.0
        %v2079 = vand.u32 %v2064, 2147483648
        %v2080 = vsel %vm2078, %v2079, %v2077
        %v2081 = vld [vmem:[%s664] sm:$0xff]
        %v2082 = vld [vmem:[%s664 + $0x8] sm:$0xff]
        %v2083 = vsub.f32 %v2073, %v2081
        %v2084 = vsub.f32 %v2080, %v2082
        %v2085 = vadd.f32 %v2073, 1e-10
        %v2086 = vadd.f32 %v2080, 1e-10
        %v2087 = vrcp.pop %v2085
        %v2088 = vmul.f32 %v2083, %v2087
        %v2089 = vrcp.pop %v2086
        %v2090 = vmul.f32 %v2084, %v2089
        %vm2091 = vcmask 130048
        %v2093 = vsel %vm2091, %v2088, 0
        %v2096 = vsel %vm2091, %v2090, 0
        %2098 = vmatprep.subr.mxu0 0.0
        %2099 = vmatpush1.msra.mxu0 %v675
        %2100 = vmatprep.subr.mxu0 0.0
        %2101 = vmatpush1.msra.mxu0 %v676
        %2102 = vmatprep.subr.mxu0 0.0
        %2103 = vmatpush1.msra.mxu0 0.0
        %2104 = vmatprep.subr.mxu0 0.0
        %2105 = vmatpush1.msra.mxu0 0.0
        %2106 = vmatprep.subr.mxu0 0.0
        %2107 = vmatpush1.msra.mxu0 0.0
        %2108 = vmatprep.subr.mxu0 0.0
        %2109 = vmatpush1.msra.mxu0 0.0
        %2110 = vmatprep.subr.mxu0 0.0
        %2111 = vmatpush1.msra.mxu0 0.0
        %2112 = vmatprep.subr.mxu0 0.0
        %2113 = vmatpush1.msra.mxu0 0.0
        %2114 = vmatprep.subr.mxu0 0.0
        %2115 = vmatpush1.msra.mxu0 0.0
        %2116 = vmatprep.subr.mxu0 0.0
        %2117 = vmatpush1.msra.mxu0 0.0
        %2118 = vmatprep.subr.mxu0 0.0
        %2119 = vmatpush1.msra.mxu0 0.0
        %2120 = vmatprep.subr.mxu0 0.0
        %2121 = vmatpush1.msra.mxu0 0.0
        %2122 = vmatprep.subr.mxu0 0.0
        %2123 = vmatpush1.msra.mxu0 0.0
        %2124 = vmatprep.subr.mxu0 0.0
        %2125 = vmatpush1.msra.mxu0 0.0
        %2126 = vmatprep.subr.mxu0 0.0
        %2127 = vmatpush1.msra.mxu0 0.0
        %2128 = vmatprep.subr.mxu0 0.0
        %2129 = vmatpush1.msra.mxu0 0.0
        %2130 = vmatprep.subr.mxu0 0.0
        %2131 = vmatpush1.msra.mxu0 0.0
        %2132 = vmatprep.subr.mxu0 0.0
        %2133 = vmatpush1.msra.mxu0 0.0
        %2134 = vmatprep.subr.mxu0 0.0
        %2135 = vmatpush1.msra.mxu0 0.0
        %2136 = vmatprep.subr.mxu0 0.0
        %2137 = vmatpush1.msra.mxu0 0.0
        %2138 = vmatprep.subr.mxu0 0.0
        %2139 = vmatpush1.msra.mxu0 0.0
        %2140 = vmatprep.subr.mxu0 0.0
        %2141 = vmatpush1.msra.mxu0 0.0
        %2142 = vmatprep.subr.mxu0 0.0
        %2143 = vmatpush1.msra.mxu0 0.0
        %2144 = vmatprep.subr.mxu0 0.0
        %2145 = vmatpush1.msra.mxu0 0.0
        %2146 = vmatprep.subr.mxu0 0.0
        %2147 = vmatpush1.msra.mxu0 0.0
        %2148 = vmatprep.subr.mxu0 0.0
        %2149 = vmatpush1.msra.mxu0 0.0
        %2150 = vmatprep.subr.mxu0 0.0
        %2151 = vmatpush1.msra.mxu0 0.0
        %2152 = vmatprep.subr.mxu0 0.0
        %2153 = vmatpush1.msra.mxu0 0.0
        %2154 = vmatprep.subr.mxu0 0.0
        %2155 = vmatpush1.msra.mxu0 0.0
        %2156 = vmatprep.subr.mxu0 0.0
        %2157 = vmatpush1.msra.mxu0 0.0
        %2158 = vmatprep.subr.mxu0 0.0
        %2159 = vmatpush1.msra.mxu0 0.0
        %2160 = vmatprep.subr.mxu0 0.0
        %2161 = vmatpush1.msra.mxu0 0.0
        %2162 = vmatprep.mubr.f32.mxu0 0.0
        %2163 = vmatmul.mubr.f32.gmra.mrb[0].mxu0 %v2093
        %v2164 = vpop.f32.mrb[0].mxu0
        %v2165 = vadd.f32 0.0, %v2164
        %v2166 = vpop.f32.mrb[0].mxu0
        %2167 = vmatprep.mubr.f32.mxu0 0.0
        %2168 = vmatmul.mubr.f32.gmra.mrb[0].mxu0 %v2096
        %v2169 = vpop.f32.mrb[0].mxu0
        %v2170 = vadd.f32 0.0, %v2169
        %v2171 = vpop.f32.mrb[0].mxu0
        %2172 = vdwg.mxu0
        %v2173 = vld [vmem:[#allocation3] sm:$0xff]
        %v2174 = vld [vmem:[#allocation3 + $0x8] sm:$0xff]
        %v2175 = vmul.f32 %v2165, %v2173
        %v2176 = vmul.f32 %v2170, %v2174
        %v2177 = vld [vmem:[#allocation4] sm:$0xff]
        %v2178 = vld [vmem:[#allocation4 + $0x8] sm:$0xff]
        %v2179 = vmul.f32 %v2165, %v2177
        %v2180 = vmul.f32 %v2170, %v2178
        %v2182 = vsel %vm2091, %v677, 0
        %v2185 = vsel %vm2091, %v678, 0
        %2187 = vmatprep.subr.mxu0 0.0
        %2188 = vmatpush1.msra.mxu0 %v2175
        %2189 = vmatprep.subr.mxu0 0.0
        %2190 = vmatpush1.msra.mxu0 %v2176
        %2191 = vmatprep.subr.mxu0 0.0
        %2192 = vmatpush1.msra.mxu0 0.0
        %2193 = vmatprep.subr.mxu0 0.0
        %2194 = vmatpush1.msra.mxu0 0.0
        %2195 = vmatprep.subr.mxu0 0.0
        %2196 = vmatpush1.msra.mxu0 0.0
        %2197 = vmatprep.subr.mxu0 0.0
        %2198 = vmatpush1.msra.mxu0 0.0
        %2199 = vmatprep.subr.mxu0 0.0
        %2200 = vmatpush1.msra.mxu0 0.0
        %2201 = vmatprep.subr.mxu0 0.0
        %2202 = vmatpush1.msra.mxu0 0.0
        %2203 = vmatprep.subr.mxu0 0.0
        %2204 = vmatpush1.msra.mxu0 0.0
        %2205 = vmatprep.subr.mxu0 0.0
        %2206 = vmatpush1.msra.mxu0 0.0
        %2207 = vmatprep.subr.mxu0 0.0
        %2208 = vmatpush1.msra.mxu0 0.0
        %2209 = vmatprep.subr.mxu0 0.0
        %2210 = vmatpush1.msra.mxu0 0.0
        %2211 = vmatprep.subr.mxu0 0.0
        %2212 = vmatpush1.msra.mxu0 0.0
        %2213 = vmatprep.subr.mxu0 0.0
        %2214 = vmatpush1.msra.mxu0 0.0
        %2215 = vmatprep.subr.mxu0 0.0
        %2216 = vmatpush1.msra.mxu0 0.0
        %2217 = vmatprep.subr.mxu0 0.0
        %2218 = vmatpush1.msra.mxu0 0.0
        %2219 = vmatprep.subr.mxu0 0.0
        %2220 = vmatpush1.msra.mxu0 0.0
        %2221 = vmatprep.subr.mxu0 0.0
        %2222 = vmatpush1.msra.mxu0 0.0
        %2223 = vmatprep.subr.mxu0 0.0
        %2224 = vmatpush1.msra.mxu0 0.0
        %2225 = vmatprep.subr.mxu0 0.0
        %2226 = vmatpush1.msra.mxu0 0.0
        %2227 = vmatprep.subr.mxu0 0.0
        %2228 = vmatpush1.msra.mxu0 0.0
        %2229 = vmatprep.subr.mxu0 0.0
        %2230 = vmatpush1.msra.mxu0 0.0
        %2231 = vmatprep.subr.mxu0 0.0
        %2232 = vmatpush1.msra.mxu0 0.0
        %2233 = vmatprep.subr.mxu0 0.0
        %2234 = vmatpush1.msra.mxu0 0.0
        %2235 = vmatprep.subr.mxu0 0.0
        %2236 = vmatpush1.msra.mxu0 0.0
        %2237 = vmatprep.subr.mxu0 0.0
        %2238 = vmatpush1.msra.mxu0 0.0
        %2239 = vmatprep.subr.mxu0 0.0
        %2240 = vmatpush1.msra.mxu0 0.0
        %2241 = vmatprep.subr.mxu0 0.0
        %2242 = vmatpush1.msra.mxu0 0.0
        %2243 = vmatprep.subr.mxu0 0.0
        %2244 = vmatpush1.msra.mxu0 0.0
        %2245 = vmatprep.subr.mxu0 0.0
        %2246 = vmatpush1.msra.mxu0 0.0
        %2247 = vmatprep.subr.mxu0 0.0
        %2248 = vmatpush1.msra.mxu0 0.0
        %2249 = vmatprep.subr.mxu0 0.0
        %2250 = vmatpush1.msra.mxu0 0.0
        %2251 = vmatprep.mubr.f32.mxu0 0.0
        %2252 = vmatmul.mubr.f32.gmra.mrb[0].mxu0 %v2182
        %v2253 = vpop.f32.mrb[0].mxu0
        %v2254 = vadd.f32 0.0, %v2253
        %v2255 = vpop.f32.mrb[0].mxu0
        %2256 = vmatprep.mubr.f32.mxu0 0.0
        %2257 = vmatmul.mubr.f32.gmra.mrb[0].mxu0 %v2185
        %v2258 = vpop.f32.mrb[0].mxu0
        %v2259 = vadd.f32 0.0, %v2258
        %v2260 = vpop.f32.mrb[0].mxu0
        %2261 = vdwg.mxu0
        %v2263 = vsel %vm2091, %v679, 0
        %v2266 = vsel %vm2091, %v680, 0
        %2268 = vmatprep.subr.mxu0 0.0
        %2269 = vmatpush1.msra.mxu0 %v2179
        %2270 = vmatprep.subr.mxu0 0.0
        %2271 = vmatpush1.msra.mxu0 %v2180
        %2272 = vmatprep.subr.mxu0 0.0
        %2273 = vmatpush1.msra.mxu0 0.0
        %2274 = vmatprep.subr.mxu0 0.0
        %2275 = vmatpush1.msra.mxu0 0.0
        %2276 = vmatprep.subr.mxu0 0.0
        %2277 = vmatpush1.msra.mxu0 0.0
        %2278 = vmatprep.subr.mxu0 0.0
        %2279 = vmatpush1.msra.mxu0 0.0
        %2280 = vmatprep.subr.mxu0 0.0
        %2281 = vmatpush1.msra.mxu0 0.0
        %2282 = vmatprep.subr.mxu0 0.0
        %2283 = vmatpush1.msra.mxu0 0.0
        %2284 = vmatprep.subr.mxu0 0.0
        %2285 = vmatpush1.msra.mxu0 0.0
        %2286 = vmatprep.subr.mxu0 0.0
        %2287 = vmatpush1.msra.mxu0 0.0
        %2288 = vmatprep.subr.mxu0 0.0
        %2289 = vmatpush1.msra.mxu0 0.0
        %2290 = vmatprep.subr.mxu0 0.0
        %2291 = vmatpush1.msra.mxu0 0.0
        %2292 = vmatprep.subr.mxu0 0.0
        %2293 = vmatpush1.msra.mxu0 0.0
        %2294 = vmatprep.subr.mxu0 0.0
        %2295 = vmatpush1.msra.mxu0 0.0
        %2296 = vmatprep.subr.mxu0 0.0
        %2297 = vmatpush1.msra.mxu0 0.0
        %2298 = vmatprep.subr.mxu0 0.0
        %2299 = vmatpush1.msra.mxu0 0.0
        %2300 = vmatprep.subr.mxu0 0.0
        %2301 = vmatpush1.msra.mxu0 0.0
        %2302 = vmatprep.subr.mxu0 0.0
        %2303 = vmatpush1.msra.mxu0 0.0
        %2304 = vmatprep.subr.mxu0 0.0
        %2305 = vmatpush1.msra.mxu0 0.0
        %2306 = vmatprep.subr.mxu0 0.0
        %2307 = vmatpush1.msra.mxu0 0.0
        %2308 = vmatprep.subr.mxu0 0.0
        %2309 = vmatpush1.msra.mxu0 0.0
        %2310 = vmatprep.subr.mxu0 0.0
        %2311 = vmatpush1.msra.mxu0 0.0
        %2312 = vmatprep.subr.mxu0 0.0
        %2313 = vmatpush1.msra.mxu0 0.0
        %2314 = vmatprep.subr.mxu0 0.0
        %2315 = vmatpush1.msra.mxu0 0.0
        %2316 = vmatprep.subr.mxu0 0.0
        %2317 = vmatpush1.msra.mxu0 0.0
        %2318 = vmatprep.subr.mxu0 0.0
        %2319 = vmatpush1.msra.mxu0 0.0
        %2320 = vmatprep.subr.mxu0 0.0
        %2321 = vmatpush1.msra.mxu0 0.0
        %2322 = vmatprep.subr.mxu0 0.0
        %2323 = vmatpush1.msra.mxu0 0.0
        %2324 = vmatprep.subr.mxu0 0.0
        %2325 = vmatpush1.msra.mxu0 0.0
        %2326 = vmatprep.subr.mxu0 0.0
        %2327 = vmatpush1.msra.mxu0 0.0
        %2328 = vmatprep.subr.mxu0 0.0
        %2329 = vmatpush1.msra.mxu0 0.0
        %2330 = vmatprep.subr.mxu0 0.0
        %2331 = vmatpush1.msra.mxu0 0.0
        %2332 = vmatprep.mubr.f32.mxu0 0.0
        %2333 = vmatmul.mubr.f32.gmra.mrb[0].mxu0 %v2263
        %v2334 = vpop.f32.mrb[0].mxu0
        %v2335 = vadd.f32 0.0, %v2334
        %v2336 = vpop.f32.mrb[0].mxu0
        %2337 = vmatprep.mubr.f32.mxu0 0.0
        %2338 = vmatmul.mubr.f32.gmra.mrb[0].mxu0 %v2266
        %v2339 = vpop.f32.mrb[0].mxu0
        %v2340 = vadd.f32 0.0, %v2339
        %v2341 = vpop.f32.mrb[0].mxu0
        %2342 = vdwg.mxu0
        %v2343 = vadd.f32 %v677, %v679
        %v2344 = vadd.f32 %v678, %v680
        %v2345 = vadd.f32 %v2175, %v2179
        %v2346 = vadd.f32 %v2176, %v2180
        %v2348 = vsel %vm2091, %v2343, 0
        %v2351 = vsel %vm2091, %v2344, 0
        %2353 = vmatprep.subr.mxu0 0.0
        %2354 = vmatpush1.msra.mxu0 %v2345
        %2355 = vmatprep.subr.mxu0 0.0
        %2356 = vmatpush1.msra.mxu0 %v2346
        %2357 = vmatprep.subr.mxu0 0.0
        %2358 = vmatpush1.msra.mxu0 0.0
        %2359 = vmatprep.subr.mxu0 0.0
        %2360 = vmatpush1.msra.mxu0 0.0
        %2361 = vmatprep.subr.mxu0 0.0
        %2362 = vmatpush1.msra.mxu0 0.0
        %2363 = vmatprep.subr.mxu0 0.0
        %2364 = vmatpush1.msra.mxu0 0.0
        %2365 = vmatprep.subr.mxu0 0.0
        %2366 = vmatpush1.msra.mxu0 0.0
        %2367 = vmatprep.subr.mxu0 0.0
        %2368 = vmatpush1.msra.mxu0 0.0
        %2369 = vmatprep.subr.mxu0 0.0
        %2370 = vmatpush1.msra.mxu0 0.0
        %2371 = vmatprep.subr.mxu0 0.0
        %2372 = vmatpush1.msra.mxu0 0.0
        %2373 = vmatprep.subr.mxu0 0.0
        %2374 = vmatpush1.msra.mxu0 0.0
        %2375 = vmatprep.subr.mxu0 0.0
        %2376 = vmatpush1.msra.mxu0 0.0
        %2377 = vmatprep.subr.mxu0 0.0
        %2378 = vmatpush1.msra.mxu0 0.0
        %2379 = vmatprep.subr.mxu0 0.0
        %2380 = vmatpush1.msra.mxu0 0.0
        %2381 = vmatprep.subr.mxu0 0.0
        %2382 = vmatpush1.msra.mxu0 0.0
        %2383 = vmatprep.subr.mxu0 0.0
        %2384 = vmatpush1.msra.mxu0 0.0
        %2385 = vmatprep.subr.mxu0 0.0
        %2386 = vmatpush1.msra.mxu0 0.0
        %2387 = vmatprep.subr.mxu0 0.0
        %2388 = vmatpush1.msra.mxu0 0.0
        %2389 = vmatprep.subr.mxu0 0.0
        %2390 = vmatpush1.msra.mxu0 0.0
        %2391 = vmatprep.subr.mxu0 0.0
        %2392 = vmatpush1.msra.mxu0 0.0
        %2393 = vmatprep.subr.mxu0 0.0
        %2394 = vmatpush1.msra.mxu0 0.0
        %2395 = vmatprep.subr.mxu0 0.0
        %2396 = vmatpush1.msra.mxu0 0.0
        %2397 = vmatprep.subr.mxu0 0.0
        %2398 = vmatpush1.msra.mxu0 0.0
        %2399 = vmatprep.subr.mxu0 0.0
        %2400 = vmatpush1.msra.mxu0 0.0
        %2401 = vmatprep.subr.mxu0 0.0
        %2402 = vmatpush1.msra.mxu0 0.0
        %2403 = vmatprep.subr.mxu0 0.0
        %2404 = vmatpush1.msra.mxu0 0.0
        %2405 = vmatprep.subr.mxu0 0.0
        %2406 = vmatpush1.msra.mxu0 0.0
        %2407 = vmatprep.subr.mxu0 0.0
        %2408 = vmatpush1.msra.mxu0 0.0
        %2409 = vmatprep.subr.mxu0 0.0
        %2410 = vmatpush1.msra.mxu0 0.0
        %2411 = vmatprep.subr.mxu0 0.0
        %2412 = vmatpush1.msra.mxu0 0.0
        %2413 = vmatprep.subr.mxu0 0.0
        %2414 = vmatpush1.msra.mxu0 0.0
        %2415 = vmatprep.subr.mxu0 0.0
        %2416 = vmatpush1.msra.mxu0 0.0
        %2417 = vmatprep.mubr.f32.mxu0 0.0
        %2418 = vmatmul.mubr.f32.gmra.mrb[0].mxu0 %v2348
        %v2419 = vpop.f32.mrb[0].mxu0
        %v2420 = vadd.f32 0.0, %v2419
        %v2421 = vpop.f32.mrb[0].mxu0
        %2422 = vmatprep.mubr.f32.mxu0 0.0
        %2423 = vmatmul.mubr.f32.gmra.mrb[0].mxu0 %v2351
        %v2424 = vpop.f32.mrb[0].mxu0
        %v2425 = vadd.f32 0.0, %v2424
        %v2426 = vpop.f32.mrb[0].mxu0
        %2427 = vdwg.mxu0
        %v2428 = vsub.f32 %v2254, %v2335
        %v2429 = vsub.f32 %v2259, %v2340
        %v2430 = vsub.f32 %v2420, %v2254
        %v2431 = vsub.f32 %v2425, %v2259
        %v2432 = vsub.f32 %v2430, %v2335
        %v2433 = vsub.f32 %v2431, %v2340
        %2434 = vmatprep.subr.mxu0 0.0
        %2435 = vmatpush1.msra.mxu0 %v685
        %2436 = vmatprep.subr.mxu0 0.0
        %2437 = vmatpush1.msra.mxu0 %v686
        %2438 = vmatprep.subr.mxu0 0.0
        %2439 = vmatpush1.msra.mxu0 %v687
        %2440 = vmatprep.subr.mxu0 0.0
        %2441 = vmatpush1.msra.mxu0 %v688
        %2442 = vmatprep.subr.mxu0 0.0
        %2443 = vmatpush1.msra.mxu0 %v689
        %2444 = vmatprep.subr.mxu0 0.0
        %2445 = vmatpush1.msra.mxu0 %v690
        %2446 = vmatprep.subr.mxu0 0.0
        %2447 = vmatpush1.msra.mxu0 %v691
        %2448 = vmatprep.subr.mxu0 0.0
        %2449 = vmatpush1.msra.mxu0 %v692
        %2450 = vmatprep.subr.mxu0 0.0
        %2451 = vmatpush1.msra.mxu0 %v693
        %2452 = vmatprep.subr.mxu0 0.0
        %2453 = vmatpush1.msra.mxu0 %v694
        %2454 = vmatprep.subr.mxu0 0.0
        %2455 = vmatpush1.msra.mxu0 %v695
        %2456 = vmatprep.subr.mxu0 0.0
        %2457 = vmatpush1.msra.mxu0 %v696
        %2458 = vmatprep.subr.mxu0 0.0
        %2459 = vmatpush1.msra.mxu0 %v697
        %2460 = vmatprep.subr.mxu0 0.0
        %2461 = vmatpush1.msra.mxu0 %v698
        %2462 = vmatprep.subr.mxu0 0.0
        %2463 = vmatpush1.msra.mxu0 %v699
        %2464 = vmatprep.subr.mxu0 0.0
        %2465 = vmatpush1.msra.mxu0 %v700
        %2466 = vmatprep.subr.mxu0 0.0
        %2467 = vmatpush1.msra.mxu0 0.0
        %2468 = vmatprep.subr.mxu0 0.0
        %2469 = vmatpush1.msra.mxu0 0.0
        %2470 = vmatprep.subr.mxu0 0.0
        %2471 = vmatpush1.msra.mxu0 0.0
        %2472 = vmatprep.subr.mxu0 0.0
        %2473 = vmatpush1.msra.mxu0 0.0
        %2474 = vmatprep.subr.mxu0 0.0
        %2475 = vmatpush1.msra.mxu0 0.0
        %2476 = vmatprep.subr.mxu0 0.0
        %2477 = vmatpush1.msra.mxu0 0.0
        %2478 = vmatprep.subr.mxu0 0.0
        %2479 = vmatpush1.msra.mxu0 0.0
        %2480 = vmatprep.subr.mxu0 0.0
        %2481 = vmatpush1.msra.mxu0 0.0
        %2482 = vmatprep.subr.mxu0 0.0
        %2483 = vmatpush1.msra.mxu0 0.0
        %2484 = vmatprep.subr.mxu0 0.0
        %2485 = vmatpush1.msra.mxu0 0.0
        %2486 = vmatprep.subr.mxu0 0.0
        %2487 = vmatpush1.msra.mxu0 0.0
        %2488 = vmatprep.subr.mxu0 0.0
        %2489 = vmatpush1.msra.mxu0 0.0
        %2490 = vmatprep.subr.mxu0 0.0
        %2491 = vmatpush1.msra.mxu0 0.0
        %2492 = vmatprep.subr.mxu0 0.0
        %2493 = vmatpush1.msra.mxu0 0.0
        %2494 = vmatprep.subr.mxu0 0.0
        %2495 = vmatpush1.msra.mxu0 0.0
        %2496 = vmatprep.subr.mxu0 0.0
        %2497 = vmatpush1.msra.mxu0 0.0
        %2498 = vmatprep.mubr.f32.mxu0 0.0
        %2499 = vmatmul.mubr.f32.gmra.mrb[0].mxu0 %v2428
        %v2500 = vpop.f32.mrb[0].mxu0
        %v2501 = vadd.f32 0.0, %v2500
        %v2502 = vpop.f32.mrb[0].mxu0
        %2503 = vmatprep.mubr.f32.mxu0 0.0
        %2504 = vmatmul.mubr.f32.gmra.mrb[0].mxu0 %v2429
        %v2505 = vpop.f32.mrb[0].mxu0
        %v2506 = vadd.f32 0.0, %v2505
        %v2507 = vpop.f32.mrb[0].mxu0
        %2508 = vdwg.mxu0
        %2509 = vmatprep.subr.mxu0 0.0
        %2510 = vmatpush1.msra.mxu0 %v701
        %2511 = vmatprep.subr.mxu0 0.0
        %2512 = vmatpush1.msra.mxu0 %v702
        %2513 = vmatprep.subr.mxu0 0.0
        %2514 = vmatpush1.msra.mxu0 %v703
        %2515 = vmatprep.subr.mxu0 0.0
        %2516 = vmatpush1.msra.mxu0 %v704
        %2517 = vmatprep.subr.mxu0 0.0
        %2518 = vmatpush1.msra.mxu0 %v705
        %2519 = vmatprep.subr.mxu0 0.0
        %2520 = vmatpush1.msra.mxu0 %v706
        %2521 = vmatprep.subr.mxu0 0.0
        %2522 = vmatpush1.msra.mxu0 %v707
        %2523 = vmatprep.subr.mxu0 0.0
        %2524 = vmatpush1.msra.mxu0 %v708
        %2525 = vmatprep.subr.mxu0 0.0
        %2526 = vmatpush1.msra.mxu0 %v709
        %2527 = vmatprep.subr.mxu0 0.0
        %2528 = vmatpush1.msra.mxu0 %v710
        %2529 = vmatprep.subr.mxu0 0.0
        %2530 = vmatpush1.msra.mxu0 %v711
        %2531 = vmatprep.subr.mxu0 0.0
        %2532 = vmatpush1.msra.mxu0 %v712
        %2533 = vmatprep.subr.mxu0 0.0
        %2534 = vmatpush1.msra.mxu0 %v713
        %2535 = vmatprep.subr.mxu0 0.0
        %2536 = vmatpush1.msra.mxu0 %v714
        %2537 = vmatprep.subr.mxu0 0.0
        %2538 = vmatpush1.msra.mxu0 %v715
        %2539 = vmatprep.subr.mxu0 0.0
        %2540 = vmatpush1.msra.mxu0 %v716
        %2541 = vmatprep.subr.mxu0 0.0
        %2542 = vmatpush1.msra.mxu0 0.0
        %2543 = vmatprep.subr.mxu0 0.0
        %2544 = vmatpush1.msra.mxu0 0.0
        %2545 = vmatprep.subr.mxu0 0.0
        %2546 = vmatpush1.msra.mxu0 0.0
        %2547 = vmatprep.subr.mxu0 0.0
        %2548 = vmatpush1.msra.mxu0 0.0
        %2549 = vmatprep.subr.mxu0 0.0
        %2550 = vmatpush1.msra.mxu0 0.0
        %2551 = vmatprep.subr.mxu0 0.0
        %2552 = vmatpush1.msra.mxu0 0.0
        %2553 = vmatprep.subr.mxu0 0.0
        %2554 = vmatpush1.msra.mxu0 0.0
        %2555 = vmatprep.subr.mxu0 0.0
        %2556 = vmatpush1.msra.mxu0 0.0
        %2557 = vmatprep.subr.mxu0 0.0
        %2558 = vmatpush1.msra.mxu0 0.0
        %2559 = vmatprep.subr.mxu0 0.0
        %2560 = vmatpush1.msra.mxu0 0.0
        %2561 = vmatprep.subr.mxu0 0.0
        %2562 = vmatpush1.msra.mxu0 0.0
        %2563 = vmatprep.subr.mxu0 0.0
        %2564 = vmatpush1.msra.mxu0 0.0
        %2565 = vmatprep.subr.mxu0 0.0
        %2566 = vmatpush1.msra.mxu0 0.0
        %2567 = vmatprep.subr.mxu0 0.0
        %2568 = vmatpush1.msra.mxu0 0.0
        %2569 = vmatprep.subr.mxu0 0.0
        %2570 = vmatpush1.msra.mxu0 0.0
        %2571 = vmatprep.subr.mxu0 0.0
        %2572 = vmatpush1.msra.mxu0 0.0
        %2573 = vmatprep.mubr.f32.mxu0 0.0
        %2574 = vmatmul.mubr.f32.gmra.mrb[0].mxu0 %v2432
        %v2575 = vpop.f32.mrb[0].mxu0
        %v2576 = vadd.f32 0.0, %v2575
        %v2577 = vpop.f32.mrb[0].mxu0
        %2578 = vmatprep.mubr.f32.mxu0 0.0
        %2579 = vmatmul.mubr.f32.gmra.mrb[0].mxu0 %v2433
        %v2580 = vpop.f32.mrb[0].mxu0
        %v2581 = vadd.f32 0.0, %v2580
        %v2582 = vpop.f32.mrb[0].mxu0
        %2583 = vdwg.mxu0
        %v2584 = vadd.f32 %v2428, %v2432
        %v2585 = vadd.f32 %v2429, %v2433
        %v2586 = vadd.f32 %v685, %v701
        %v2587 = vadd.f32 %v686, %v702
        %v2588 = vadd.f32 %v687, %v703
        %v2589 = vadd.f32 %v688, %v704
        %v2590 = vadd.f32 %v689, %v705
        %v2591 = vadd.f32 %v690, %v706
        %v2592 = vadd.f32 %v691, %v707
        %v2593 = vadd.f32 %v692, %v708
        %v2594 = vadd.f32 %v693, %v709
        %v2595 = vadd.f32 %v694, %v710
        %v2596 = vadd.f32 %v695, %v711
        %v2597 = vadd.f32 %v696, %v712
        %v2598 = vadd.f32 %v697, %v713
        %v2599 = vadd.f32 %v698, %v714
        %v2600 = vadd.f32 %v699, %v715
        %v2601 = vadd.f32 %v700, %v716
        %2602 = vmatprep.subr.mxu0 0.0
        %2603 = vmatpush1.msra.mxu0 %v2586
        %2604 = vmatprep.subr.mxu0 0.0
        %2605 = vmatpush1.msra.mxu0 %v2587
        %2606 = vmatprep.subr.mxu0 0.0
        %2607 = vmatpush1.msra.mxu0 %v2588
        %2608 = vmatprep.subr.mxu0 0.0
        %2609 = vmatpush1.msra.mxu0 %v2589
        %2610 = vmatprep.subr.mxu0 0.0
        %2611 = vmatpush1.msra.mxu0 %v2590
        %2612 = vmatprep.subr.mxu0 0.0
        %2613 = vmatpush1.msra.mxu0 %v2591
        %2614 = vmatprep.subr.mxu0 0.0
        %2615 = vmatpush1.msra.mxu0 %v2592
        %2616 = vmatprep.subr.mxu0 0.0
        %2617 = vmatpush1.msra.mxu0 %v2593
        %2618 = vmatprep.subr.mxu0 0.0
        %2619 = vmatpush1.msra.mxu0 %v2594
        %2620 = vmatprep.subr.mxu0 0.0
        %2621 = vmatpush1.msra.mxu0 %v2595
        %2622 = vmatprep.subr.mxu0 0.0
        %2623 = vmatpush1.msra.mxu0 %v2596
        %2624 = vmatprep.subr.mxu0 0.0
        %2625 = vmatpush1.msra.mxu0 %v2597
        %2626 = vmatprep.subr.mxu0 0.0
        %2627 = vmatpush1.msra.mxu0 %v2598
        %2628 = vmatprep.subr.mxu0 0.0
        %2629 = vmatpush1.msra.mxu0 %v2599
        %2630 = vmatprep.subr.mxu0 0.0
        %2631 = vmatpush1.msra.mxu0 %v2600
        %2632 = vmatprep.subr.mxu0 0.0
        %2633 = vmatpush1.msra.mxu0 %v2601
        %2634 = vmatprep.subr.mxu0 0.0
        %2635 = vmatpush1.msra.mxu0 0.0
        %2636 = vmatprep.subr.mxu0 0.0
        %2637 = vmatpush1.msra.mxu0 0.0
        %2638 = vmatprep.subr.mxu0 0.0
        %2639 = vmatpush1.msra.mxu0 0.0
        %2640 = vmatprep.subr.mxu0 0.0
        %2641 = vmatpush1.msra.mxu0 0.0
        %2642 = vmatprep.subr.mxu0 0.0
        %2643 = vmatpush1.msra.mxu0 0.0
        %2644 = vmatprep.subr.mxu0 0.0
        %2645 = vmatpush1.msra.mxu0 0.0
        %2646 = vmatprep.subr.mxu0 0.0
        %2647 = vmatpush1.msra.mxu0 0.0
        %2648 = vmatprep.subr.mxu0 0.0
        %2649 = vmatpush1.msra.mxu0 0.0
        %2650 = vmatprep.subr.mxu0 0.0
        %2651 = vmatpush1.msra.mxu0 0.0
        %2652 = vmatprep.subr.mxu0 0.0
        %2653 = vmatpush1.msra.mxu0 0.0
        %2654 = vmatprep.subr.mxu0 0.0
        %2655 = vmatpush1.msra.mxu0 0.0
        %2656 = vmatprep.subr.mxu0 0.0
        %2657 = vmatpush1.msra.mxu0 0.0
        %2658 = vmatprep.subr.mxu0 0.0
        %2659 = vmatpush1.msra.mxu0 0.0
        %2660 = vmatprep.subr.mxu0 0.0
        %2661 = vmatpush1.msra.mxu0 0.0
        %2662 = vmatprep.subr.mxu0 0.0
        %2663 = vmatpush1.msra.mxu0 0.0
        %2664 = vmatprep.subr.mxu0 0.0
        %2665 = vmatpush1.msra.mxu0 0.0
        %2666 = vmatprep.mubr.f32.mxu0 0.0
        %2667 = vmatmul.mubr.f32.gmra.mrb[0].mxu0 %v2584
        %v2668 = vpop.f32.mrb[0].mxu0
        %v2669 = vadd.f32 0.0, %v2668
        %v2670 = vpop.f32.mrb[0].mxu0
        %2671 = vmatprep.mubr.f32.mxu0 0.0
        %2672 = vmatmul.mubr.f32.gmra.mrb[0].mxu0 %v2585
        %v2673 = vpop.f32.mrb[0].mxu0
        %v2674 = vadd.f32 0.0, %v2673
        %v2675 = vpop.f32.mrb[0].mxu0
        %2676 = vdwg.mxu0
        %v2677 = vsub.f32 %v2501, %v2576
        %v2678 = vsub.f32 %v2506, %v2581
        %v2679 = vsub.f32 %v2669, %v2501
        %v2680 = vsub.f32 %v2674, %v2506
        %v2681 = vsub.f32 %v2679, %v2576
        %v2682 = vsub.f32 %v2680, %v2581
        %v2683 = vld [vmem:[%s5] sm:$0xff]
        %v2684 = vld [vmem:[%s5 + $0x8] sm:$0xff]
        %v2685 = vmul.f32 %v2683, %v2677
        %v2686 = vmul.f32 %v2684, %v2678
        %v2687 = vmul.f32 %v2683, %v2681
        %v2688 = vmul.f32 %v2684, %v2682
        %v2690 = vsel %vm2091, %v681, 0
        %v2693 = vsel %vm2091, %v682, 0
        %2695 = vmatprep.subr.mxu0 0.0
        %2696 = vmatpush1.msra.mxu0 %v2685
        %2697 = vmatprep.subr.mxu0 0.0
        %2698 = vmatpush1.msra.mxu0 %v2686
        %2699 = vmatprep.subr.mxu0 0.0
        %2700 = vmatpush1.msra.mxu0 0.0
        %2701 = vmatprep.subr.mxu0 0.0
        %2702 = vmatpush1.msra.mxu0 0.0
        %2703 = vmatprep.subr.mxu0 0.0
        %2704 = vmatpush1.msra.mxu0 0.0
        %2705 = vmatprep.subr.mxu0 0.0
        %2706 = vmatpush1.msra.mxu0 0.0
        %2707 = vmatprep.subr.mxu0 0.0
        %2708 = vmatpush1.msra.mxu0 0.0
        %2709 = vmatprep.subr.mxu0 0.0
        %2710 = vmatpush1.msra.mxu0 0.0
        %2711 = vmatprep.subr.mxu0 0.0
        %2712 = vmatpush1.msra.mxu0 0.0
        %2713 = vmatprep.subr.mxu0 0.0
        %2714 = vmatpush1.msra.mxu0 0.0
        %2715 = vmatprep.subr.mxu0 0.0
        %2716 = vmatpush1.msra.mxu0 0.0
        %2717 = vmatprep.subr.mxu0 0.0
        %2718 = vmatpush1.msra.mxu0 0.0
        %2719 = vmatprep.subr.mxu0 0.0
        %2720 = vmatpush1.msra.mxu0 0.0
        %2721 = vmatprep.subr.mxu0 0.0
        %2722 = vmatpush1.msra.mxu0 0.0
        %2723 = vmatprep.subr.mxu0 0.0
        %2724 = vmatpush1.msra.mxu0 0.0
        %2725 = vmatprep.subr.mxu0 0.0
        %2726 = vmatpush1.msra.mxu0 0.0
        %2727 = vmatprep.subr.mxu0 0.0
        %2728 = vmatpush1.msra.mxu0 0.0
        %2729 = vmatprep.subr.mxu0 0.0
        %2730 = vmatpush1.msra.mxu0 0.0
        %2731 = vmatprep.subr.mxu0 0.0
        %2732 = vmatpush1.msra.mxu0 0.0
        %2733 = vmatprep.subr.mxu0 0.0
        %2734 = vmatpush1.msra.mxu0 0.0
        %2735 = vmatprep.subr.mxu0 0.0
        %2736 = vmatpush1.msra.mxu0 0.0
        %2737 = vmatprep.subr.mxu0 0.0
        %2738 = vmatpush1.msra.mxu0 0.0
        %2739 = vmatprep.subr.mxu0 0.0
        %2740 = vmatpush1.msra.mxu0 0.0
        %2741 = vmatprep.subr.mxu0 0.0
        %2742 = vmatpush1.msra.mxu0 0.0
        %2743 = vmatprep.subr.mxu0 0.0
        %2744 = vmatpush1.msra.mxu0 0.0
        %2745 = vmatprep.subr.mxu0 0.0
        %2746 = vmatpush1.msra.mxu0 0.0
        %2747 = vmatprep.subr.mxu0 0.0
        %2748 = vmatpush1.msra.mxu0 0.0
        %2749 = vmatprep.subr.mxu0 0.0
        %2750 = vmatpush1.msra.mxu0 0.0
        %2751 = vmatprep.subr.mxu0 0.0
        %2752 = vmatpush1.msra.mxu0 0.0
        %2753 = vmatprep.subr.mxu0 0.0
        %2754 = vmatpush1.msra.mxu0 0.0
        %2755 = vmatprep.subr.mxu0 0.0
        %2756 = vmatpush1.msra.mxu0 0.0
        %2757 = vmatprep.subr.mxu0 0.0
        %2758 = vmatpush1.msra.mxu0 0.0
        %2759 = vmatprep.mubr.f32.mxu0 0.0
        %2760 = vmatmul.mubr.f32.gmra.mrb[0].mxu0 %v2690
        %v2761 = vpop.f32.mrb[0].mxu0
        %v2762 = vadd.f32 0.0, %v2761
        %v2763 = vpop.f32.mrb[0].mxu0
        %2764 = vmatprep.mubr.f32.mxu0 0.0
        %2765 = vmatmul.mubr.f32.gmra.mrb[0].mxu0 %v2693
        %v2766 = vpop.f32.mrb[0].mxu0
        %v2767 = vadd.f32 0.0, %v2766
        %v2768 = vpop.f32.mrb[0].mxu0
        %2769 = vdwg.mxu0
        %v2771 = vsel %vm2091, %v683, 0
        %v2774 = vsel %vm2091, %v684, 0
        %2776 = vmatprep.subr.mxu0 0.0
        %2777 = vmatpush1.msra.mxu0 %v2687
        %2778 = vmatprep.subr.mxu0 0.0
        %2779 = vmatpush1.msra.mxu0 %v2688
        %2780 = vmatprep.subr.mxu0 0.0
        %2781 = vmatpush1.msra.mxu0 0.0
        %2782 = vmatprep.subr.mxu0 0.0
        %2783 = vmatpush1.msra.mxu0 0.0
        %2784 = vmatprep.subr.mxu0 0.0
        %2785 = vmatpush1.msra.mxu0 0.0
        %2786 = vmatprep.subr.mxu0 0.0
        %2787 = vmatpush1.msra.mxu0 0.0
        %2788 = vmatprep.subr.mxu0 0.0
        %2789 = vmatpush1.msra.mxu0 0.0
        %2790 = vmatprep.subr.mxu0 0.0
        %2791 = vmatpush1.msra.mxu0 0.0
        %2792 = vmatprep.subr.mxu0 0.0
        %2793 = vmatpush1.msra.mxu0 0.0
        %2794 = vmatprep.subr.mxu0 0.0
        %2795 = vmatpush1.msra.mxu0 0.0
        %2796 = vmatprep.subr.mxu0 0.0
        %2797 = vmatpush1.msra.mxu0 0.0
        %2798 = vmatprep.subr.mxu0 0.0
        %2799 = vmatpush1.msra.mxu0 0.0
        %2800 = vmatprep.subr.mxu0 0.0
        %2801 = vmatpush1.msra.mxu0 0.0
        %2802 = vmatprep.subr.mxu0 0.0
        %2803 = vmatpush1.msra.mxu0 0.0
        %2804 = vmatprep.subr.mxu0 0.0
        %2805 = vmatpush1.msra.mxu0 0.0
        %2806 = vmatprep.subr.mxu0 0.0
        %2807 = vmatpush1.msra.mxu0 0.0
        %2808 = vmatprep.subr.mxu0 0.0
        %2809 = vmatpush1.msra.mxu0 0.0
        %2810 = vmatprep.subr.mxu0 0.0
        %2811 = vmatpush1.msra.mxu0 0.0
        %2812 = vmatprep.subr.mxu0 0.0
        %2813 = vmatpush1.msra.mxu0 0.0
        %2814 = vmatprep.subr.mxu0 0.0
        %2815 = vmatpush1.msra.mxu0 0.0
        %2816 = vmatprep.subr.mxu0 0.0
        %2817 = vmatpush1.msra.mxu0 0.0
        %2818 = vmatprep.subr.mxu0 0.0
        %2819 = vmatpush1.msra.mxu0 0.0
        %2820 = vmatprep.subr.mxu0 0.0
        %2821 = vmatpush1.msra.mxu0 0.0
        %2822 = vmatprep.subr.mxu0 0.0
        %2823 = vmatpush1.msra.mxu0 0.0
        %2824 = vmatprep.subr.mxu0 0.0
        %2825 = vmatpush1.msra.mxu0 0.0
        %2826 = vmatprep.subr.mxu0 0.0
        %2827 = vmatpush1.msra.mxu0 0.0
        %2828 = vmatprep.subr.mxu0 0.0
        %2829 = vmatpush1.msra.mxu0 0.0
        %2830 = vmatprep.subr.mxu0 0.0
        %2831 = vmatpush1.msra.mxu0 0.0
        %2832 = vmatprep.subr.mxu0 0.0
        %2833 = vmatpush1.msra.mxu0 0.0
        %2834 = vmatprep.subr.mxu0 0.0
        %2835 = vmatpush1.msra.mxu0 0.0
        %2836 = vmatprep.subr.mxu0 0.0
        %2837 = vmatpush1.msra.mxu0 0.0
        %2838 = vmatprep.subr.mxu0 0.0
        %2839 = vmatpush1.msra.mxu0 0.0
        %2840 = vmatprep.mubr.f32.mxu0 0.0
        %2841 = vmatmul.mubr.f32.gmra.mrb[0].mxu0 %v2771
        %v2842 = vpop.f32.mrb[0].mxu0
        %v2843 = vadd.f32 0.0, %v2842
        %v2844 = vpop.f32.mrb[0].mxu0
        %2845 = vmatprep.mubr.f32.mxu0 0.0
        %2846 = vmatmul.mubr.f32.gmra.mrb[0].mxu0 %v2774
        %v2847 = vpop.f32.mrb[0].mxu0
        %v2848 = vadd.f32 0.0, %v2847
        %v2849 = vpop.f32.mrb[0].mxu0
        %2850 = vdwg.mxu0
        %v2851 = vadd.f32 %v681, %v683
        %v2852 = vadd.f32 %v682, %v684
        %v2853 = vadd.f32 %v2685, %v2687
        %v2854 = vadd.f32 %v2686, %v2688
        %v2856 = vsel %vm2091, %v2851, 0
        %v2859 = vsel %vm2091, %v2852, 0
        %2861 = vmatprep.subr.mxu0 0.0
        %2862 = vmatpush1.msra.mxu0 %v2853
        %2863 = vmatprep.subr.mxu0 0.0
        %2864 = vmatpush1.msra.mxu0 %v2854
        %2865 = vmatprep.subr.mxu0 0.0
        %2866 = vmatpush1.msra.mxu0 0.0
        %2867 = vmatprep.subr.mxu0 0.0
        %2868 = vmatpush1.msra.mxu0 0.0
        %2869 = vmatprep.subr.mxu0 0.0
        %2870 = vmatpush1.msra.mxu0 0.0
        %2871 = vmatprep.subr.mxu0 0.0
        %2872 = vmatpush1.msra.mxu0 0.0
        %2873 = vmatprep.subr.mxu0 0.0
        %2874 = vmatpush1.msra.mxu0 0.0
        %2875 = vmatprep.subr.mxu0 0.0
        %2876 = vmatpush1.msra.mxu0 0.0
        %2877 = vmatprep.subr.mxu0 0.0
        %2878 = vmatpush1.msra.mxu0 0.0
        %2879 = vmatprep.subr.mxu0 0.0
        %2880 = vmatpush1.msra.mxu0 0.0
        %2881 = vmatprep.subr.mxu0 0.0
        %2882 = vmatpush1.msra.mxu0 0.0
        %2883 = vmatprep.subr.mxu0 0.0
        %2884 = vmatpush1.msra.mxu0 0.0
        %2885 = vmatprep.subr.mxu0 0.0
        %2886 = vmatpush1.msra.mxu0 0.0
        %2887 = vmatprep.subr.mxu0 0.0
        %2888 = vmatpush1.msra.mxu0 0.0
        %2889 = vmatprep.subr.mxu0 0.0
        %2890 = vmatpush1.msra.mxu0 0.0
        %2891 = vmatprep.subr.mxu0 0.0
        %2892 = vmatpush1.msra.mxu0 0.0
        %2893 = vmatprep.subr.mxu0 0.0
        %2894 = vmatpush1.msra.mxu0 0.0
        %2895 = vmatprep.subr.mxu0 0.0
        %2896 = vmatpush1.msra.mxu0 0.0
        %2897 = vmatprep.subr.mxu0 0.0
        %2898 = vmatpush1.msra.mxu0 0.0
        %2899 = vmatprep.subr.mxu0 0.0
        %2900 = vmatpush1.msra.mxu0 0.0
        %2901 = vmatprep.subr.mxu0 0.0
        %2902 = vmatpush1.msra.mxu0 0.0
        %2903 = vmatprep.subr.mxu0 0.0
        %2904 = vmatpush1.msra.mxu0 0.0
        %2905 = vmatprep.subr.mxu0 0.0
        %2906 = vmatpush1.msra.mxu0 0.0
        %2907 = vmatprep.subr.mxu0 0.0
        %2908 = vmatpush1.msra.mxu0 0.0
        %2909 = vmatprep.subr.mxu0 0.0
        %2910 = vmatpush1.msra.mxu0 0.0
        %2911 = vmatprep.subr.mxu0 0.0
        %2912 = vmatpush1.msra.mxu0 0.0
        %2913 = vmatprep.subr.mxu0 0.0
        %2914 = vmatpush1.msra.mxu0 0.0
        %2915 = vmatprep.subr.mxu0 0.0
        %2916 = vmatpush1.msra.mxu0 0.0
        %2917 = vmatprep.subr.mxu0 0.0
        %2918 = vmatpush1.msra.mxu0 0.0
        %2919 = vmatprep.subr.mxu0 0.0
        %2920 = vmatpush1.msra.mxu0 0.0
        %2921 = vmatprep.subr.mxu0 0.0
        %2922 = vmatpush1.msra.mxu0 0.0
        %2923 = vmatprep.subr.mxu0 0.0
        %2924 = vmatpush1.msra.mxu0 0.0
        %2925 = vmatprep.mubr.f32.mxu0 0.0
        %2926 = vmatmul.mubr.f32.gmra.mrb[0].mxu0 %v2856
        %v2927 = vpop.f32.mrb[0].mxu0
        %v2928 = vadd.f32 0.0, %v2927
        %v2929 = vpop.f32.mrb[0].mxu0
        %2930 = vmatprep.mubr.f32.mxu0 0.0
        %2931 = vmatmul.mubr.f32.gmra.mrb[0].mxu0 %v2859
        %v2932 = vpop.f32.mrb[0].mxu0
        %v2933 = vadd.f32 0.0, %v2932
        %v2934 = vpop.f32.mrb[0].mxu0
        %2935 = vdwg.mxu0
        %v2936 = vsub.f32 %v2762, %v2843
        %v2937 = vsub.f32 %v2767, %v2848
        %v2938 = vsub.f32 %v2928, %v2762
        %v2939 = vsub.f32 %v2933, %v2767
        %v2940 = vsub.f32 %v2938, %v2843
        %v2941 = vsub.f32 %v2939, %v2848
        %v2942 = vld [vmem:[%s669] sm:$0xff]
        %v2943 = vld [vmem:[%s669 + $0x8] sm:$0xff]
        %v2944 = vld [vmem:[%s669 + $0x10] sm:$0xff]
        %v2945 = vld [vmem:[%s669 + $0x18] sm:$0xff]
        %v2946 = vld [vmem:[%s669 + $0x20] sm:$0xff]
        %v2947 = vld [vmem:[%s669 + $0x28] sm:$0xff]
        %v2948 = vld [vmem:[%s669 + $0x30] sm:$0xff]
        %v2949 = vld [vmem:[%s669 + $0x38] sm:$0xff]
        %v2950 = vld [vmem:[%s669 + $0x40] sm:$0xff]
        %v2951 = vld [vmem:[%s669 + $0x48] sm:$0xff]
        %v2952 = vld [vmem:[%s669 + $0x50] sm:$0xff]
        %v2953 = vld [vmem:[%s669 + $0x58] sm:$0xff]
        %v2954 = vld [vmem:[%s669 + $0x60] sm:$0xff]
        %v2955 = vld [vmem:[%s669 + $0x68] sm:$0xff]
        %v2956 = vld [vmem:[%s669 + $0x70] sm:$0xff]
        %v2957 = vld [vmem:[%s669 + $0x78] sm:$0xff]
        %v2958 = vld [vmem:[%s674] sm:$0xff]
        %v2959 = vld [vmem:[%s674 + $0x8] sm:$0xff]
        %v2960 = vld [vmem:[%s674 + $0x10] sm:$0xff]
        %v2961 = vld [vmem:[%s674 + $0x18] sm:$0xff]
        %v2962 = vld [vmem:[%s674 + $0x20] sm:$0xff]
        %v2963 = vld [vmem:[%s674 + $0x28] sm:$0xff]
        %v2964 = vld [vmem:[%s674 + $0x30] sm:$0xff]
        %v2965 = vld [vmem:[%s674 + $0x38] sm:$0xff]
        %v2966 = vld [vmem:[%s674 + $0x40] sm:$0xff]
        %v2967 = vld [vmem:[%s674 + $0x48] sm:$0xff]
        %v2968 = vld [vmem:[%s674 + $0x50] sm:$0xff]
        %v2969 = vld [vmem:[%s674 + $0x58] sm:$0xff]
        %v2970 = vld [vmem:[%s674 + $0x60] sm:$0xff]
        %v2971 = vld [vmem:[%s674 + $0x68] sm:$0xff]
        %v2972 = vld [vmem:[%s674 + $0x70] sm:$0xff]
        %v2973 = vld [vmem:[%s674 + $0x78] sm:$0xff]
        %2974 = vmatprep.subr.mxu0 0.0
        %2975 = vmatpush1.msra.mxu0 %v2942
        %2976 = vmatprep.subr.mxu0 0.0
        %2977 = vmatpush1.msra.mxu0 %v2943
        %2978 = vmatprep.subr.mxu0 0.0
        %2979 = vmatpush1.msra.mxu0 %v2944
        %2980 = vmatprep.subr.mxu0 0.0
        %2981 = vmatpush1.msra.mxu0 %v2945
        %2982 = vmatprep.subr.mxu0 0.0
        %2983 = vmatpush1.msra.mxu0 %v2946
        %2984 = vmatprep.subr.mxu0 0.0
        %2985 = vmatpush1.msra.mxu0 %v2947
        %2986 = vmatprep.subr.mxu0 0.0
        %2987 = vmatpush1.msra.mxu0 %v2948
        %2988 = vmatprep.subr.mxu0 0.0
        %2989 = vmatpush1.msra.mxu0 %v2949
        %2990 = vmatprep.subr.mxu0 0.0
        %2991 = vmatpush1.msra.mxu0 %v2950
        %2992 = vmatprep.subr.mxu0 0.0
        %2993 = vmatpush1.msra.mxu0 %v2951
        %2994 = vmatprep.subr.mxu0 0.0
        %2995 = vmatpush1.msra.mxu0 %v2952
        %2996 = vmatprep.subr.mxu0 0.0
        %2997 = vmatpush1.msra.mxu0 %v2953
        %2998 = vmatprep.subr.mxu0 0.0
        %2999 = vmatpush1.msra.mxu0 %v2954
        %3000 = vmatprep.subr.mxu0 0.0
        %3001 = vmatpush1.msra.mxu0 %v2955
        %3002 = vmatprep.subr.mxu0 0.0
        %3003 = vmatpush1.msra.mxu0 %v2956
        %3004 = vmatprep.subr.mxu0 0.0
        %3005 = vmatpush1.msra.mxu0 %v2957
        %3006 = vmatprep.subr.mxu0 0.0
        %3007 = vmatpush1.msra.mxu0 0.0
        %3008 = vmatprep.subr.mxu0 0.0
        %3009 = vmatpush1.msra.mxu0 0.0
        %3010 = vmatprep.subr.mxu0 0.0
        %3011 = vmatpush1.msra.mxu0 0.0
        %3012 = vmatprep.subr.mxu0 0.0
        %3013 = vmatpush1.msra.mxu0 0.0
        %3014 = vmatprep.subr.mxu0 0.0
        %3015 = vmatpush1.msra.mxu0 0.0
        %3016 = vmatprep.subr.mxu0 0.0
        %3017 = vmatpush1.msra.mxu0 0.0
        %3018 = vmatprep.subr.mxu0 0.0
        %3019 = vmatpush1.msra.mxu0 0.0
        %3020 = vmatprep.subr.mxu0 0.0
        %3021 = vmatpush1.msra.mxu0 0.0
        %3022 = vmatprep.subr.mxu0 0.0
        %3023 = vmatpush1.msra.mxu0 0.0
        %3024 = vmatprep.subr.mxu0 0.0
        %3025 = vmatpush1.msra.mxu0 0.0
        %3026 = vmatprep.subr.mxu0 0.0
        %3027 = vmatpush1.msra.mxu0 0.0
        %3028 = vmatprep.subr.mxu0 0.0
        %3029 = vmatpush1.msra.mxu0 0.0
        %3030 = vmatprep.subr.mxu0 0.0
        %3031 = vmatpush1.msra.mxu0 0.0
        %3032 = vmatprep.subr.mxu0 0.0
        %3033 = vmatpush1.msra.mxu0 0.0
        %3034 = vmatprep.subr.mxu0 0.0
        %3035 = vmatpush1.msra.mxu0 0.0
        %3036 = vmatprep.subr.mxu0 0.0
        %3037 = vmatpush1.msra.mxu0 0.0
        %3038 = vmatprep.mubr.f32.mxu0 0.0
        %3039 = vmatmul.mubr.f32.gmra.mrb[0].mxu0 %v2936
        %v3040 = vpop.f32.mrb[0].mxu0
        %v3041 = vadd.f32 0.0, %v3040
        %v3042 = vpop.f32.mrb[0].mxu0
        %3043 = vmatprep.mubr.f32.mxu0 0.0
        %3044 = vmatmul.mubr.f32.gmra.mrb[0].mxu0 %v2937
        %v3045 = vpop.f32.mrb[0].mxu0
        %v3046 = vadd.f32 0.0, %v3045
        %v3047 = vpop.f32.mrb[0].mxu0
        %3048 = vdwg.mxu0
        %3049 = vmatprep.subr.mxu0 0.0
        %3050 = vmatpush1.msra.mxu0 %v2958
        %3051 = vmatprep.subr.mxu0 0.0
        %3052 = vmatpush1.msra.mxu0 %v2959
        %3053 = vmatprep.subr.mxu0 0.0
        %3054 = vmatpush1.msra.mxu0 %v2960
        %3055 = vmatprep.subr.mxu0 0.0
        %3056 = vmatpush1.msra.mxu0 %v2961
        %3057 = vmatprep.subr.mxu0 0.0
        %3058 = vmatpush1.msra.mxu0 %v2962
        %3059 = vmatprep.subr.mxu0 0.0
        %3060 = vmatpush1.msra.mxu0 %v2963
        %3061 = vmatprep.subr.mxu0 0.0
        %3062 = vmatpush1.msra.mxu0 %v2964
        %3063 = vmatprep.subr.mxu0 0.0
        %3064 = vmatpush1.msra.mxu0 %v2965
        %3065 = vmatprep.subr.mxu0 0.0
        %3066 = vmatpush1.msra.mxu0 %v2966
        %3067 = vmatprep.subr.mxu0 0.0
        %3068 = vmatpush1.msra.mxu0 %v2967
        %3069 = vmatprep.subr.mxu0 0.0
        %3070 = vmatpush1.msra.mxu0 %v2968
        %3071 = vmatprep.subr.mxu0 0.0
        %3072 = vmatpush1.msra.mxu0 %v2969
        %3073 = vmatprep.subr.mxu0 0.0
        %3074 = vmatpush1.msra.mxu0 %v2970
        %3075 = vmatprep.subr.mxu0 0.0
        %3076 = vmatpush1.msra.mxu0 %v2971
        %3077 = vmatprep.subr.mxu0 0.0
        %3078 = vmatpush1.msra.mxu0 %v2972
        %3079 = vmatprep.subr.mxu0 0.0
        %3080 = vmatpush1.msra.mxu0 %v2973
        %3081 = vmatprep.subr.mxu0 0.0
        %3082 = vmatpush1.msra.mxu0 0.0
        %3083 = vmatprep.subr.mxu0 0.0
        %3084 = vmatpush1.msra.mxu0 0.0
        %3085 = vmatprep.subr.mxu0 0.0
        %3086 = vmatpush1.msra.mxu0 0.0
        %3087 = vmatprep.subr.mxu0 0.0
        %3088 = vmatpush1.msra.mxu0 0.0
        %3089 = vmatprep.subr.mxu0 0.0
        %3090 = vmatpush1.msra.mxu0 0.0
        %3091 = vmatprep.subr.mxu0 0.0
        %3092 = vmatpush1.msra.mxu0 0.0
        %3093 = vmatprep.subr.mxu0 0.0
        %3094 = vmatpush1.msra.mxu0 0.0
        %3095 = vmatprep.subr.mxu0 0.0
        %3096 = vmatpush1.msra.mxu0 0.0
        %3097 = vmatprep.subr.mxu0 0.0
        %3098 = vmatpush1.msra.mxu0 0.0
        %3099 = vmatprep.subr.mxu0 0.0
        %3100 = vmatpush1.msra.mxu0 0.0
        %3101 = vmatprep.subr.mxu0 0.0
        %3102 = vmatpush1.msra.mxu0 0.0
        %3103 = vmatprep.subr.mxu0 0.0
        %3104 = vmatpush1.msra.mxu0 0.0
        %3105 = vmatprep.subr.mxu0 0.0
        %3106 = vmatpush1.msra.mxu0 0.0
        %3107 = vmatprep.subr.mxu0 0.0
        %3108 = vmatpush1.msra.mxu0 0.0
        %3109 = vmatprep.subr.mxu0 0.0
        %3110 = vmatpush1.msra.mxu0 0.0
        %3111 = vmatprep.subr.mxu0 0.0
        %3112 = vmatpush1.msra.mxu0 0.0
        %3113 = vmatprep.mubr.f32.mxu0 0.0
        %3114 = vmatmul.mubr.f32.gmra.mrb[0].mxu0 %v2940
        %v3115 = vpop.f32.mrb[0].mxu0
        %v3116 = vadd.f32 0.0, %v3115
        %v3117 = vpop.f32.mrb[0].mxu0
        %3118 = vmatprep.mubr.f32.mxu0 0.0
        %3119 = vmatmul.mubr.f32.gmra.mrb[0].mxu0 %v2941
        %v3120 = vpop.f32.mrb[0].mxu0
        %v3121 = vadd.f32 0.0, %v3120
        %v3122 = vpop.f32.mrb[0].mxu0
        %3123 = vdwg.mxu0
        %v3124 = vadd.f32 %v2936, %v2940
        %v3125 = vadd.f32 %v2937, %v2941
        %v3126 = vadd.f32 %v2942, %v2958
        %v3127 = vadd.f32 %v2943, %v2959
        %v3128 = vadd.f32 %v2944, %v2960
        %v3129 = vadd.f32 %v2945, %v2961
        %v3130 = vadd.f32 %v2946, %v2962
        %v3131 = vadd.f32 %v2947, %v2963
        %v3132 = vadd.f32 %v2948, %v2964
        %v3133 = vadd.f32 %v2949, %v2965
        %v3134 = vadd.f32 %v2950, %v2966
        %v3135 = vadd.f32 %v2951, %v2967
        %v3136 = vadd.f32 %v2952, %v2968
        %v3137 = vadd.f32 %v2953, %v2969
        %v3138 = vadd.f32 %v2954, %v2970
        %v3139 = vadd.f32 %v2955, %v2971
        %v3140 = vadd.f32 %v2956, %v2972
        %v3141 = vadd.f32 %v2957, %v2973
        %3142 = vmatprep.subr.mxu0 0.0
        %3143 = vmatpush1.msra.mxu0 %v3126
        %3144 = vmatprep.subr.mxu0 0.0
        %3145 = vmatpush1.msra.mxu0 %v3127
        %3146 = vmatprep.subr.mxu0 0.0
        %3147 = vmatpush1.msra.mxu0 %v3128
        %3148 = vmatprep.subr.mxu0 0.0
        %3149 = vmatpush1.msra.mxu0 %v3129
        %3150 = vmatprep.subr.mxu0 0.0
        %3151 = vmatpush1.msra.mxu0 %v3130
        %3152 = vmatprep.subr.mxu0 0.0
        %3153 = vmatpush1.msra.mxu0 %v3131
        %3154 = vmatprep.subr.mxu0 0.0
        %3155 = vmatpush1.msra.mxu0 %v3132
        %3156 = vmatprep.subr.mxu0 0.0
        %3157 = vmatpush1.msra.mxu0 %v3133
        %3158 = vmatprep.subr.mxu0 0.0
        %3159 = vmatpush1.msra.mxu0 %v3134
        %3160 = vmatprep.subr.mxu0 0.0
        %3161 = vmatpush1.msra.mxu0 %v3135
        %3162 = vmatprep.subr.mxu0 0.0
        %3163 = vmatpush1.msra.mxu0 %v3136
        %3164 = vmatprep.subr.mxu0 0.0
        %3165 = vmatpush1.msra.mxu0 %v3137
        %3166 = vmatprep.subr.mxu0 0.0
        %3167 = vmatpush1.msra.mxu0 %v3138
        %3168 = vmatprep.subr.mxu0 0.0
        %3169 = vmatpush1.msra.mxu0 %v3139
        %3170 = vmatprep.subr.mxu0 0.0
        %3171 = vmatpush1.msra.mxu0 %v3140
        %3172 = vmatprep.subr.mxu0 0.0
        %3173 = vmatpush1.msra.mxu0 %v3141
        %3174 = vmatprep.subr.mxu0 0.0
        %3175 = vmatpush1.msra.mxu0 0.0
        %3176 = vmatprep.subr.mxu0 0.0
        %3177 = vmatpush1.msra.mxu0 0.0
        %3178 = vmatprep.subr.mxu0 0.0
        %3179 = vmatpush1.msra.mxu0 0.0
        %3180 = vmatprep.subr.mxu0 0.0
        %3181 = vmatpush1.msra.mxu0 0.0
        %3182 = vmatprep.subr.mxu0 0.0
        %3183 = vmatpush1.msra.mxu0 0.0
        %3184 = vmatprep.subr.mxu0 0.0
        %3185 = vmatpush1.msra.mxu0 0.0
        %3186 = vmatprep.subr.mxu0 0.0
        %3187 = vmatpush1.msra.mxu0 0.0
        %3188 = vmatprep.subr.mxu0 0.0
        %3189 = vmatpush1.msra.mxu0 0.0
        %3190 = vmatprep.subr.mxu0 0.0
        %3191 = vmatpush1.msra.mxu0 0.0
        %3192 = vmatprep.subr.mxu0 0.0
        %3193 = vmatpush1.msra.mxu0 0.0
        %3194 = vmatprep.subr.mxu0 0.0
        %3195 = vmatpush1.msra.mxu0 0.0
        %3196 = vmatprep.subr.mxu0 0.0
        %3197 = vmatpush1.msra.mxu0 0.0
        %3198 = vmatprep.subr.mxu0 0.0
        %3199 = vmatpush1.msra.mxu0 0.0
        %3200 = vmatprep.subr.mxu0 0.0
        %3201 = vmatpush1.msra.mxu0 0.0
        %3202 = vmatprep.subr.mxu0 0.0
        %3203 = vmatpush1.msra.mxu0 0.0
        %3204 = vmatprep.subr.mxu0 0.0
        %3205 = vmatpush1.msra.mxu0 0.0
        %3206 = vmatprep.mubr.f32.mxu0 0.0
        %3207 = vmatmul.mubr.f32.gmra.mrb[0].mxu0 %v3124
        %v3208 = vpop.f32.mrb[0].mxu0
        %v3209 = vadd.f32 0.0, %v3208
        %v3210 = vpop.f32.mrb[0].mxu0
        %3211 = vmatprep.mubr.f32.mxu0 0.0
        %3212 = vmatmul.mubr.f32.gmra.mrb[0].mxu0 %v3125
        %v3213 = vpop.f32.mrb[0].mxu0
        %v3214 = vadd.f32 0.0, %v3213
        %v3215 = vpop.f32.mrb[0].mxu0
        %3216 = vdwg.mxu0
        %v3217 = vsub.f32 %v3041, %v3116
        %v3218 = vsub.f32 %v3046, %v3121
        %v3219 = vsub.f32 %v3209, %v3041
        %v3220 = vsub.f32 %v3214, %v3046
        %v3221 = vsub.f32 %v3219, %v3116
        %v3222 = vsub.f32 %v3220, %v3121
        %v3223 = vld [vmem:[#allocation5] sm:$0xff]
        %v3224 = vld [vmem:[#allocation5 + $0x8] sm:$0xff]
        %v3225 = vadd.f32 %v3223, %v3217
        %v3226 = vadd.f32 %v3224, %v3218
        %3227 = vst.msk [vmem:[#allocation5] sm:$0xff] %vm2091, %v3225
        %3228 = vst.msk [vmem:[#allocation5 + $0x8] sm:$0xff] %vm2091, %v3226
        %v3229 = vld [vmem:[#allocation6] sm:$0xff]
        %v3230 = vld [vmem:[#allocation6 + $0x8] sm:$0xff]
        %v3231 = vadd.f32 %v3229, %v3221
        %v3232 = vadd.f32 %v3230, %v3222
        %3233 = vst.msk [vmem:[#allocation6] sm:$0xff] %vm2091, %v3231
        %3234 = vst.msk [vmem:[#allocation6 + $0x8] sm:$0xff] %vm2091, %v3232
        %p3235 = scmp.eq.s32.totalorder %s34, 1
        // Predicated region
        $region101: #{tpu_custom_call.1} parent=95 // pred_check
          %p3236 = pneg %p3235
        $region102: #{tpu_custom_call.1} parent=95 // pred_check_branch
          %3238 = sbr.rel (%p3236) target = $region104
        $region103: #{tpu_custom_call.1} parent=95 // pred_region
          %v3239 = vld [vmem:[%s0] sm:$0xff]
          %v3240 = vld [vmem:[%s0 + $0x8] sm:$0xff]
          %v3241 = vld [vmem:[#allocation5] sm:$0xff]
          %v3242 = vld [vmem:[#allocation5 + $0x8] sm:$0xff]
          %v3243 = vmul.f32 %v3241, 0.1
          %v3244 = vmul.f32 %v3242, 0.1
          %v3245 = vsub.f32 %v3239, %v3243
          %v3246 = vsub.f32 %v3240, %v3244
          %3247 = vst.msk [vmem:[#allocation7] sm:$0xff] %vm2091, %v3245
          %3248 = vst.msk [vmem:[#allocation7 + $0x8] sm:$0xff] %vm2091, %v3246
          %v3249 = vld [vmem:[%s1] sm:$0xff]
          %v3250 = vld [vmem:[%s1 + $0x8] sm:$0xff]
          %v3251 = vld [vmem:[#allocation6] sm:$0xff]
          %v3252 = vld [vmem:[#allocation6 + $0x8] sm:$0xff]
          %v3253 = vmul.f32 %v3251, 0.1
          %v3254 = vmul.f32 %v3252, 0.1
          %v3255 = vsub.f32 %v3249, %v3253
          %v3256 = vsub.f32 %v3250, %v3254
          %3257 = vst.msk [vmem:[#allocation9] sm:$0xff] %vm2091, %v3255
          %3258 = vst.msk [vmem:[#allocation9 + $0x8] sm:$0xff] %vm2091, %v3256
        $region104: #{tpu_custom_call.1} parent=95 // pred_fallthru
          _
        // Predicated region
        $region105: #{tpu_custom_call.1} parent=95 // pred_check
          %p3259 = pneg %p466
        $region106: #{tpu_custom_call.1} parent=95 // pred_check_branch
          %3261 = sbr.rel (%p3259) target = $region108
        $region107: #{tpu_custom_call.1} parent=95 // pred_region
          %s3263 = ssub.s32 256, 256
          %3264 = vsyncadd [#allocation8], %s3263
          %s3265 = sshll.u32 [#allocation7], 4
          %s3266 = int_to_ptr.vmem [resolvable:$true] %s3265
          %3271 = dma.vmem_to_hbm [thread:$0]  %s3266, 256, %s19, [#allocation8], 128, 128, 8
        $region108: #{tpu_custom_call.1} parent=95 // pred_fallthru
          _
        // Predicated region
        $region109: #{tpu_custom_call.1} parent=95 // pred_check
          %p3272 = pneg %p487
        $region110: #{tpu_custom_call.1} parent=95 // pred_check_branch
          %3274 = sbr.rel (%p3272) target = $region112
        $region111: #{tpu_custom_call.1} parent=95 // pred_region
          %s3276 = ssub.s32 256, 256
          %3277 = vsyncadd [#allocation10], %s3276
          %s3278 = sshll.u32 [#allocation9], 4
          %s3279 = int_to_ptr.vmem [resolvable:$true] %s3278
          %3284 = dma.vmem_to_hbm [thread:$0]  %s3279, 256, %s20, [#allocation10], 128, 128, 8
        $region112: #{tpu_custom_call.1} parent=95 // pred_fallthru
          _
        // Predicated region
        $region113: #{tpu_custom_call.1} parent=95 // pred_check
          %p3285 = pneg %p466
        $region114: #{tpu_custom_call.1} parent=95 // pred_check_branch
          %3287 = sbr.rel (%p3285) target = $region116
        $region115: #{tpu_custom_call.1} parent=95 // pred_region
          %3288 = dma.done [#allocation8], 256
        $region116: #{tpu_custom_call.1} parent=95 // pred_fallthru
          _
        // Predicated region
        $region117: #{tpu_custom_call.1} parent=95 // pred_check
          %p3289 = pneg %p487
        $region118: #{tpu_custom_call.1} parent=95 // pred_check_branch
          %3291 = sbr.rel (%p3289) target = $region120
        $region119: #{tpu_custom_call.1} parent=95 // pred_region
          %3292 = dma.done [#allocation10], 256
        $region120: #{tpu_custom_call.1} parent=95 // pred_fallthru
          _
      $region96: #{tpu_custom_call.1} parent=5 // pred_fallthru
        _
      %p3293 = scmp.le.s32.totalorder 2, %s29
      // Predicated region
      $region121: #{tpu_custom_call.1} parent=5 // pred_check
        %p3294 = pneg %p3293
      $region122: #{tpu_custom_call.1} parent=5 // pred_check_branch
        %3296 = sbr.rel (%p3294) target = $region124
      $region123: #{tpu_custom_call.1} parent=5 // pred_region
        %s3297 = ssub.s32 %s29, 2
      $region124: #{tpu_custom_call.1} parent=5 // pred_fallthru
        _
    $region6: #{tpu_custom_call.1} parent=1 // loop_footer
      %s33 = sadd.s32 1, %s29
    $region7: #{tpu_custom_call.1} parent=1 // loop_footer_branch
      %28 = sbr.rel target = $region3
    $region8: #{tpu_custom_call.1} parent=1 // loop_exit
      _
    %3298 = vsyncpa [#allocation8], 1
    %s3299 = scalar_lea.sflag [#allocation8], 1
    %3300 = vsyncpa %s3299, 1
    %3301 = vsyncpa [#allocation10], 1

</llo_original>
